<compile_context>
chip_gen: v7x
topology: tpu7x:2x2x1
jax: 0.10.0
libtpu: 0.0.40
codegen_flags: <defaults>
</compile_context>

<pallas_src>
import functools
import math

import jax
import jax.numpy as jnp
from jax.experimental import pallas as pl
from jax.experimental.pallas import tpu as pltpu


# ----------------------------------------------------------------------------
# Fused Pallas kernel: conv1 (1->C) + channel attention + (wo & conv2 folded)
# ----------------------------------------------------------------------------
def fused_kernel(x_ref, w1_ref, b1_ref, wqkv_ref, mask_ref, weff_ref, b3_ref,
                 o_ref, *, nbt, L):
    """One grid step processes `nbt` spatial blocks, laid out along lanes.

    x_ref    : (1, 1, nbt*L)  single-channel pixels of nbt blocks (lane-concatenated)
    w1_ref   : (C, 1)         conv1 weight (Cin=1)
    b1_ref   : (C, 1)         conv1 bias
    wqkv_ref : (3C, C) bf16   stacked bias-free channel projections [Wq; Wk; Wv]
    mask_ref : (C, C)         additive head-block-diagonal bias (0 / -1e30)
    weff_ref : (1, C)         l3_w @ wo  (conv2 folded into the out-projection)
    b3_ref   : (1, 1)         conv2 bias
    o_ref    : (1, 1, nbt*L)  single-channel output pixels
    """
    C = mask_ref.shape[0]
    lanes = nbt * L

    x = x_ref[0]                                               # (1, lanes)

    # ---- conv1 (Cin=1): pure VPU broadcast --------------------------------
    x1 = w1_ref[...] * x + b1_ref[...]                         # (C, lanes) f32

    # ---- fused Q/K/V projection: one (3C, C) @ (C, lanes) bf16 MXU matmul --
    qkv = jnp.dot(wqkv_ref[...], x1.astype(jnp.bfloat16),
                  preferred_element_type=jnp.float32)          # (3C, lanes) f32
    q = qkv[0 * C:1 * C]
    k = qkv[1 * C:2 * C]
    v = qkv[2 * C:3 * C]

    mask_bias = mask_ref[...]                                  # (C, C), hoisted
    weff = weff_ref[...]                                       # (1, C), hoisted
    scale = jnp.float32(1.0 / math.sqrt(L))

    # ---- per spatial block: masked full-C attention (== 4 separate heads) --
    # conv2 is folded BEFORE the PV matmul: y_b = (weff @ attn) @ v_b.
    pieces = []
    for b in range(nbt):                                       # small static unroll
        lo, hi = b * L, (b + 1) * L
        qb = q[:, lo:hi]                                       # (C, L)
        kb = k[:, lo:hi]
        vb = v[:, lo:hi]

        logits = jnp.dot(qb, kb.T,
                         preferred_element_type=jnp.float32) * scale + mask_bias
        mrow = jnp.max(logits, axis=-1, keepdims=True)
        p = jnp.exp(logits - mrow)
        s = jnp.sum(p, axis=-1, keepdims=True)
        attn = p * pl.reciprocal(s, approx=True)               # EUP divide

        wa = jnp.dot(weff, attn, preferred_element_type=jnp.float32)   # (1, C)
        pieces.append(jnp.dot(wa, vb, preferred_element_type=jnp.float32))  # (1, L)

    y = jnp.concatenate(pieces, axis=-1) + b3_ref[...]         # (1, lanes)
    o_ref[0] = y.astype(o_ref.dtype)                           # single lane-dense store


# ----------------------------------------------------------------------------
# Wrapper
# ----------------------------------------------------------------------------
def _num_tensorcores():
    """2 TCs per chip on v7x, otherwise 1. Best-effort query."""
    try:
        kind = jax.devices()[0].device_kind.lower()
        if "v7" in kind:
            return 2
    except Exception:
        pass
    return 1


def _pick_nbt(nb, L, num_cores, max_lanes=8192):
    """Blocks per grid step: prefer lane axis % 128 == 0, then a grid length that
    splits evenly across TensorCores, then the fewest grid steps (largest lanes)."""
    best, best_key = 1, None
    for d in range(1, nb + 1):
        if nb % d or d * L > max_lanes:
            continue
        g = nb // d
        key = ((d * L) % 128 == 0, g % num_cores == 0, d * L)
        if best_key is None or key > best_key:
            best, best_key = d, key
    return best


def model_forward(params, x, n, m, heads=4):
    B, Cin, H, W = x.shape
    assert Cin == 1
    C = params["wq"].shape[0]
    dh = C // heads
    hb, wb = H // n, W // m
    L = hb * wb
    NB = B * n * m

    # decompose2d on the 1-channel input only (cheap), flatten each block to L pixels.
    xb = (x.reshape(B, 1, n, hb, m, wb)
           .transpose(0, 2, 4, 1, 3, 5)          # (B, n, m, 1, hb, wb)
           .reshape(NB, L))

    NBT = _pick_nbt(NB, L, _num_tensorcores())
    G = NB // NBT
    lanes = NBT * L
    xg = xb.reshape(G, 1, lanes)                 # row-major merge, no transpose

    w1 = params["l1_w"].reshape(C, 1)
    b1 = params["l1_b"].reshape(C, 1)
    wqkv = jnp.concatenate(
        [params["wq"], params["wk"], params["wv"]], axis=0).astype(jnp.bfloat16)
    w_eff = params["l3_w"].reshape(1, C) @ params["wo"]   # fold conv2 into out-proj
    b3 = params["l3_b"].reshape(1, 1)

    # Additive head-block-diagonal bias (0 within a head's dh x dh block, -1e30 outside).
    hr = jnp.arange(C) // dh
    mask_bias = jnp.where(hr[:, None] == hr[None, :],
                          jnp.float32(0.0), jnp.float32(-1e30))

    kernel = functools.partial(fused_kernel, nbt=NBT, L=L)
    out = pl.pallas_call(
        kernel,
        out_shape=jax.ShapeDtypeStruct((G, 1, lanes), x.dtype),
        grid=(G,),
        in_specs=[
            pl.BlockSpec((1, 1, lanes), lambda g: (g, 0, 0)),   # x tile
            pl.BlockSpec((C, 1), lambda g: (0, 0)),             # w1
            pl.BlockSpec((C, 1), lambda g: (0, 0)),             # b1
            pl.BlockSpec((3 * C, C), lambda g: (0, 0)),         # wqkv (bf16)
            pl.BlockSpec((C, C), lambda g: (0, 0)),             # head mask bias
            pl.BlockSpec((1, C), lambda g: (0, 0)),             # w_eff
            pl.BlockSpec((1, 1), lambda g: (0, 0)),             # b3
        ],
        out_specs=pl.BlockSpec((1, 1, lanes), lambda g: (g, 0, 0)),
        compiler_params=pltpu.CompilerParams(dimension_semantics=("parallel",)),
    )(xg, w1, b1, wqkv, mask_bias, w_eff, b3)

    # recompose2d on the 1-channel output only.
    y = (out.reshape(B, n, m, 1, hb, wb)
            .transpose(0, 3, 1, 4, 2, 5)         # (B, 1, n, hb, m, wb)
            .reshape(B, 1, H, W))
    return y


# ----------------------------------------------------------------------------
# Pure-JAX reference (same assumed semantics) for a sanity check
# ----------------------------------------------------------------------------
def reference_forward(params, x, n, m, heads=4):
    B, _, H, W = x.shape
    C = params["wq"].shape[0]
    x1 = jnp.einsum('oi,bihw->bohw', params["l1_w"], x) \
        + params["l1_b"][None, :, None, None]
    hb, wb = H // n, W // m
    L = hb * wb
    xb = (x1.reshape(B, C, n, hb, m, wb)
            .transpose(0, 2, 4, 1, 3, 5)
            .reshape(B * n * m, C, L))
    q = jnp.einsum('cd,bdl->bcl', params["wq"], xb)
    k = jnp.einsum('cd,bdl->bcl', params["wk"], xb)
    v = jnp.einsum('cd,bdl->bcl', params["wv"], xb)
    dh = C // heads
    outs = []
    for h in range(heads):
        qh, kh, vh = (t[:, h * dh:(h + 1) * dh] for t in (q, k, v))
        logits = jnp.einsum('bcl,bdl->bcd', qh, kh) / jnp.sqrt(jnp.float32(L))
        attn = jax.nn.softmax(logits, axis=-1)
        outs.append(jnp.einsum('bcd,bdl->bcl', attn, vh))
    o = jnp.concatenate(outs, axis=1)
    o = jnp.einsum('cd,bdl->bcl', params["wo"], o)
    o = (o.reshape(B, n, m, C, hb, wb)
          .transpose(0, 3, 1, 4, 2, 5)
          .reshape(B, C, H, W))
    return jnp.einsum('oi,bihw->bohw', params["l3_w"], o) \
        + params["l3_b"][None, :, None, None]


# ----------------------------------------------------------------------------
# Deterministic parameter init + demo
# ----------------------------------------------------------------------------
def init_params(key, c_mid=32):
    ks = jax.random.split(key, 8)
    s = 0.1
    return {
        "l1_w": s * jax.random.normal(ks[0], (c_mid, 1), jnp.float32),   # (Cout, Cin)
        "l1_b": s * jax.random.normal(ks[1], (c_mid,), jnp.float32),
        "wq":   s * jax.random.normal(ks[2], (c_mid, c_mid), jnp.float32),
        "wk":   s * jax.random.normal(ks[3], (c_mid, c_mid), jnp.float32),
        "wv":   s * jax.random.normal(ks[4], (c_mid, c_mid), jnp.float32),
        "wo":   s * jax.random.normal(ks[5], (c_mid, c_mid), jnp.float32),
        "l3_w": s * jax.random.normal(ks[6], (1, c_mid), jnp.float32),
        "l3_b": s * jax.random.normal(ks[7], (1,), jnp.float32),
    }


if __name__ == "__main__":
    key = jax.random.PRNGKey(0)
    k_x, k_p = jax.random.split(key)

    B, H, W = 2, 16, 16
    n, m = 2, 2                                   # 2x2 grid of 8x8 spatial blocks
    x = jax.random.normal(k_x, (B, 1, H, W), jnp.float32)   # NCHW, like PyTorch
    params = init_params(k_p)

    fwd = jax.jit(functools.partial(model_forward, n=n, m=m))
    y = fwd(params, x)
    jax.block_until_ready(y)

    assert y.shape == (B, 1, H, W), y.shape
    assert bool(jnp.all(jnp.isfinite(y)))

    y_ref = reference_forward(params, x, n, m)
    assert jnp.allclose(y, y_ref, rtol=2e-2, atol=2e-2), \
        float(jnp.max(jnp.abs(y - y_ref)))

    print("KERNEL_OK")
</pallas_src>

<mosaic_0001>
module attributes {stable_mosaic.version = 11 : i64} {
  func.func @fused_kernel(%arg0: i32, %arg1: memref<1x1x512xf32, #tpu.memory_space<vmem>>, %arg2: memref<32x1xf32, #tpu.memory_space<vmem>>, %arg3: memref<32x1xf32, #tpu.memory_space<vmem>>, %arg4: memref<96x32xbf16, #tpu.memory_space<vmem>>, %arg5: memref<32x32xf32, #tpu.memory_space<vmem>>, %arg6: memref<1x32xf32, #tpu.memory_space<vmem>>, %arg7: memref<1x1xf32, #tpu.memory_space<vmem>>, %arg8: memref<1x1x512xf32, #tpu.memory_space<vmem>>) attributes {dimension_semantics = [#tpu.dimension_semantics<parallel>], iteration_bounds = array<i64: 1>, scalar_prefetch = 0 : i64, scratch_operands = 0 : i64, tpu.core_type = #tpu.core_type<tc>, window_params = [{transform_indices = @transform_0, window_bounds = array<i64: 1, 1, 512>}, {pipeline_mode = #tpu.pipeline_mode<synchronous>, transform_indices = @transform_1, window_bounds = array<i64: 32, 1>}, {pipeline_mode = #tpu.pipeline_mode<synchronous>, transform_indices = @transform_2, window_bounds = array<i64: 32, 1>}, {pipeline_mode = #tpu.pipeline_mode<synchronous>, transform_indices = @transform_3, window_bounds = array<i64: 96, 32>}, {pipeline_mode = #tpu.pipeline_mode<synchronous>, transform_indices = @transform_4, window_bounds = array<i64: 32, 32>}, {pipeline_mode = #tpu.pipeline_mode<synchronous>, transform_indices = @transform_5, window_bounds = array<i64: 1, 32>}, {pipeline_mode = #tpu.pipeline_mode<synchronous>, transform_indices = @transform_6, window_bounds = array<i64: 1, 1>}, {transform_indices = @transform_7, window_bounds = array<i64: 1, 1, 512>}]} {
    %c0 = arith.constant 0 : index
    %c0_0 = arith.constant 0 : index
    %c0_1 = arith.constant 0 : index
    %0 = vector.load %arg1[%c0, %c0_0, %c0_1] : memref<1x1x512xf32, #tpu.memory_space<vmem>>, vector<1x1x512xf32>
    %1 = vector.shape_cast %0 : vector<1x1x512xf32> to vector<1x512xf32>
    %c0_2 = arith.constant 0 : index
    %c0_3 = arith.constant 0 : index
    %2 = vector.load %arg2[%c0_2, %c0_3] : memref<32x1xf32, #tpu.memory_space<vmem>>, vector<32x1xf32>
    %3 = vector.broadcast %2 : vector<32x1xf32> to vector<32x512xf32>
    %4 = vector.broadcast %1 : vector<1x512xf32> to vector<32x512xf32>
    %5 = arith.mulf %3, %4 : vector<32x512xf32>
    %c0_4 = arith.constant 0 : index
    %c0_5 = arith.constant 0 : index
    %6 = vector.load %arg3[%c0_4, %c0_5] : memref<32x1xf32, #tpu.memory_space<vmem>>, vector<32x1xf32>
    %7 = vector.broadcast %6 : vector<32x1xf32> to vector<32x512xf32>
    %8 = arith.addf %5, %7 : vector<32x512xf32>
    %c0_6 = arith.constant 0 : index
    %c0_7 = arith.constant 0 : index
    %9 = vector.load %arg4[%c0_6, %c0_7] : memref<96x32xbf16, #tpu.memory_space<vmem>>, vector<96x32xbf16>
    %10 = arith.truncf %8 : vector<32x512xf32> to vector<32x512xbf16>
    %cst = arith.constant dense<0.000000e+00> : vector<96x512xf32>
    %11 = tpu.matmul %9, %10, %cst {dimension_numbers = #tpu.dot_dimension_numbers<[1], [0], [0], [1], [0, 0, 1, 1], [], []>} : vector<96x32xbf16>, vector<32x512xbf16>, vector<96x512xf32> -> vector<96x512xf32>
    %12 = vector.extract_strided_slice %11 {offsets = [0, 0], sizes = [32, 512], strides = [1, 1]} : vector<96x512xf32> to vector<32x512xf32>
    %13 = vector.extract_strided_slice %11 {offsets = [32, 0], sizes = [32, 512], strides = [1, 1]} : vector<96x512xf32> to vector<32x512xf32>
    %14 = vector.extract_strided_slice %11 {offsets = [64, 0], sizes = [32, 512], strides = [1, 1]} : vector<96x512xf32> to vector<32x512xf32>
    %c0_8 = arith.constant 0 : index
    %c0_9 = arith.constant 0 : index
    %15 = vector.load %arg5[%c0_8, %c0_9] : memref<32x32xf32, #tpu.memory_space<vmem>>, vector<32x32xf32>
    %c0_10 = arith.constant 0 : index
    %c0_11 = arith.constant 0 : index
    %16 = vector.load %arg6[%c0_10, %c0_11] : memref<1x32xf32, #tpu.memory_space<vmem>>, vector<1x32xf32>
    %17 = vector.extract_strided_slice %12 {offsets = [0, 0], sizes = [32, 64], strides = [1, 1]} : vector<32x512xf32> to vector<32x64xf32>
    %18 = vector.extract_strided_slice %13 {offsets = [0, 0], sizes = [32, 64], strides = [1, 1]} : vector<32x512xf32> to vector<32x64xf32>
    %19 = vector.extract_strided_slice %14 {offsets = [0, 0], sizes = [32, 64], strides = [1, 1]} : vector<32x512xf32> to vector<32x64xf32>
    %20 = tpu.transpose %18, [1, 0] : vector<32x64xf32> -> vector<64x32xf32>
    %cst_12 = arith.constant dense<0.000000e+00> : vector<32x32xf32>
    %21 = tpu.matmul %17, %20, %cst_12 {dimension_numbers = #tpu.dot_dimension_numbers<[1], [0], [0], [1], [0, 0, 1, 1], [], []>} : vector<32x64xf32>, vector<64x32xf32>, vector<32x32xf32> -> vector<32x32xf32>
    %cst_13 = arith.constant 1.250000e-01 : f32
    %22 = vector.broadcast %cst_13 : f32 to vector<32x32xf32>
    %23 = arith.mulf %21, %22 : vector<32x32xf32>
    %24 = arith.addf %23, %15 : vector<32x32xf32>
    %cst_14 = arith.constant dense<0xFF800000> : vector<32xf32>
    %25 = vector.multi_reduction <maximumf>, %24, %cst_14 [1] : vector<32x32xf32> to vector<32xf32>
    %26 = vector.shape_cast %25 : vector<32xf32> to vector<32x1xf32>
    %27 = vector.broadcast %26 : vector<32x1xf32> to vector<32x32xf32>
    %28 = arith.subf %24, %27 : vector<32x32xf32>
    %29 = math.exp %28 : vector<32x32xf32>
    %cst_15 = arith.constant dense<0.000000e+00> : vector<32xf32>
    %30 = vector.multi_reduction <add>, %29, %cst_15 [1] : vector<32x32xf32> to vector<32xf32>
    %31 = vector.shape_cast %30 : vector<32xf32> to vector<32x1xf32>
    %32 = tpu.reciprocal %31 {approx = true} : vector<32x1xf32> -> vector<32x1xf32>
    %33 = vector.broadcast %32 : vector<32x1xf32> to vector<32x32xf32>
    %34 = arith.mulf %29, %33 : vector<32x32xf32>
    %cst_16 = arith.constant dense<0.000000e+00> : vector<1x32xf32>
    %35 = tpu.matmul %16, %34, %cst_16 {dimension_numbers = #tpu.dot_dimension_numbers<[1], [0], [0], [1], [0, 0, 1, 1], [], []>} : vector<1x32xf32>, vector<32x32xf32>, vector<1x32xf32> -> vector<1x32xf32>
    %cst_17 = arith.constant dense<0.000000e+00> : vector<1x64xf32>
    %36 = tpu.matmul %35, %19, %cst_17 {dimension_numbers = #tpu.dot_dimension_numbers<[1], [0], [0], [1], [0, 0, 1, 1], [], []>} : vector<1x32xf32>, vector<32x64xf32>, vector<1x64xf32> -> vector<1x64xf32>
    %37 = vector.extract_strided_slice %12 {offsets = [0, 64], sizes = [32, 64], strides = [1, 1]} : vector<32x512xf32> to vector<32x64xf32>
    %38 = vector.extract_strided_slice %13 {offsets = [0, 64], sizes = [32, 64], strides = [1, 1]} : vector<32x512xf32> to vector<32x64xf32>
    %39 = vector.extract_strided_slice %14 {offsets = [0, 64], sizes = [32, 64], strides = [1, 1]} : vector<32x512xf32> to vector<32x64xf32>
    %40 = tpu.transpose %38, [1, 0] : vector<32x64xf32> -> vector<64x32xf32>
    %cst_18 = arith.constant dense<0.000000e+00> : vector<32x32xf32>
    %41 = tpu.matmul %37, %40, %cst_18 {dimension_numbers = #tpu.dot_dimension_numbers<[1], [0], [0], [1], [0, 0, 1, 1], [], []>} : vector<32x64xf32>, vector<64x32xf32>, vector<32x32xf32> -> vector<32x32xf32>
    %cst_19 = arith.constant 1.250000e-01 : f32
    %42 = vector.broadcast %cst_19 : f32 to vector<32x32xf32>
    %43 = arith.mulf %41, %42 : vector<32x32xf32>
    %44 = arith.addf %43, %15 : vector<32x32xf32>
    %cst_20 = arith.constant dense<0xFF800000> : vector<32xf32>
    %45 = vector.multi_reduction <maximumf>, %44, %cst_20 [1] : vector<32x32xf32> to vector<32xf32>
    %46 = vector.shape_cast %45 : vector<32xf32> to vector<32x1xf32>
    %47 = vector.broadcast %46 : vector<32x1xf32> to vector<32x32xf32>
    %48 = arith.subf %44, %47 : vector<32x32xf32>
    %49 = math.exp %48 : vector<32x32xf32>
    %cst_21 = arith.constant dense<0.000000e+00> : vector<32xf32>
    %50 = vector.multi_reduction <add>, %49, %cst_21 [1] : vector<32x32xf32> to vector<32xf32>
    %51 = vector.shape_cast %50 : vector<32xf32> to vector<32x1xf32>
    %52 = tpu.reciprocal %51 {approx = true} : vector<32x1xf32> -> vector<32x1xf32>
    %53 = vector.broadcast %52 : vector<32x1xf32> to vector<32x32xf32>
    %54 = arith.mulf %49, %53 : vector<32x32xf32>
    %cst_22 = arith.constant dense<0.000000e+00> : vector<1x32xf32>
    %55 = tpu.matmul %16, %54, %cst_22 {dimension_numbers = #tpu.dot_dimension_numbers<[1], [0], [0], [1], [0, 0, 1, 1], [], []>} : vector<1x32xf32>, vector<32x32xf32>, vector<1x32xf32> -> vector<1x32xf32>
    %cst_23 = arith.constant dense<0.000000e+00> : vector<1x64xf32>
    %56 = tpu.matmul %55, %39, %cst_23 {dimension_numbers = #tpu.dot_dimension_numbers<[1], [0], [0], [1], [0, 0, 1, 1], [], []>} : vector<1x32xf32>, vector<32x64xf32>, vector<1x64xf32> -> vector<1x64xf32>
    %57 = vector.extract_strided_slice %12 {offsets = [0, 128], sizes = [32, 64], strides = [1, 1]} : vector<32x512xf32> to vector<32x64xf32>
    %58 = vector.extract_strided_slice %13 {offsets = [0, 128], sizes = [32, 64], strides = [1, 1]} : vector<32x512xf32> to vector<32x64xf32>
    %59 = vector.extract_strided_slice %14 {offsets = [0, 128], sizes = [32, 64], strides = [1, 1]} : vector<32x512xf32> to vector<32x64xf32>
    %60 = tpu.transpose %58, [1, 0] : vector<32x64xf32> -> vector<64x32xf32>
    %cst_24 = arith.constant dense<0.000000e+00> : vector<32x32xf32>
    %61 = tpu.matmul %57, %60, %cst_24 {dimension_numbers = #tpu.dot_dimension_numbers<[1], [0], [0], [1], [0, 0, 1, 1], [], []>} : vector<32x64xf32>, vector<64x32xf32>, vector<32x32xf32> -> vector<32x32xf32>
    %cst_25 = arith.constant 1.250000e-01 : f32
    %62 = vector.broadcast %cst_25 : f32 to vector<32x32xf32>
    %63 = arith.mulf %61, %62 : vector<32x32xf32>
    %64 = arith.addf %63, %15 : vector<32x32xf32>
    %cst_26 = arith.constant dense<0xFF800000> : vector<32xf32>
    %65 = vector.multi_reduction <maximumf>, %64, %cst_26 [1] : vector<32x32xf32> to vector<32xf32>
    %66 = vector.shape_cast %65 : vector<32xf32> to vector<32x1xf32>
    %67 = vector.broadcast %66 : vector<32x1xf32> to vector<32x32xf32>
    %68 = arith.subf %64, %67 : vector<32x32xf32>
    %69 = math.exp %68 : vector<32x32xf32>
    %cst_27 = arith.constant dense<0.000000e+00> : vector<32xf32>
    %70 = vector.multi_reduction <add>, %69, %cst_27 [1] : vector<32x32xf32> to vector<32xf32>
    %71 = vector.shape_cast %70 : vector<32xf32> to vector<32x1xf32>
    %72 = tpu.reciprocal %71 {approx = true} : vector<32x1xf32> -> vector<32x1xf32>
    %73 = vector.broadcast %72 : vector<32x1xf32> to vector<32x32xf32>
    %74 = arith.mulf %69, %73 : vector<32x32xf32>
    %cst_28 = arith.constant dense<0.000000e+00> : vector<1x32xf32>
    %75 = tpu.matmul %16, %74, %cst_28 {dimension_numbers = #tpu.dot_dimension_numbers<[1], [0], [0], [1], [0, 0, 1, 1], [], []>} : vector<1x32xf32>, vector<32x32xf32>, vector<1x32xf32> -> vector<1x32xf32>
    %cst_29 = arith.constant dense<0.000000e+00> : vector<1x64xf32>
    %76 = tpu.matmul %75, %59, %cst_29 {dimension_numbers = #tpu.dot_dimension_numbers<[1], [0], [0], [1], [0, 0, 1, 1], [], []>} : vector<1x32xf32>, vector<32x64xf32>, vector<1x64xf32> -> vector<1x64xf32>
    %77 = vector.extract_strided_slice %12 {offsets = [0, 192], sizes = [32, 64], strides = [1, 1]} : vector<32x512xf32> to vector<32x64xf32>
    %78 = vector.extract_strided_slice %13 {offsets = [0, 192], sizes = [32, 64], strides = [1, 1]} : vector<32x512xf32> to vector<32x64xf32>
    %79 = vector.extract_strided_slice %14 {offsets = [0, 192], sizes = [32, 64], strides = [1, 1]} : vector<32x512xf32> to vector<32x64xf32>
    %80 = tpu.transpose %78, [1, 0] : vector<32x64xf32> -> vector<64x32xf32>
    %cst_30 = arith.constant dense<0.000000e+00> : vector<32x32xf32>
    %81 = tpu.matmul %77, %80, %cst_30 {dimension_numbers = #tpu.dot_dimension_numbers<[1], [0], [0], [1], [0, 0, 1, 1], [], []>} : vector<32x64xf32>, vector<64x32xf32>, vector<32x32xf32> -> vector<32x32xf32>
    %cst_31 = arith.constant 1.250000e-01 : f32
    %82 = vector.broadcast %cst_31 : f32 to vector<32x32xf32>
    %83 = arith.mulf %81, %82 : vector<32x32xf32>
    %84 = arith.addf %83, %15 : vector<32x32xf32>
    %cst_32 = arith.constant dense<0xFF800000> : vector<32xf32>
    %85 = vector.multi_reduction <maximumf>, %84, %cst_32 [1] : vector<32x32xf32> to vector<32xf32>
    %86 = vector.shape_cast %85 : vector<32xf32> to vector<32x1xf32>
    %87 = vector.broadcast %86 : vector<32x1xf32> to vector<32x32xf32>
    %88 = arith.subf %84, %87 : vector<32x32xf32>
    %89 = math.exp %88 : vector<32x32xf32>
    %cst_33 = arith.constant dense<0.000000e+00> : vector<32xf32>
    %90 = vector.multi_reduction <add>, %89, %cst_33 [1] : vector<32x32xf32> to vector<32xf32>
    %91 = vector.shape_cast %90 : vector<32xf32> to vector<32x1xf32>
    %92 = tpu.reciprocal %91 {approx = true} : vector<32x1xf32> -> vector<32x1xf32>
    %93 = vector.broadcast %92 : vector<32x1xf32> to vector<32x32xf32>
    %94 = arith.mulf %89, %93 : vector<32x32xf32>
    %cst_34 = arith.constant dense<0.000000e+00> : vector<1x32xf32>
    %95 = tpu.matmul %16, %94, %cst_34 {dimension_numbers = #tpu.dot_dimension_numbers<[1], [0], [0], [1], [0, 0, 1, 1], [], []>} : vector<1x32xf32>, vector<32x32xf32>, vector<1x32xf32> -> vector<1x32xf32>
    %cst_35 = arith.constant dense<0.000000e+00> : vector<1x64xf32>
    %96 = tpu.matmul %95, %79, %cst_35 {dimension_numbers = #tpu.dot_dimension_numbers<[1], [0], [0], [1], [0, 0, 1, 1], [], []>} : vector<1x32xf32>, vector<32x64xf32>, vector<1x64xf32> -> vector<1x64xf32>
    %97 = vector.extract_strided_slice %12 {offsets = [0, 256], sizes = [32, 64], strides = [1, 1]} : vector<32x512xf32> to vector<32x64xf32>
    %98 = vector.extract_strided_slice %13 {offsets = [0, 256], sizes = [32, 64], strides = [1, 1]} : vector<32x512xf32> to vector<32x64xf32>
    %99 = vector.extract_strided_slice %14 {offsets = [0, 256], sizes = [32, 64], strides = [1, 1]} : vector<32x512xf32> to vector<32x64xf32>
    %100 = tpu.transpose %98, [1, 0] : vector<32x64xf32> -> vector<64x32xf32>
    %cst_36 = arith.constant dense<0.000000e+00> : vector<32x32xf32>
    %101 = tpu.matmul %97, %100, %cst_36 {dimension_numbers = #tpu.dot_dimension_numbers<[1], [0], [0], [1], [0, 0, 1, 1], [], []>} : vector<32x64xf32>, vector<64x32xf32>, vector<32x32xf32> -> vector<32x32xf32>
    %cst_37 = arith.constant 1.250000e-01 : f32
    %102 = vector.broadcast %cst_37 : f32 to vector<32x32xf32>
    %103 = arith.mulf %101, %102 : vector<32x32xf32>
    %104 = arith.addf %103, %15 : vector<32x32xf32>
    %cst_38 = arith.constant dense<0xFF800000> : vector<32xf32>
    %105 = vector.multi_reduction <maximumf>, %104, %cst_38 [1] : vector<32x32xf32> to vector<32xf32>
    %106 = vector.shape_cast %105 : vector<32xf32> to vector<32x1xf32>
    %107 = vector.broadcast %106 : vector<32x1xf32> to vector<32x32xf32>
    %108 = arith.subf %104, %107 : vector<32x32xf32>
    %109 = math.exp %108 : vector<32x32xf32>
    %cst_39 = arith.constant dense<0.000000e+00> : vector<32xf32>
    %110 = vector.multi_reduction <add>, %109, %cst_39 [1] : vector<32x32xf32> to vector<32xf32>
    %111 = vector.shape_cast %110 : vector<32xf32> to vector<32x1xf32>
    %112 = tpu.reciprocal %111 {approx = true} : vector<32x1xf32> -> vector<32x1xf32>
    %113 = vector.broadcast %112 : vector<32x1xf32> to vector<32x32xf32>
    %114 = arith.mulf %109, %113 : vector<32x32xf32>
    %cst_40 = arith.constant dense<0.000000e+00> : vector<1x32xf32>
    %115 = tpu.matmul %16, %114, %cst_40 {dimension_numbers = #tpu.dot_dimension_numbers<[1], [0], [0], [1], [0, 0, 1, 1], [], []>} : vector<1x32xf32>, vector<32x32xf32>, vector<1x32xf32> -> vector<1x32xf32>
    %cst_41 = arith.constant dense<0.000000e+00> : vector<1x64xf32>
    %116 = tpu.matmul %115, %99, %cst_41 {dimension_numbers = #tpu.dot_dimension_numbers<[1], [0], [0], [1], [0, 0, 1, 1], [], []>} : vector<1x32xf32>, vector<32x64xf32>, vector<1x64xf32> -> vector<1x64xf32>
    %117 = vector.extract_strided_slice %12 {offsets = [0, 320], sizes = [32, 64], strides = [1, 1]} : vector<32x512xf32> to vector<32x64xf32>
    %118 = vector.extract_strided_slice %13 {offsets = [0, 320], sizes = [32, 64], strides = [1, 1]} : vector<32x512xf32> to vector<32x64xf32>
    %119 = vector.extract_strided_slice %14 {offsets = [0, 320], sizes = [32, 64], strides = [1, 1]} : vector<32x512xf32> to vector<32x64xf32>
    %120 = tpu.transpose %118, [1, 0] : vector<32x64xf32> -> vector<64x32xf32>
    %cst_42 = arith.constant dense<0.000000e+00> : vector<32x32xf32>
    %121 = tpu.matmul %117, %120, %cst_42 {dimension_numbers = #tpu.dot_dimension_numbers<[1], [0], [0], [1], [0, 0, 1, 1], [], []>} : vector<32x64xf32>, vector<64x32xf32>, vector<32x32xf32> -> vector<32x32xf32>
    %cst_43 = arith.constant 1.250000e-01 : f32
    %122 = vector.broadcast %cst_43 : f32 to vector<32x32xf32>
    %123 = arith.mulf %121, %122 : vector<32x32xf32>
    %124 = arith.addf %123, %15 : vector<32x32xf32>
    %cst_44 = arith.constant dense<0xFF800000> : vector<32xf32>
    %125 = vector.multi_reduction <maximumf>, %124, %cst_44 [1] : vector<32x32xf32> to vector<32xf32>
    %126 = vector.shape_cast %125 : vector<32xf32> to vector<32x1xf32>
    %127 = vector.broadcast %126 : vector<32x1xf32> to vector<32x32xf32>
    %128 = arith.subf %124, %127 : vector<32x32xf32>
    %129 = math.exp %128 : vector<32x32xf32>
    %cst_45 = arith.constant dense<0.000000e+00> : vector<32xf32>
    %130 = vector.multi_reduction <add>, %129, %cst_45 [1] : vector<32x32xf32> to vector<32xf32>
    %131 = vector.shape_cast %130 : vector<32xf32> to vector<32x1xf32>
    %132 = tpu.reciprocal %131 {approx = true} : vector<32x1xf32> -> vector<32x1xf32>
    %133 = vector.broadcast %132 : vector<32x1xf32> to vector<32x32xf32>
    %134 = arith.mulf %129, %133 : vector<32x32xf32>
    %cst_46 = arith.constant dense<0.000000e+00> : vector<1x32xf32>
    %135 = tpu.matmul %16, %134, %cst_46 {dimension_numbers = #tpu.dot_dimension_numbers<[1], [0], [0], [1], [0, 0, 1, 1], [], []>} : vector<1x32xf32>, vector<32x32xf32>, vector<1x32xf32> -> vector<1x32xf32>
    %cst_47 = arith.constant dense<0.000000e+00> : vector<1x64xf32>
    %136 = tpu.matmul %135, %119, %cst_47 {dimension_numbers = #tpu.dot_dimension_numbers<[1], [0], [0], [1], [0, 0, 1, 1], [], []>} : vector<1x32xf32>, vector<32x64xf32>, vector<1x64xf32> -> vector<1x64xf32>
    %137 = vector.extract_strided_slice %12 {offsets = [0, 384], sizes = [32, 64], strides = [1, 1]} : vector<32x512xf32> to vector<32x64xf32>
    %138 = vector.extract_strided_slice %13 {offsets = [0, 384], sizes = [32, 64], strides = [1, 1]} : vector<32x512xf32> to vector<32x64xf32>
    %139 = vector.extract_strided_slice %14 {offsets = [0, 384], sizes = [32, 64], strides = [1, 1]} : vector<32x512xf32> to vector<32x64xf32>
    %140 = tpu.transpose %138, [1, 0] : vector<32x64xf32> -> vector<64x32xf32>
    %cst_48 = arith.constant dense<0.000000e+00> : vector<32x32xf32>
    %141 = tpu.matmul %137, %140, %cst_48 {dimension_numbers = #tpu.dot_dimension_numbers<[1], [0], [0], [1], [0, 0, 1, 1], [], []>} : vector<32x64xf32>, vector<64x32xf32>, vector<32x32xf32> -> vector<32x32xf32>
    %cst_49 = arith.constant 1.250000e-01 : f32
    %142 = vector.broadcast %cst_49 : f32 to vector<32x32xf32>
    %143 = arith.mulf %141, %142 : vector<32x32xf32>
    %144 = arith.addf %143, %15 : vector<32x32xf32>
    %cst_50 = arith.constant dense<0xFF800000> : vector<32xf32>
    %145 = vector.multi_reduction <maximumf>, %144, %cst_50 [1] : vector<32x32xf32> to vector<32xf32>
    %146 = vector.shape_cast %145 : vector<32xf32> to vector<32x1xf32>
    %147 = vector.broadcast %146 : vector<32x1xf32> to vector<32x32xf32>
    %148 = arith.subf %144, %147 : vector<32x32xf32>
    %149 = math.exp %148 : vector<32x32xf32>
    %cst_51 = arith.constant dense<0.000000e+00> : vector<32xf32>
    %150 = vector.multi_reduction <add>, %149, %cst_51 [1] : vector<32x32xf32> to vector<32xf32>
    %151 = vector.shape_cast %150 : vector<32xf32> to vector<32x1xf32>
    %152 = tpu.reciprocal %151 {approx = true} : vector<32x1xf32> -> vector<32x1xf32>
    %153 = vector.broadcast %152 : vector<32x1xf32> to vector<32x32xf32>
    %154 = arith.mulf %149, %153 : vector<32x32xf32>
    %cst_52 = arith.constant dense<0.000000e+00> : vector<1x32xf32>
    %155 = tpu.matmul %16, %154, %cst_52 {dimension_numbers = #tpu.dot_dimension_numbers<[1], [0], [0], [1], [0, 0, 1, 1], [], []>} : vector<1x32xf32>, vector<32x32xf32>, vector<1x32xf32> -> vector<1x32xf32>
    %cst_53 = arith.constant dense<0.000000e+00> : vector<1x64xf32>
    %156 = tpu.matmul %155, %139, %cst_53 {dimension_numbers = #tpu.dot_dimension_numbers<[1], [0], [0], [1], [0, 0, 1, 1], [], []>} : vector<1x32xf32>, vector<32x64xf32>, vector<1x64xf32> -> vector<1x64xf32>
    %157 = vector.extract_strided_slice %12 {offsets = [0, 448], sizes = [32, 64], strides = [1, 1]} : vector<32x512xf32> to vector<32x64xf32>
    %158 = vector.extract_strided_slice %13 {offsets = [0, 448], sizes = [32, 64], strides = [1, 1]} : vector<32x512xf32> to vector<32x64xf32>
    %159 = vector.extract_strided_slice %14 {offsets = [0, 448], sizes = [32, 64], strides = [1, 1]} : vector<32x512xf32> to vector<32x64xf32>
    %160 = tpu.transpose %158, [1, 0] : vector<32x64xf32> -> vector<64x32xf32>
    %cst_54 = arith.constant dense<0.000000e+00> : vector<32x32xf32>
    %161 = tpu.matmul %157, %160, %cst_54 {dimension_numbers = #tpu.dot_dimension_numbers<[1], [0], [0], [1], [0, 0, 1, 1], [], []>} : vector<32x64xf32>, vector<64x32xf32>, vector<32x32xf32> -> vector<32x32xf32>
    %cst_55 = arith.constant 1.250000e-01 : f32
    %162 = vector.broadcast %cst_55 : f32 to vector<32x32xf32>
    %163 = arith.mulf %161, %162 : vector<32x32xf32>
    %164 = arith.addf %163, %15 : vector<32x32xf32>
    %cst_56 = arith.constant dense<0xFF800000> : vector<32xf32>
    %165 = vector.multi_reduction <maximumf>, %164, %cst_56 [1] : vector<32x32xf32> to vector<32xf32>
    %166 = vector.shape_cast %165 : vector<32xf32> to vector<32x1xf32>
    %167 = vector.broadcast %166 : vector<32x1xf32> to vector<32x32xf32>
    %168 = arith.subf %164, %167 : vector<32x32xf32>
    %169 = math.exp %168 : vector<32x32xf32>
    %cst_57 = arith.constant dense<0.000000e+00> : vector<32xf32>
    %170 = vector.multi_reduction <add>, %169, %cst_57 [1] : vector<32x32xf32> to vector<32xf32>
    %171 = vector.shape_cast %170 : vector<32xf32> to vector<32x1xf32>
    %172 = tpu.reciprocal %171 {approx = true} : vector<32x1xf32> -> vector<32x1xf32>
    %173 = vector.broadcast %172 : vector<32x1xf32> to vector<32x32xf32>
    %174 = arith.mulf %169, %173 : vector<32x32xf32>
    %cst_58 = arith.constant dense<0.000000e+00> : vector<1x32xf32>
    %175 = tpu.matmul %16, %174, %cst_58 {dimension_numbers = #tpu.dot_dimension_numbers<[1], [0], [0], [1], [0, 0, 1, 1], [], []>} : vector<1x32xf32>, vector<32x32xf32>, vector<1x32xf32> -> vector<1x32xf32>
    %cst_59 = arith.constant dense<0.000000e+00> : vector<1x64xf32>
    %176 = tpu.matmul %175, %159, %cst_59 {dimension_numbers = #tpu.dot_dimension_numbers<[1], [0], [0], [1], [0, 0, 1, 1], [], []>} : vector<1x32xf32>, vector<32x64xf32>, vector<1x64xf32> -> vector<1x64xf32>
    %177 = tpu.concatenate %36, %56, %76, %96, %116, %136, %156, %176 in 1 : vector<1x64xf32>, vector<1x64xf32>, vector<1x64xf32>, vector<1x64xf32>, vector<1x64xf32>, vector<1x64xf32>, vector<1x64xf32>, vector<1x64xf32> -> vector<1x512xf32>
    %c0_60 = arith.constant 0 : index
    %c0_61 = arith.constant 0 : index
    %178 = vector.load %arg7[%c0_60, %c0_61] : memref<1x1xf32, #tpu.memory_space<vmem>>, vector<1x1xf32>
    %179 = vector.broadcast %178 : vector<1x1xf32> to vector<1x512xf32>
    %180 = arith.addf %177, %179 : vector<1x512xf32>
    %c0_62 = arith.constant 0 : index
    %c0_63 = arith.constant 0 : index
    %c0_64 = arith.constant 0 : index
    %181 = vector.load %arg8[%c0_62, %c0_63, %c0_64] : memref<1x1x512xf32, #tpu.memory_space<vmem>>, vector<1x1x512xf32>
    %182 = vector.shape_cast %181 : vector<1x1x512xf32> to vector<1x512xf32>
    %183 = vector.shape_cast %180 : vector<1x512xf32> to vector<1x1x512xf32>
    tpu.vector_store %arg8[%c0_62, %c0_63, %c0_64], %183 {strides = array<i32>} : memref<1x1x512xf32, #tpu.memory_space<vmem>>, vector<1x1x512xf32>,
    return
  }
  func.func @transform_0(%arg0: i32) -> (i32, i32, i32) {
    %c0_i32 = arith.constant 0 : i32
    %c0_i32_0 = arith.constant 0 : i32
    %c0_i32_1 = arith.constant 0 : i32
    return %arg0, %c0_i32, %c0_i32_0 : i32, i32, i32
  }
  func.func @transform_1(%arg0: i32) -> (i32, i32) {
    %c0_i32 = arith.constant 0 : i32
    %c0_i32_0 = arith.constant 0 : i32
    %c0_i32_1 = arith.constant 0 : i32
    return %c0_i32, %c0_i32_0 : i32, i32
  }
  func.func @transform_2(%arg0: i32) -> (i32, i32) {
    %c0_i32 = arith.constant 0 : i32
    %c0_i32_0 = arith.constant 0 : i32
    %c0_i32_1 = arith.constant 0 : i32
    return %c0_i32, %c0_i32_0 : i32, i32
  }
  func.func @transform_3(%arg0: i32) -> (i32, i32) {
    %c0_i32 = arith.constant 0 : i32
    %c0_i32_0 = arith.constant 0 : i32
    %c0_i32_1 = arith.constant 0 : i32
    return %c0_i32, %c0_i32_0 : i32, i32
  }
  func.func @transform_4(%arg0: i32) -> (i32, i32) {
    %c0_i32 = arith.constant 0 : i32
    %c0_i32_0 = arith.constant 0 : i32
    %c0_i32_1 = arith.constant 0 : i32
    return %c0_i32, %c0_i32_0 : i32, i32
  }
  func.func @transform_5(%arg0: i32) -> (i32, i32) {
    %c0_i32 = arith.constant 0 : i32
    %c0_i32_0 = arith.constant 0 : i32
    %c0_i32_1 = arith.constant 0 : i32
    return %c0_i32, %c0_i32_0 : i32, i32
  }
  func.func @transform_6(%arg0: i32) -> (i32, i32) {
    %c0_i32 = arith.constant 0 : i32
    %c0_i32_0 = arith.constant 0 : i32
    %c0_i32_1 = arith.constant 0 : i32
    return %c0_i32, %c0_i32_0 : i32, i32
  }
  func.func @transform_7(%arg0: i32) -> (i32, i32, i32) {
    %c0_i32 = arith.constant 0 : i32
    %c0_i32_0 = arith.constant 0 : i32
    %c0_i32_1 = arith.constant 0 : i32
    return %arg0, %c0_i32, %c0_i32_0 : i32, i32, i32
  }
}

</mosaic_0001>

<llo_original>
// kernel: model_forward.1
$region0: #{model_forward.1}
  #allocation0 [shape = 'u32[]', space=smem, size = 0x4, offset = 0x4, fixed_abs, tag = 'smem constant byte address 0x4 - core index']
  #allocation1 [shape = 'u32[144,128]{1,0:T(1,128)}', space=vmem, size = 0x12000, scoped, tag = 'internal scratch']
  #allocation2 [shape = 'f32[1,1]{1,0:T(1,128)S(1)}', space=vmem, size = 0x200, scoped, tag = 'scoped memory for model_forward.1']
  %s0 = inlined_call_operand.vmem [shape: f32[1,1,512], index: 0, kind: input, shape index: {}]
  %s1 = inlined_call_operand.vmem [shape: f32[32,1], index: 1, kind: input, shape index: {}]
  %s2 = inlined_call_operand.vmem [shape: f32[32,1], index: 2, kind: input, shape index: {}]
  %s3 = inlined_call_operand.vmem [shape: bf16[96,32], index: 3, kind: input, shape index: {}]
  %s4 = inlined_call_operand.vmem [shape: f32[32,32], index: 4, kind: input, shape index: {}]
  %s5 = inlined_call_operand.vmem [shape: f32[1,32], index: 5, kind: input, shape index: {}]
  %s6 = inlined_call_operand.<no memory space> [shape: f32[1,1], index: 6, kind: input, shape index: {}]
  %s7 = inlined_call_operand.vmem [shape: f32[1,1,512], index: 7, kind: output, shape index: {}]
  %s8 = sld [smem:[#allocation0]]
  $region38: #{model_forward.1} parent=0
    _
  %s10 = ssub.s32 1, %s8
  %s11 = scalar_select 0, %s10, %s8
  %v12 = vstv %s6
  %13 = vst [vmem:[#allocation2] sm:$0x1] %v12
  // Predicated region
  $region2: #{model_forward.1} parent=0 // pred_check
    _
  $region3: #{model_forward.1} parent=0 // pred_check_branch
    %15 = sbr.rel (0) target = $region5
  $region4: #{model_forward.1} parent=0 // pred_region
    _
  $region5: #{model_forward.1} parent=0 // pred_fallthru
    _
  // Predicated region
  $region6: #{model_forward.1} parent=0 // pred_check
    _
  $region7: #{model_forward.1} parent=0 // pred_check_branch
    %17 = sbr.rel (0) target = $region9
  $region8: #{model_forward.1} parent=0 // pred_region
    _
  $region9: #{model_forward.1} parent=0 // pred_fallthru
    _
  // Predicated region
  $region10: #{model_forward.1} parent=0 // pred_check
    _
  $region11: #{model_forward.1} parent=0 // pred_check_branch
    %19 = sbr.rel (0) target = $region13
  $region12: #{model_forward.1} parent=0 // pred_region
    _
  $region13: #{model_forward.1} parent=0 // pred_fallthru
    _
  // Predicated region
  $region14: #{model_forward.1} parent=0 // pred_check
    _
  $region15: #{model_forward.1} parent=0 // pred_check_branch
    %21 = sbr.rel (0) target = $region17
  $region16: #{model_forward.1} parent=0 // pred_region
    _
  $region17: #{model_forward.1} parent=0 // pred_fallthru
    _
  // Predicated region
  $region18: #{model_forward.1} parent=0 // pred_check
    _
  $region19: #{model_forward.1} parent=0 // pred_check_branch
    %23 = sbr.rel (0) target = $region21
  $region20: #{model_forward.1} parent=0 // pred_region
    _
  $region21: #{model_forward.1} parent=0 // pred_fallthru
    _
  // Predicated region
  $region22: #{model_forward.1} parent=0 // pred_check
    _
  $region23: #{model_forward.1} parent=0 // pred_check_branch
    %25 = sbr.rel (0) target = $region25
  $region24: #{model_forward.1} parent=0 // pred_region
    _
  $region25: #{model_forward.1} parent=0 // pred_fallthru
    _
  // Predicated region
  $region26: #{model_forward.1} parent=0 // pred_check
    _
  $region27: #{model_forward.1} parent=0 // pred_check_branch
    %27 = sbr.rel (0) target = $region29
  $region28: #{model_forward.1} parent=0 // pred_region
    _
  $region29: #{model_forward.1} parent=0 // pred_fallthru
    _
  %v29 = vld [vmem:[%s0] sm:$0xf]
  %v30 = vld [vmem:[%s1] sm:$0xff]
  %v31 = vld [vmem:[%s1 + $0x8] sm:$0xff]
  %v32 = vld [vmem:[%s1 + $0x10] sm:$0xff]
  %v33 = vld [vmem:[%s1 + $0x18] sm:$0xff]
  %35 = vset.pattern.permute.xlu0 0
  %36 = vperm.xlu0 %35, %v30
  %v37 = vpop.permute.xlu0 %36
  %40 = vset.pattern.permute.xlu0 0
  %41 = vperm.xlu0 %40, %v31
  %v42 = vpop.permute.xlu0 %41
  %45 = vset.pattern.permute.xlu0 0
  %46 = vperm.xlu0 %45, %v32
  %v47 = vpop.permute.xlu0 %46
  %50 = vset.pattern.permute.xlu0 0
  %51 = vperm.xlu0 %50, %v33
  %v52 = vpop.permute.xlu0 %51
  %v55 = vlaneseq
  %v56 = vshrl.u32 %v55, 7
  %v57 = vsub.s32 0, %v56
  %v58 = vrot.slane %v29, %v57
  %v59 = vlaneseq
  %v60 = vshrl.u32 %v59, 7
  %v61 = vsub.s32 1, %v60
  %v62 = vrot.slane %v29, %v61
  %v63 = vlaneseq
  %v64 = vshrl.u32 %v63, 7
  %v65 = vsub.s32 2, %v64
  %v66 = vrot.slane %v29, %v65
  %v67 = vlaneseq
  %v68 = vshrl.u32 %v67, 7
  %v69 = vsub.s32 3, %v68
  %v70 = vrot.slane %v29, %v69
  %v75 = vmul.f32 %v37, %v58
  %v76 = vmul.f32 %v37, %v62
  %v77 = vmul.f32 %v37, %v66
  %v78 = vmul.f32 %v37, %v70
  %v79 = vmul.f32 %v42, %v58
  %v80 = vmul.f32 %v42, %v62
  %v81 = vmul.f32 %v42, %v66
  %v82 = vmul.f32 %v42, %v70
  %v83 = vmul.f32 %v47, %v58
  %v84 = vmul.f32 %v47, %v62
  %v85 = vmul.f32 %v47, %v66
  %v86 = vmul.f32 %v47, %v70
  %v87 = vmul.f32 %v52, %v58
  %v88 = vmul.f32 %v52, %v62
  %v89 = vmul.f32 %v52, %v66
  %v90 = vmul.f32 %v52, %v70
  %v91 = vld [vmem:[%s2] sm:$0xff]
  %v92 = vld [vmem:[%s2 + $0x8] sm:$0xff]
  %v93 = vld [vmem:[%s2 + $0x10] sm:$0xff]
  %v94 = vld [vmem:[%s2 + $0x18] sm:$0xff]
  %96 = vset.pattern.permute.xlu0 0
  %97 = vperm.xlu0 %96, %v91
  %v98 = vpop.permute.xlu0 %97
  %101 = vset.pattern.permute.xlu0 0
  %102 = vperm.xlu0 %101, %v92
  %v103 = vpop.permute.xlu0 %102
  %106 = vset.pattern.permute.xlu0 0
  %107 = vperm.xlu0 %106, %v93
  %v108 = vpop.permute.xlu0 %107
  %111 = vset.pattern.permute.xlu0 0
  %112 = vperm.xlu0 %111, %v94
  %v113 = vpop.permute.xlu0 %112
  %v115 = vadd.f32 %v75, %v98
  %v116 = vadd.f32 %v76, %v98
  %v117 = vadd.f32 %v77, %v98
  %v118 = vadd.f32 %v78, %v98
  %v119 = vadd.f32 %v79, %v103
  %v120 = vadd.f32 %v80, %v103
  %v121 = vadd.f32 %v81, %v103
  %v122 = vadd.f32 %v82, %v103
  %v123 = vadd.f32 %v83, %v108
  %v124 = vadd.f32 %v84, %v108
  %v125 = vadd.f32 %v85, %v108
  %v126 = vadd.f32 %v86, %v108
  %v127 = vadd.f32 %v87, %v113
  %v128 = vadd.f32 %v88, %v113
  %v129 = vadd.f32 %v89, %v113
  %v130 = vadd.f32 %v90, %v113
  %v131 = vld [vmem:[%s3] sm:$0xf]
  %v132 = vld [vmem:[%s3 + $0x4] sm:$0xf]
  %v133 = vld [vmem:[%s3 + $0x8] sm:$0xf]
  %v134 = vld [vmem:[%s3 + $0xc] sm:$0xf]
  %v135 = vld [vmem:[%s3 + $0x10] sm:$0xf]
  %v136 = vld [vmem:[%s3 + $0x14] sm:$0xf]
  %v137 = vld [vmem:[%s3 + $0x18] sm:$0xf]
  %v138 = vld [vmem:[%s3 + $0x1c] sm:$0xf]
  %v139 = vld [vmem:[%s3 + $0x20] sm:$0xf]
  %v140 = vld [vmem:[%s3 + $0x24] sm:$0xf]
  %v141 = vld [vmem:[%s3 + $0x28] sm:$0xf]
  %v142 = vld [vmem:[%s3 + $0x2c] sm:$0xf]
  %v143 = vpack.c.bf16 %v119, %v115
  %v144 = vpack.c.bf16 %v120, %v116
  %v145 = vpack.c.bf16 %v121, %v117
  %v146 = vpack.c.bf16 %v122, %v118
  %v147 = vpack.c.bf16 %v127, %v123
  %v148 = vpack.c.bf16 %v128, %v124
  %v149 = vpack.c.bf16 %v129, %v125
  %v150 = vpack.c.bf16 %v130, %v126
  %v163 = vunpack.c.l.b16 %v131
  %v164 = vunpack.c.l.b16 %v132
  %v165 = vunpack.c.l.b16 %v133
  %v166 = vunpack.c.l.b16 %v134
  %v167 = vunpack.c.l.b16 %v135
  %v168 = vunpack.c.l.b16 %v136
  %v169 = vunpack.c.l.b16 %v137
  %v170 = vunpack.c.l.b16 %v138
  %v171 = vunpack.c.l.b16 %v139
  %v172 = vunpack.c.l.b16 %v140
  %v173 = vunpack.c.l.b16 %v141
  %v174 = vunpack.c.l.b16 %v142
  %v175 = vpack.c.b16 %v164, %v163
  %v176 = vpack.c.b16 %v166, %v165
  %v177 = vpack.c.b16 %v168, %v167
  %v178 = vpack.c.b16 %v170, %v169
  %v179 = vpack.c.b16 %v172, %v171
  %v180 = vpack.c.b16 %v174, %v173
  %vm181 = vcmask 261120
  %v183 = vsel %vm181, %v175, 0
  %v186 = vsel %vm181, %v176, 0
  %v189 = vsel %vm181, %v177, 0
  %v192 = vsel %vm181, %v178, 0
  %v195 = vsel %vm181, %v179, 0
  %v198 = vsel %vm181, %v180, 0
  %200 = vmatprep.subr.bf16.mxu0 %v144
  %201 = vmatpush1.bf16.msra.mxu0 %v143
  %202 = vmatprep.subr.bf16.mxu0 %v148
  %203 = vmatpush1.bf16.msra.mxu0 %v147
  %204 = vmatprep.subr.bf16.mxu0 0
  %205 = vmatpush1.bf16.msra.mxu0 0
  %206 = vmatprep.subr.bf16.mxu0 0
  %207 = vmatpush1.bf16.msra.mxu0 0
  %208 = vmatprep.subr.bf16.mxu0 0
  %209 = vmatpush1.bf16.msra.mxu0 0
  %210 = vmatprep.subr.bf16.mxu0 0
  %211 = vmatpush1.bf16.msra.mxu0 0
  %212 = vmatprep.subr.bf16.mxu0 0
  %213 = vmatpush1.bf16.msra.mxu0 0
  %214 = vmatprep.subr.bf16.mxu0 0
  %215 = vmatpush1.bf16.msra.mxu0 0
  %216 = vmatprep.subr.bf16.mxu0 0
  %217 = vmatpush1.bf16.msra.mxu0 0
  %218 = vmatprep.subr.bf16.mxu0 0
  %219 = vmatpush1.bf16.msra.mxu0 0
  %220 = vmatprep.subr.bf16.mxu0 0
  %221 = vmatpush1.bf16.msra.mxu0 0
  %222 = vmatprep.subr.bf16.mxu0 0
  %223 = vmatpush1.bf16.msra.mxu0 0
  %224 = vmatprep.subr.bf16.mxu0 0
  %225 = vmatpush1.bf16.msra.mxu0 0
  %226 = vmatprep.subr.bf16.mxu0 0
  %227 = vmatpush1.bf16.msra.mxu0 0
  %228 = vmatprep.subr.bf16.mxu0 0
  %229 = vmatpush1.bf16.msra.mxu0 0
  %230 = vmatprep.subr.bf16.mxu0 0
  %231 = vmatpush1.bf16.msra.mxu0 0
  %232 = vmatprep.mubr.bf16.mxu0 0
  %233 = vmatmul.mubr.bf16.gmra.mrb[0].mxu0 %v183
  %v234 = vpop.f32.mrb[0].mxu0
  %v235 = vadd.f32 0.0, %v234
  %v236 = vpop.f32.mrb[0].mxu0
  %v237 = vadd.f32 0.0, %v236
  %v238 = vpop.f32.mrb[0].mxu0
  %v239 = vadd.f32 0.0, %v238
  %v240 = vpop.f32.mrb[0].mxu0
  %v241 = vadd.f32 0.0, %v240
  %242 = vmatprep.mubr.bf16.mxu0 0
  %243 = vmatmul.mubr.bf16.gmra.mrb[0].mxu0 %v186
  %v244 = vpop.f32.mrb[0].mxu0
  %v245 = vadd.f32 0.0, %v244
  %v246 = vpop.f32.mrb[0].mxu0
  %v247 = vadd.f32 0.0, %v246
  %v248 = vpop.f32.mrb[0].mxu0
  %v249 = vadd.f32 0.0, %v248
  %v250 = vpop.f32.mrb[0].mxu0
  %v251 = vadd.f32 0.0, %v250
  %252 = vmatprep.mubr.bf16.mxu0 0
  %253 = vmatmul.mubr.bf16.gmra.mrb[0].mxu0 %v189
  %v254 = vpop.f32.mrb[0].mxu0
  %v255 = vadd.f32 0.0, %v254
  %v256 = vpop.f32.mrb[0].mxu0
  %v257 = vadd.f32 0.0, %v256
  %v258 = vpop.f32.mrb[0].mxu0
  %v259 = vadd.f32 0.0, %v258
  %v260 = vpop.f32.mrb[0].mxu0
  %v261 = vadd.f32 0.0, %v260
  %262 = vmatprep.mubr.bf16.mxu0 0
  %263 = vmatmul.mubr.bf16.gmra.mrb[0].mxu0 %v192
  %v264 = vpop.f32.mrb[0].mxu0
  %v265 = vadd.f32 0.0, %v264
  %v266 = vpop.f32.mrb[0].mxu0
  %v267 = vadd.f32 0.0, %v266
  %v268 = vpop.f32.mrb[0].mxu0
  %v269 = vadd.f32 0.0, %v268
  %v270 = vpop.f32.mrb[0].mxu0
  %v271 = vadd.f32 0.0, %v270
  %272 = vmatprep.mubr.bf16.mxu0 0
  %273 = vmatmul.mubr.bf16.gmra.mrb[0].mxu0 %v195
  %v274 = vpop.f32.mrb[0].mxu0
  %v275 = vadd.f32 0.0, %v274
  %v276 = vpop.f32.mrb[0].mxu0
  %v277 = vadd.f32 0.0, %v276
  %v278 = vpop.f32.mrb[0].mxu0
  %v279 = vadd.f32 0.0, %v278
  %v280 = vpop.f32.mrb[0].mxu0
  %v281 = vadd.f32 0.0, %v280
  %282 = vmatprep.mubr.bf16.mxu0 0
  %283 = vmatmul.mubr.bf16.gmra.mrb[0].mxu0 %v198
  %v284 = vpop.f32.mrb[0].mxu0
  %v285 = vadd.f32 0.0, %v284
  %v286 = vpop.f32.mrb[0].mxu0
  %v287 = vadd.f32 0.0, %v286
  %v288 = vpop.f32.mrb[0].mxu0
  %v289 = vadd.f32 0.0, %v288
  %v290 = vpop.f32.mrb[0].mxu0
  %v291 = vadd.f32 0.0, %v290
  %292 = vdwg.mxu0
  %293 = vmatprep.subr.bf16.mxu0 %v146
  %294 = vmatpush1.bf16.msra.mxu0 %v145
  %295 = vmatprep.subr.bf16.mxu0 %v150
  %296 = vmatpush1.bf16.msra.mxu0 %v149
  %297 = vmatprep.subr.bf16.mxu0 0
  %298 = vmatpush1.bf16.msra.mxu0 0
  %299 = vmatprep.subr.bf16.mxu0 0
  %300 = vmatpush1.bf16.msra.mxu0 0
  %301 = vmatprep.subr.bf16.mxu0 0
  %302 = vmatpush1.bf16.msra.mxu0 0
  %303 = vmatprep.subr.bf16.mxu0 0
  %304 = vmatpush1.bf16.msra.mxu0 0
  %305 = vmatprep.subr.bf16.mxu0 0
  %306 = vmatpush1.bf16.msra.mxu0 0
  %307 = vmatprep.subr.bf16.mxu0 0
  %308 = vmatpush1.bf16.msra.mxu0 0
  %309 = vmatprep.subr.bf16.mxu0 0
  %310 = vmatpush1.bf16.msra.mxu0 0
  %311 = vmatprep.subr.bf16.mxu0 0
  %312 = vmatpush1.bf16.msra.mxu0 0
  %313 = vmatprep.subr.bf16.mxu0 0
  %314 = vmatpush1.bf16.msra.mxu0 0
  %315 = vmatprep.subr.bf16.mxu0 0
  %316 = vmatpush1.bf16.msra.mxu0 0
  %317 = vmatprep.subr.bf16.mxu0 0
  %318 = vmatpush1.bf16.msra.mxu0 0
  %319 = vmatprep.subr.bf16.mxu0 0
  %320 = vmatpush1.bf16.msra.mxu0 0
  %321 = vmatprep.subr.bf16.mxu0 0
  %322 = vmatpush1.bf16.msra.mxu0 0
  %323 = vmatprep.subr.bf16.mxu0 0
  %324 = vmatpush1.bf16.msra.mxu0 0
  %325 = vmatprep.mubr.bf16.mxu0 0
  %326 = vmatmul.mubr.bf16.gmra.mrb[0].mxu0 %v183
  %v327 = vpop.f32.mrb[0].mxu0
  %v328 = vadd.f32 0.0, %v327
  %v329 = vpop.f32.mrb[0].mxu0
  %v330 = vadd.f32 0.0, %v329
  %v331 = vpop.f32.mrb[0].mxu0
  %v332 = vadd.f32 0.0, %v331
  %v333 = vpop.f32.mrb[0].mxu0
  %v334 = vadd.f32 0.0, %v333
  %335 = vmatprep.mubr.bf16.mxu0 0
  %336 = vmatmul.mubr.bf16.gmra.mrb[0].mxu0 %v186
  %v337 = vpop.f32.mrb[0].mxu0
  %v338 = vadd.f32 0.0, %v337
  %v339 = vpop.f32.mrb[0].mxu0
  %v340 = vadd.f32 0.0, %v339
  %v341 = vpop.f32.mrb[0].mxu0
  %v342 = vadd.f32 0.0, %v341
  %v343 = vpop.f32.mrb[0].mxu0
  %v344 = vadd.f32 0.0, %v343
  %345 = vmatprep.mubr.bf16.mxu0 0
  %346 = vmatmul.mubr.bf16.gmra.mrb[0].mxu0 %v189
  %v347 = vpop.f32.mrb[0].mxu0
  %v348 = vadd.f32 0.0, %v347
  %v349 = vpop.f32.mrb[0].mxu0
  %v350 = vadd.f32 0.0, %v349
  %v351 = vpop.f32.mrb[0].mxu0
  %v352 = vadd.f32 0.0, %v351
  %v353 = vpop.f32.mrb[0].mxu0
  %v354 = vadd.f32 0.0, %v353
  %355 = vmatprep.mubr.bf16.mxu0 0
  %356 = vmatmul.mubr.bf16.gmra.mrb[0].mxu0 %v192
  %v357 = vpop.f32.mrb[0].mxu0
  %v358 = vadd.f32 0.0, %v357
  %v359 = vpop.f32.mrb[0].mxu0
  %v360 = vadd.f32 0.0, %v359
  %v361 = vpop.f32.mrb[0].mxu0
  %v362 = vadd.f32 0.0, %v361
  %v363 = vpop.f32.mrb[0].mxu0
  %v364 = vadd.f32 0.0, %v363
  %365 = vmatprep.mubr.bf16.mxu0 0
  %366 = vmatmul.mubr.bf16.gmra.mrb[0].mxu0 %v195
  %v367 = vpop.f32.mrb[0].mxu0
  %v368 = vadd.f32 0.0, %v367
  %v369 = vpop.f32.mrb[0].mxu0
  %v370 = vadd.f32 0.0, %v369
  %v371 = vpop.f32.mrb[0].mxu0
  %v372 = vadd.f32 0.0, %v371
  %v373 = vpop.f32.mrb[0].mxu0
  %v374 = vadd.f32 0.0, %v373
  %375 = vmatprep.mubr.bf16.mxu0 0
  %376 = vmatmul.mubr.bf16.gmra.mrb[0].mxu0 %v198
  %v377 = vpop.f32.mrb[0].mxu0
  %v378 = vadd.f32 0.0, %v377
  %v379 = vpop.f32.mrb[0].mxu0
  %v380 = vadd.f32 0.0, %v379
  %v381 = vpop.f32.mrb[0].mxu0
  %v382 = vadd.f32 0.0, %v381
  %v383 = vpop.f32.mrb[0].mxu0
  %v384 = vadd.f32 0.0, %v383
  %385 = vdwg.mxu0
  %v386 = vld [vmem:[%s4] sm:$0xff]
  %v387 = vld [vmem:[%s4 + $0x8] sm:$0xff]
  %v388 = vld [vmem:[%s4 + $0x10] sm:$0xff]
  %v389 = vld [vmem:[%s4 + $0x18] sm:$0xff]
  %v390 = vld [vmem:[%s5] sm:$0x1]
  %vm391 = vcmask 523264
  %v393 = vsel %vm391, %v235, 0
  %v396 = vsel %vm391, %v239, 0
  %v399 = vsel %vm391, %v245, 0
  %v402 = vsel %vm391, %v249, 0
  %v405 = vsel %vm391, %v255, 0
  %v408 = vsel %vm391, %v259, 0
  %v411 = vsel %vm391, %v265, 0
  %v414 = vsel %vm391, %v269, 0
  %416 = vmatprep.subr.mxu0 0.0
  %417 = vmatpush1.xpose.msra.mxu0 %v405
  %418 = vmatprep.subr.mxu0 0.0
  %419 = vmatpush1.xpose.msra.mxu0 %v408
  %420 = vmatprep.subr.mxu0 0.0
  %421 = vmatpush1.xpose.msra.mxu0 %v411
  %422 = vmatprep.subr.mxu0 0.0
  %423 = vmatpush1.xpose.msra.mxu0 %v414
  %424 = vmatprep.subr.mxu0 0.0
  %425 = vmatpush1.xpose.msra.mxu0 0.0
  %426 = vmatprep.subr.mxu0 0.0
  %427 = vmatpush1.xpose.msra.mxu0 0.0
  %428 = vmatprep.subr.mxu0 0.0
  %429 = vmatpush1.xpose.msra.mxu0 0.0
  %430 = vmatprep.subr.mxu0 0.0
  %431 = vmatpush1.xpose.msra.mxu0 0.0
  %432 = vmatprep.subr.mxu0 0.0
  %433 = vmatpush1.xpose.msra.mxu0 0.0
  %434 = vmatprep.subr.mxu0 0.0
  %435 = vmatpush1.xpose.msra.mxu0 0.0
  %436 = vmatprep.subr.mxu0 0.0
  %437 = vmatpush1.xpose.msra.mxu0 0.0
  %438 = vmatprep.subr.mxu0 0.0
  %439 = vmatpush1.xpose.msra.mxu0 0.0
  %440 = vmatprep.subr.mxu0 0.0
  %441 = vmatpush1.xpose.msra.mxu0 0.0
  %442 = vmatprep.subr.mxu0 0.0
  %443 = vmatpush1.xpose.msra.mxu0 0.0
  %444 = vmatprep.subr.mxu0 0.0
  %445 = vmatpush1.xpose.msra.mxu0 0.0
  %446 = vmatprep.subr.mxu0 0.0
  %447 = vmatpush1.xpose.msra.mxu0 0.0
  %448 = vmatprep.subr.mxu0 0.0
  %449 = vmatpush1.xpose.msra.mxu0 0.0
  %450 = vmatprep.subr.mxu0 0.0
  %451 = vmatpush1.xpose.msra.mxu0 0.0
  %452 = vmatprep.subr.mxu0 0.0
  %453 = vmatpush1.xpose.msra.mxu0 0.0
  %454 = vmatprep.subr.mxu0 0.0
  %455 = vmatpush1.xpose.msra.mxu0 0.0
  %456 = vmatprep.subr.mxu0 0.0
  %457 = vmatpush1.xpose.msra.mxu0 0.0
  %458 = vmatprep.subr.mxu0 0.0
  %459 = vmatpush1.xpose.msra.mxu0 0.0
  %460 = vmatprep.subr.mxu0 0.0
  %461 = vmatpush1.xpose.msra.mxu0 0.0
  %462 = vmatprep.subr.mxu0 0.0
  %463 = vmatpush1.xpose.msra.mxu0 0.0
  %464 = vmatprep.subr.mxu0 0.0
  %465 = vmatpush1.xpose.msra.mxu0 0.0
  %466 = vmatprep.subr.mxu0 0.0
  %467 = vmatpush1.xpose.msra.mxu0 0.0
  %468 = vmatprep.subr.mxu0 0.0
  %469 = vmatpush1.xpose.msra.mxu0 0.0
  %470 = vmatprep.subr.mxu0 0.0
  %471 = vmatpush1.xpose.msra.mxu0 0.0
  %472 = vmatprep.subr.mxu0 0.0
  %473 = vmatpush1.xpose.msra.mxu0 0.0
  %474 = vmatprep.subr.mxu0 0.0
  %475 = vmatpush1.xpose.msra.mxu0 0.0
  %476 = vmatprep.subr.mxu0 0.0
  %477 = vmatpush1.xpose.msra.mxu0 0.0
  %478 = vmatprep.subr.mxu0 0.0
  %479 = vmatpush1.xpose.msra.mxu0 0.0
  %480 = vmatprep.mubr.f32.mxu0 0.0
  %481 = vmatmul.mubr.f32.gmra.mrb[0].mxu0 %v393
  %v482 = vpop.f32.mrb[0].mxu0
  %v483 = vadd.f32 0.0, %v482
  %v484 = vpop.f32.mrb[0].mxu0
  %485 = vmatprep.mubr.f32.mxu0 0.0
  %486 = vmatmul.mubr.f32.gmra.mrb[0].mxu0 %v396
  %v487 = vpop.f32.mrb[0].mxu0
  %v488 = vadd.f32 0.0, %v487
  %v489 = vpop.f32.mrb[0].mxu0
  %490 = vmatprep.mubr.f32.mxu0 0.0
  %491 = vmatmul.mubr.f32.gmra.mrb[0].mxu0 %v399
  %v492 = vpop.f32.mrb[0].mxu0
  %v493 = vadd.f32 0.0, %v492
  %v494 = vpop.f32.mrb[0].mxu0
  %495 = vmatprep.mubr.f32.mxu0 0.0
  %496 = vmatmul.mubr.f32.gmra.mrb[0].mxu0 %v402
  %v497 = vpop.f32.mrb[0].mxu0
  %v498 = vadd.f32 0.0, %v497
  %v499 = vpop.f32.mrb[0].mxu0
  %500 = vdwg.mxu0
  %v501 = vmul.f32 %v483, 0.125
  %v502 = vmul.f32 %v488, 0.125
  %v503 = vmul.f32 %v493, 0.125
  %v504 = vmul.f32 %v498, 0.125
  %v505 = vadd.f32 %v501, %v386
  %v506 = vadd.f32 %v502, %v387
  %v507 = vadd.f32 %v503, %v388
  %v508 = vadd.f32 %v504, %v389
  %v509 = vsel %vm181, %v505, -inf
  %510 = vmax.xlane.f32.xlu0 %v509
  %v511 = vpop.xlane.xlu0 %510
  %v512 = vsel %vm181, %v506, -inf
  %513 = vmax.xlane.f32.xlu0 %v512
  %v514 = vpop.xlane.xlu0 %513
  %v515 = vsel %vm181, %v507, -inf
  %516 = vmax.xlane.f32.xlu0 %v515
  %v517 = vpop.xlane.xlu0 %516
  %v518 = vsel %vm181, %v508, -inf
  %519 = vmax.xlane.f32.xlu0 %v518
  %v520 = vpop.xlane.xlu0 %519
  %v521 = vsub.f32 %v505, %v511
  %v522 = vsub.f32 %v506, %v514
  %v523 = vsub.f32 %v507, %v517
  %v524 = vsub.f32 %v508, %v520
  %v525 = vmul.f32 %v521, 1.442695
  %v526 = vpow.pop %v525
  %v527 = vmul.f32 %v522, 1.442695
  %v528 = vpow.pop %v527
  %v529 = vmul.f32 %v523, 1.442695
  %v530 = vpow.pop %v529
  %v531 = vmul.f32 %v524, 1.442695
  %v532 = vpow.pop %v531
  %v533 = vsel %vm181, %v526, 0.0
  %534 = vadd.xlane.f32.xlu0 %v533
  %v535 = vpop.xlane.xlu0 %534
  %v536 = vsel %vm181, %v528, 0.0
  %537 = vadd.xlane.f32.xlu0 %v536
  %v538 = vpop.xlane.xlu0 %537
  %v539 = vsel %vm181, %v530, 0.0
  %540 = vadd.xlane.f32.xlu0 %v539
  %v541 = vpop.xlane.xlu0 %540
  %v542 = vsel %vm181, %v532, 0.0
  %543 = vadd.xlane.f32.xlu0 %v542
  %v544 = vpop.xlane.xlu0 %543
  %v545 = vrcp.pop %v535
  %v546 = vrcp.pop %v538
  %v547 = vrcp.pop %v541
  %v548 = vrcp.pop %v544
  %v549 = vmul.f32 %v526, %v545
  %v550 = vmul.f32 %v528, %v546
  %v551 = vmul.f32 %v530, %v547
  %v552 = vmul.f32 %v532, %v548
  %v554 = vsel %vm181, %v390, 0
  %556 = vmatprep.subr.mxu0 0.0
  %557 = vmatpush1.msra.mxu0 %v549
  %558 = vmatprep.subr.mxu0 0.0
  %559 = vmatpush1.msra.mxu0 %v550
  %560 = vmatprep.subr.mxu0 0.0
  %561 = vmatpush1.msra.mxu0 %v551
  %562 = vmatprep.subr.mxu0 0.0
  %563 = vmatpush1.msra.mxu0 %v552
  %564 = vmatprep.subr.mxu0 0.0
  %565 = vmatpush1.msra.mxu0 0.0
  %566 = vmatprep.subr.mxu0 0.0
  %567 = vmatpush1.msra.mxu0 0.0
  %568 = vmatprep.subr.mxu0 0.0
  %569 = vmatpush1.msra.mxu0 0.0
  %570 = vmatprep.subr.mxu0 0.0
  %571 = vmatpush1.msra.mxu0 0.0
  %572 = vmatprep.subr.mxu0 0.0
  %573 = vmatpush1.msra.mxu0 0.0
  %574 = vmatprep.subr.mxu0 0.0
  %575 = vmatpush1.msra.mxu0 0.0
  %576 = vmatprep.subr.mxu0 0.0
  %577 = vmatpush1.msra.mxu0 0.0
  %578 = vmatprep.subr.mxu0 0.0
  %579 = vmatpush1.msra.mxu0 0.0
  %580 = vmatprep.subr.mxu0 0.0
  %581 = vmatpush1.msra.mxu0 0.0
  %582 = vmatprep.subr.mxu0 0.0
  %583 = vmatpush1.msra.mxu0 0.0
  %584 = vmatprep.subr.mxu0 0.0
  %585 = vmatpush1.msra.mxu0 0.0
  %586 = vmatprep.subr.mxu0 0.0
  %587 = vmatpush1.msra.mxu0 0.0
  %588 = vmatprep.subr.mxu0 0.0
  %589 = vmatpush1.msra.mxu0 0.0
  %590 = vmatprep.subr.mxu0 0.0
  %591 = vmatpush1.msra.mxu0 0.0
  %592 = vmatprep.subr.mxu0 0.0
  %593 = vmatpush1.msra.mxu0 0.0
  %594 = vmatprep.subr.mxu0 0.0
  %595 = vmatpush1.msra.mxu0 0.0
  %596 = vmatprep.subr.mxu0 0.0
  %597 = vmatpush1.msra.mxu0 0.0
  %598 = vmatprep.subr.mxu0 0.0
  %599 = vmatpush1.msra.mxu0 0.0
  %600 = vmatprep.subr.mxu0 0.0
  %601 = vmatpush1.msra.mxu0 0.0
  %602 = vmatprep.subr.mxu0 0.0
  %603 = vmatpush1.msra.mxu0 0.0
  %604 = vmatprep.subr.mxu0 0.0
  %605 = vmatpush1.msra.mxu0 0.0
  %606 = vmatprep.subr.mxu0 0.0
  %607 = vmatpush1.msra.mxu0 0.0
  %608 = vmatprep.subr.mxu0 0.0
  %609 = vmatpush1.msra.mxu0 0.0
  %610 = vmatprep.subr.mxu0 0.0
  %611 = vmatpush1.msra.mxu0 0.0
  %612 = vmatprep.subr.mxu0 0.0
  %613 = vmatpush1.msra.mxu0 0.0
  %614 = vmatprep.subr.mxu0 0.0
  %615 = vmatpush1.msra.mxu0 0.0
  %616 = vmatprep.subr.mxu0 0.0
  %617 = vmatpush1.msra.mxu0 0.0
  %618 = vmatprep.subr.mxu0 0.0
  %619 = vmatpush1.msra.mxu0 0.0
  %620 = vmatprep.mubr.f32.mxu0 0.0
  %621 = vmatmul.mubr.f32.gmra.mrb[0].mxu0 %v554
  %v622 = vpop.f32.mrb[0].mxu0
  %v623 = vadd.f32 0.0, %v622
  %v624 = vpop.f32.mrb[0].mxu0
  %625 = vdwg.mxu0
  %v627 = vsel %vm181, %v623, 0
  %629 = vmatprep.subr.mxu0 0.0
  %630 = vmatpush1.msra.mxu0 %v275
  %631 = vmatprep.subr.mxu0 0.0
  %632 = vmatpush1.msra.mxu0 %v279
  %633 = vmatprep.subr.mxu0 0.0
  %634 = vmatpush1.msra.mxu0 %v285
  %635 = vmatprep.subr.mxu0 0.0
  %636 = vmatpush1.msra.mxu0 %v289
  %637 = vmatprep.subr.mxu0 0.0
  %638 = vmatpush1.msra.mxu0 0.0
  %639 = vmatprep.subr.mxu0 0.0
  %640 = vmatpush1.msra.mxu0 0.0
  %641 = vmatprep.subr.mxu0 0.0
  %642 = vmatpush1.msra.mxu0 0.0
  %643 = vmatprep.subr.mxu0 0.0
  %644 = vmatpush1.msra.mxu0 0.0
  %645 = vmatprep.subr.mxu0 0.0
  %646 = vmatpush1.msra.mxu0 0.0
  %647 = vmatprep.subr.mxu0 0.0
  %648 = vmatpush1.msra.mxu0 0.0
  %649 = vmatprep.subr.mxu0 0.0
  %650 = vmatpush1.msra.mxu0 0.0
  %651 = vmatprep.subr.mxu0 0.0
  %652 = vmatpush1.msra.mxu0 0.0
  %653 = vmatprep.subr.mxu0 0.0
  %654 = vmatpush1.msra.mxu0 0.0
  %655 = vmatprep.subr.mxu0 0.0
  %656 = vmatpush1.msra.mxu0 0.0
  %657 = vmatprep.subr.mxu0 0.0
  %658 = vmatpush1.msra.mxu0 0.0
  %659 = vmatprep.subr.mxu0 0.0
  %660 = vmatpush1.msra.mxu0 0.0
  %661 = vmatprep.subr.mxu0 0.0
  %662 = vmatpush1.msra.mxu0 0.0
  %663 = vmatprep.subr.mxu0 0.0
  %664 = vmatpush1.msra.mxu0 0.0
  %665 = vmatprep.subr.mxu0 0.0
  %666 = vmatpush1.msra.mxu0 0.0
  %667 = vmatprep.subr.mxu0 0.0
  %668 = vmatpush1.msra.mxu0 0.0
  %669 = vmatprep.subr.mxu0 0.0
  %670 = vmatpush1.msra.mxu0 0.0
  %671 = vmatprep.subr.mxu0 0.0
  %672 = vmatpush1.msra.mxu0 0.0
  %673 = vmatprep.subr.mxu0 0.0
  %674 = vmatpush1.msra.mxu0 0.0
  %675 = vmatprep.subr.mxu0 0.0
  %676 = vmatpush1.msra.mxu0 0.0
  %677 = vmatprep.subr.mxu0 0.0
  %678 = vmatpush1.msra.mxu0 0.0
  %679 = vmatprep.subr.mxu0 0.0
  %680 = vmatpush1.msra.mxu0 0.0
  %681 = vmatprep.subr.mxu0 0.0
  %682 = vmatpush1.msra.mxu0 0.0
  %683 = vmatprep.subr.mxu0 0.0
  %684 = vmatpush1.msra.mxu0 0.0
  %685 = vmatprep.subr.mxu0 0.0
  %686 = vmatpush1.msra.mxu0 0.0
  %687 = vmatprep.subr.mxu0 0.0
  %688 = vmatpush1.msra.mxu0 0.0
  %689 = vmatprep.subr.mxu0 0.0
  %690 = vmatpush1.msra.mxu0 0.0
  %691 = vmatprep.subr.mxu0 0.0
  %692 = vmatpush1.msra.mxu0 0.0
  %693 = vmatprep.mubr.f32.mxu0 0.0
  %694 = vmatmul.mubr.f32.gmra.mrb[0].mxu0 %v627
  %v695 = vpop.f32.mrb[0].mxu0
  %v696 = vadd.f32 0.0, %v695
  %v697 = vpop.f32.mrb[0].mxu0
  %698 = vdwg.mxu0
  %699 = vrot.lane.b32.xlu0 %v235, 64
  %v700 = vpop.permute.xlu0 %699
  %701 = vrot.lane.b32.xlu0 %v239, 64
  %v702 = vpop.permute.xlu0 %701
  %703 = vrot.lane.b32.xlu0 %v245, 64
  %v704 = vpop.permute.xlu0 %703
  %705 = vrot.lane.b32.xlu0 %v249, 64
  %v706 = vpop.permute.xlu0 %705
  %707 = vrot.lane.b32.xlu0 %v255, 64
  %v708 = vpop.permute.xlu0 %707
  %709 = vrot.lane.b32.xlu0 %v259, 64
  %v710 = vpop.permute.xlu0 %709
  %711 = vrot.lane.b32.xlu0 %v265, 64
  %v712 = vpop.permute.xlu0 %711
  %713 = vrot.lane.b32.xlu0 %v269, 64
  %v714 = vpop.permute.xlu0 %713
  %v715 = vsel %vm391, %v700, 0
  %v717 = vsel %vm391, %v702, 0
  %v719 = vsel %vm391, %v704, 0
  %v721 = vsel %vm391, %v706, 0
  %v723 = vsel %vm391, %v708, 0
  %v725 = vsel %vm391, %v710, 0
  %v727 = vsel %vm391, %v712, 0
  %v729 = vsel %vm391, %v714, 0
  %731 = vmatprep.subr.mxu0 0.0
  %732 = vmatpush1.xpose.msra.mxu0 %v723
  %733 = vmatprep.subr.mxu0 0.0
  %734 = vmatpush1.xpose.msra.mxu0 %v725
  %735 = vmatprep.subr.mxu0 0.0
  %736 = vmatpush1.xpose.msra.mxu0 %v727
  %737 = vmatprep.subr.mxu0 0.0
  %738 = vmatpush1.xpose.msra.mxu0 %v729
  %739 = vmatprep.subr.mxu0 0.0
  %740 = vmatpush1.xpose.msra.mxu0 0.0
  %741 = vmatprep.subr.mxu0 0.0
  %742 = vmatpush1.xpose.msra.mxu0 0.0
  %743 = vmatprep.subr.mxu0 0.0
  %744 = vmatpush1.xpose.msra.mxu0 0.0
  %745 = vmatprep.subr.mxu0 0.0
  %746 = vmatpush1.xpose.msra.mxu0 0.0
  %747 = vmatprep.subr.mxu0 0.0
  %748 = vmatpush1.xpose.msra.mxu0 0.0
  %749 = vmatprep.subr.mxu0 0.0
  %750 = vmatpush1.xpose.msra.mxu0 0.0
  %751 = vmatprep.subr.mxu0 0.0
  %752 = vmatpush1.xpose.msra.mxu0 0.0
  %753 = vmatprep.subr.mxu0 0.0
  %754 = vmatpush1.xpose.msra.mxu0 0.0
  %755 = vmatprep.subr.mxu0 0.0
  %756 = vmatpush1.xpose.msra.mxu0 0.0
  %757 = vmatprep.subr.mxu0 0.0
  %758 = vmatpush1.xpose.msra.mxu0 0.0
  %759 = vmatprep.subr.mxu0 0.0
  %760 = vmatpush1.xpose.msra.mxu0 0.0
  %761 = vmatprep.subr.mxu0 0.0
  %762 = vmatpush1.xpose.msra.mxu0 0.0
  %763 = vmatprep.subr.mxu0 0.0
  %764 = vmatpush1.xpose.msra.mxu0 0.0
  %765 = vmatprep.subr.mxu0 0.0
  %766 = vmatpush1.xpose.msra.mxu0 0.0
  %767 = vmatprep.subr.mxu0 0.0
  %768 = vmatpush1.xpose.msra.mxu0 0.0
  %769 = vmatprep.subr.mxu0 0.0
  %770 = vmatpush1.xpose.msra.mxu0 0.0
  %771 = vmatprep.subr.mxu0 0.0
  %772 = vmatpush1.xpose.msra.mxu0 0.0
  %773 = vmatprep.subr.mxu0 0.0
  %774 = vmatpush1.xpose.msra.mxu0 0.0
  %775 = vmatprep.subr.mxu0 0.0
  %776 = vmatpush1.xpose.msra.mxu0 0.0
  %777 = vmatprep.subr.mxu0 0.0
  %778 = vmatpush1.xpose.msra.mxu0 0.0
  %779 = vmatprep.subr.mxu0 0.0
  %780 = vmatpush1.xpose.msra.mxu0 0.0
  %781 = vmatprep.subr.mxu0 0.0
  %782 = vmatpush1.xpose.msra.mxu0 0.0
  %783 = vmatprep.subr.mxu0 0.0
  %784 = vmatpush1.xpose.msra.mxu0 0.0
  %785 = vmatprep.subr.mxu0 0.0
  %786 = vmatpush1.xpose.msra.mxu0 0.0
  %787 = vmatprep.subr.mxu0 0.0
  %788 = vmatpush1.xpose.msra.mxu0 0.0
  %789 = vmatprep.subr.mxu0 0.0
  %790 = vmatpush1.xpose.msra.mxu0 0.0
  %791 = vmatprep.subr.mxu0 0.0
  %792 = vmatpush1.xpose.msra.mxu0 0.0
  %793 = vmatprep.subr.mxu0 0.0
  %794 = vmatpush1.xpose.msra.mxu0 0.0
  %795 = vmatprep.mubr.f32.mxu0 0.0
  %796 = vmatmul.mubr.f32.gmra.mrb[0].mxu0 %v715
  %v797 = vpop.f32.mrb[0].mxu0
  %v798 = vadd.f32 0.0, %v797
  %v799 = vpop.f32.mrb[0].mxu0
  %800 = vmatprep.mubr.f32.mxu0 0.0
  %801 = vmatmul.mubr.f32.gmra.mrb[0].mxu0 %v717
  %v802 = vpop.f32.mrb[0].mxu0
  %v803 = vadd.f32 0.0, %v802
  %v804 = vpop.f32.mrb[0].mxu0
  %805 = vmatprep.mubr.f32.mxu0 0.0
  %806 = vmatmul.mubr.f32.gmra.mrb[0].mxu0 %v719
  %v807 = vpop.f32.mrb[0].mxu0
  %v808 = vadd.f32 0.0, %v807
  %v809 = vpop.f32.mrb[0].mxu0
  %810 = vmatprep.mubr.f32.mxu0 0.0
  %811 = vmatmul.mubr.f32.gmra.mrb[0].mxu0 %v721
  %v812 = vpop.f32.mrb[0].mxu0
  %v813 = vadd.f32 0.0, %v812
  %v814 = vpop.f32.mrb[0].mxu0
  %815 = vdwg.mxu0
  %v816 = vmul.f32 %v798, 0.125
  %v817 = vmul.f32 %v803, 0.125
  %v818 = vmul.f32 %v808, 0.125
  %v819 = vmul.f32 %v813, 0.125
  %v820 = vadd.f32 %v816, %v386
  %v821 = vadd.f32 %v817, %v387
  %v822 = vadd.f32 %v818, %v388
  %v823 = vadd.f32 %v819, %v389
  %v824 = vsel %vm181, %v820, -inf
  %825 = vmax.xlane.f32.xlu0 %v824
  %v826 = vpop.xlane.xlu0 %825
  %v827 = vsel %vm181, %v821, -inf
  %828 = vmax.xlane.f32.xlu0 %v827
  %v829 = vpop.xlane.xlu0 %828
  %v830 = vsel %vm181, %v822, -inf
  %831 = vmax.xlane.f32.xlu0 %v830
  %v832 = vpop.xlane.xlu0 %831
  %v833 = vsel %vm181, %v823, -inf
  %834 = vmax.xlane.f32.xlu0 %v833
  %v835 = vpop.xlane.xlu0 %834
  %v836 = vsub.f32 %v820, %v826
  %v837 = vsub.f32 %v821, %v829
  %v838 = vsub.f32 %v822, %v832
  %v839 = vsub.f32 %v823, %v835
  %v840 = vmul.f32 %v836, 1.442695
  %v841 = vpow.pop %v840
  %v842 = vmul.f32 %v837, 1.442695
  %v843 = vpow.pop %v842
  %v844 = vmul.f32 %v838, 1.442695
  %v845 = vpow.pop %v844
  %v846 = vmul.f32 %v839, 1.442695
  %v847 = vpow.pop %v846
  %v848 = vsel %vm181, %v841, 0.0
  %849 = vadd.xlane.f32.xlu0 %v848
  %v850 = vpop.xlane.xlu0 %849
  %v851 = vsel %vm181, %v843, 0.0
  %852 = vadd.xlane.f32.xlu0 %v851
  %v853 = vpop.xlane.xlu0 %852
  %v854 = vsel %vm181, %v845, 0.0
  %855 = vadd.xlane.f32.xlu0 %v854
  %v856 = vpop.xlane.xlu0 %855
  %v857 = vsel %vm181, %v847, 0.0
  %858 = vadd.xlane.f32.xlu0 %v857
  %v859 = vpop.xlane.xlu0 %858
  %v860 = vrcp.pop %v850
  %v861 = vrcp.pop %v853
  %v862 = vrcp.pop %v856
  %v863 = vrcp.pop %v859
  %v864 = vmul.f32 %v841, %v860
  %v865 = vmul.f32 %v843, %v861
  %v866 = vmul.f32 %v845, %v862
  %v867 = vmul.f32 %v847, %v863
  %868 = vmatprep.subr.mxu0 0.0
  %869 = vmatpush1.msra.mxu0 %v864
  %870 = vmatprep.subr.mxu0 0.0
  %871 = vmatpush1.msra.mxu0 %v865
  %872 = vmatprep.subr.mxu0 0.0
  %873 = vmatpush1.msra.mxu0 %v866
  %874 = vmatprep.subr.mxu0 0.0
  %875 = vmatpush1.msra.mxu0 %v867
  %876 = vmatprep.subr.mxu0 0.0
  %877 = vmatpush1.msra.mxu0 0.0
  %878 = vmatprep.subr.mxu0 0.0
  %879 = vmatpush1.msra.mxu0 0.0
  %880 = vmatprep.subr.mxu0 0.0
  %881 = vmatpush1.msra.mxu0 0.0
  %882 = vmatprep.subr.mxu0 0.0
  %883 = vmatpush1.msra.mxu0 0.0
  %884 = vmatprep.subr.mxu0 0.0
  %885 = vmatpush1.msra.mxu0 0.0
  %886 = vmatprep.subr.mxu0 0.0
  %887 = vmatpush1.msra.mxu0 0.0
  %888 = vmatprep.subr.mxu0 0.0
  %889 = vmatpush1.msra.mxu0 0.0
  %890 = vmatprep.subr.mxu0 0.0
  %891 = vmatpush1.msra.mxu0 0.0
  %892 = vmatprep.subr.mxu0 0.0
  %893 = vmatpush1.msra.mxu0 0.0
  %894 = vmatprep.subr.mxu0 0.0
  %895 = vmatpush1.msra.mxu0 0.0
  %896 = vmatprep.subr.mxu0 0.0
  %897 = vmatpush1.msra.mxu0 0.0
  %898 = vmatprep.subr.mxu0 0.0
  %899 = vmatpush1.msra.mxu0 0.0
  %900 = vmatprep.subr.mxu0 0.0
  %901 = vmatpush1.msra.mxu0 0.0
  %902 = vmatprep.subr.mxu0 0.0
  %903 = vmatpush1.msra.mxu0 0.0
  %904 = vmatprep.subr.mxu0 0.0
  %905 = vmatpush1.msra.mxu0 0.0
  %906 = vmatprep.subr.mxu0 0.0
  %907 = vmatpush1.msra.mxu0 0.0
  %908 = vmatprep.subr.mxu0 0.0
  %909 = vmatpush1.msra.mxu0 0.0
  %910 = vmatprep.subr.mxu0 0.0
  %911 = vmatpush1.msra.mxu0 0.0
  %912 = vmatprep.subr.mxu0 0.0
  %913 = vmatpush1.msra.mxu0 0.0
  %914 = vmatprep.subr.mxu0 0.0
  %915 = vmatpush1.msra.mxu0 0.0
  %916 = vmatprep.subr.mxu0 0.0
  %917 = vmatpush1.msra.mxu0 0.0
  %918 = vmatprep.subr.mxu0 0.0
  %919 = vmatpush1.msra.mxu0 0.0
  %920 = vmatprep.subr.mxu0 0.0
  %921 = vmatpush1.msra.mxu0 0.0
  %922 = vmatprep.subr.mxu0 0.0
  %923 = vmatpush1.msra.mxu0 0.0
  %924 = vmatprep.subr.mxu0 0.0
  %925 = vmatpush1.msra.mxu0 0.0
  %926 = vmatprep.subr.mxu0 0.0
  %927 = vmatpush1.msra.mxu0 0.0
  %928 = vmatprep.subr.mxu0 0.0
  %929 = vmatpush1.msra.mxu0 0.0
  %930 = vmatprep.subr.mxu0 0.0
  %931 = vmatpush1.msra.mxu0 0.0
  %932 = vmatprep.mubr.f32.mxu0 0.0
  %933 = vmatmul.mubr.f32.gmra.mrb[0].mxu0 %v554
  %v934 = vpop.f32.mrb[0].mxu0
  %v935 = vadd.f32 0.0, %v934
  %v936 = vpop.f32.mrb[0].mxu0
  %937 = vdwg.mxu0
  %942 = vrot.lane.b32.xlu0 %v275, 64
  %v943 = vpop.permute.xlu0 %942
  %944 = vrot.lane.b32.xlu0 %v279, 64
  %v945 = vpop.permute.xlu0 %944
  %946 = vrot.lane.b32.xlu0 %v285, 64
  %v947 = vpop.permute.xlu0 %946
  %948 = vrot.lane.b32.xlu0 %v289, 64
  %v949 = vpop.permute.xlu0 %948
  %v955 = vsel %vm181, %v935, 0
  %957 = vmatprep.subr.mxu0 0.0
  %958 = vmatpush1.msra.mxu0 %v943
  %959 = vmatprep.subr.mxu0 0.0
  %960 = vmatpush1.msra.mxu0 %v945
  %961 = vmatprep.subr.mxu0 0.0
  %962 = vmatpush1.msra.mxu0 %v947
  %963 = vmatprep.subr.mxu0 0.0
  %964 = vmatpush1.msra.mxu0 %v949
  %965 = vmatprep.subr.mxu0 0.0
  %966 = vmatpush1.msra.mxu0 0.0
  %967 = vmatprep.subr.mxu0 0.0
  %968 = vmatpush1.msra.mxu0 0.0
  %969 = vmatprep.subr.mxu0 0.0
  %970 = vmatpush1.msra.mxu0 0.0
  %971 = vmatprep.subr.mxu0 0.0
  %972 = vmatpush1.msra.mxu0 0.0
  %973 = vmatprep.subr.mxu0 0.0
  %974 = vmatpush1.msra.mxu0 0.0
  %975 = vmatprep.subr.mxu0 0.0
  %976 = vmatpush1.msra.mxu0 0.0
  %977 = vmatprep.subr.mxu0 0.0
  %978 = vmatpush1.msra.mxu0 0.0
  %979 = vmatprep.subr.mxu0 0.0
  %980 = vmatpush1.msra.mxu0 0.0
  %981 = vmatprep.subr.mxu0 0.0
  %982 = vmatpush1.msra.mxu0 0.0
  %983 = vmatprep.subr.mxu0 0.0
  %984 = vmatpush1.msra.mxu0 0.0
  %985 = vmatprep.subr.mxu0 0.0
  %986 = vmatpush1.msra.mxu0 0.0
  %987 = vmatprep.subr.mxu0 0.0
  %988 = vmatpush1.msra.mxu0 0.0
  %989 = vmatprep.subr.mxu0 0.0
  %990 = vmatpush1.msra.mxu0 0.0
  %991 = vmatprep.subr.mxu0 0.0
  %992 = vmatpush1.msra.mxu0 0.0
  %993 = vmatprep.subr.mxu0 0.0
  %994 = vmatpush1.msra.mxu0 0.0
  %995 = vmatprep.subr.mxu0 0.0
  %996 = vmatpush1.msra.mxu0 0.0
  %997 = vmatprep.subr.mxu0 0.0
  %998 = vmatpush1.msra.mxu0 0.0
  %999 = vmatprep.subr.mxu0 0.0
  %1000 = vmatpush1.msra.mxu0 0.0
  %1001 = vmatprep.subr.mxu0 0.0
  %1002 = vmatpush1.msra.mxu0 0.0
  %1003 = vmatprep.subr.mxu0 0.0
  %1004 = vmatpush1.msra.mxu0 0.0
  %1005 = vmatprep.subr.mxu0 0.0
  %1006 = vmatpush1.msra.mxu0 0.0
  %1007 = vmatprep.subr.mxu0 0.0
  %1008 = vmatpush1.msra.mxu0 0.0
  %1009 = vmatprep.subr.mxu0 0.0
  %1010 = vmatpush1.msra.mxu0 0.0
  %1011 = vmatprep.subr.mxu0 0.0
  %1012 = vmatpush1.msra.mxu0 0.0
  %1013 = vmatprep.subr.mxu0 0.0
  %1014 = vmatpush1.msra.mxu0 0.0
  %1015 = vmatprep.subr.mxu0 0.0
  %1016 = vmatpush1.msra.mxu0 0.0
  %1017 = vmatprep.subr.mxu0 0.0
  %1018 = vmatpush1.msra.mxu0 0.0
  %1019 = vmatprep.subr.mxu0 0.0
  %1020 = vmatpush1.msra.mxu0 0.0
  %1021 = vmatprep.mubr.f32.mxu0 0.0
  %1022 = vmatmul.mubr.f32.gmra.mrb[0].mxu0 %v955
  %v1023 = vpop.f32.mrb[0].mxu0
  %v1024 = vadd.f32 0.0, %v1023
  %v1025 = vpop.f32.mrb[0].mxu0
  %1026 = vdwg.mxu0
  %v1028 = vsel %vm391, %v237, 0
  %v1031 = vsel %vm391, %v241, 0
  %v1034 = vsel %vm391, %v247, 0
  %v1037 = vsel %vm391, %v251, 0
  %v1040 = vsel %vm391, %v257, 0
  %v1043 = vsel %vm391, %v261, 0
  %v1046 = vsel %vm391, %v267, 0
  %v1049 = vsel %vm391, %v271, 0
  %1051 = vmatprep.subr.mxu0 0.0
  %1052 = vmatpush1.xpose.msra.mxu0 %v1040
  %1053 = vmatprep.subr.mxu0 0.0
  %1054 = vmatpush1.xpose.msra.mxu0 %v1043
  %1055 = vmatprep.subr.mxu0 0.0
  %1056 = vmatpush1.xpose.msra.mxu0 %v1046
  %1057 = vmatprep.subr.mxu0 0.0
  %1058 = vmatpush1.xpose.msra.mxu0 %v1049
  %1059 = vmatprep.subr.mxu0 0.0
  %1060 = vmatpush1.xpose.msra.mxu0 0.0
  %1061 = vmatprep.subr.mxu0 0.0
  %1062 = vmatpush1.xpose.msra.mxu0 0.0
  %1063 = vmatprep.subr.mxu0 0.0
  %1064 = vmatpush1.xpose.msra.mxu0 0.0
  %1065 = vmatprep.subr.mxu0 0.0
  %1066 = vmatpush1.xpose.msra.mxu0 0.0
  %1067 = vmatprep.subr.mxu0 0.0
  %1068 = vmatpush1.xpose.msra.mxu0 0.0
  %1069 = vmatprep.subr.mxu0 0.0
  %1070 = vmatpush1.xpose.msra.mxu0 0.0
  %1071 = vmatprep.subr.mxu0 0.0
  %1072 = vmatpush1.xpose.msra.mxu0 0.0
  %1073 = vmatprep.subr.mxu0 0.0
  %1074 = vmatpush1.xpose.msra.mxu0 0.0
  %1075 = vmatprep.subr.mxu0 0.0
  %1076 = vmatpush1.xpose.msra.mxu0 0.0
  %1077 = vmatprep.subr.mxu0 0.0
  %1078 = vmatpush1.xpose.msra.mxu0 0.0
  %1079 = vmatprep.subr.mxu0 0.0
  %1080 = vmatpush1.xpose.msra.mxu0 0.0
  %1081 = vmatprep.subr.mxu0 0.0
  %1082 = vmatpush1.xpose.msra.mxu0 0.0
  %1083 = vmatprep.subr.mxu0 0.0
  %1084 = vmatpush1.xpose.msra.mxu0 0.0
  %1085 = vmatprep.subr.mxu0 0.0
  %1086 = vmatpush1.xpose.msra.mxu0 0.0
  %1087 = vmatprep.subr.mxu0 0.0
  %1088 = vmatpush1.xpose.msra.mxu0 0.0
  %1089 = vmatprep.subr.mxu0 0.0
  %1090 = vmatpush1.xpose.msra.mxu0 0.0
  %1091 = vmatprep.subr.mxu0 0.0
  %1092 = vmatpush1.xpose.msra.mxu0 0.0
  %1093 = vmatprep.subr.mxu0 0.0
  %1094 = vmatpush1.xpose.msra.mxu0 0.0
  %1095 = vmatprep.subr.mxu0 0.0
  %1096 = vmatpush1.xpose.msra.mxu0 0.0
  %1097 = vmatprep.subr.mxu0 0.0
  %1098 = vmatpush1.xpose.msra.mxu0 0.0
  %1099 = vmatprep.subr.mxu0 0.0
  %1100 = vmatpush1.xpose.msra.mxu0 0.0
  %1101 = vmatprep.subr.mxu0 0.0
  %1102 = vmatpush1.xpose.msra.mxu0 0.0
  %1103 = vmatprep.subr.mxu0 0.0
  %1104 = vmatpush1.xpose.msra.mxu0 0.0
  %1105 = vmatprep.subr.mxu0 0.0
  %1106 = vmatpush1.xpose.msra.mxu0 0.0
  %1107 = vmatprep.subr.mxu0 0.0
  %1108 = vmatpush1.xpose.msra.mxu0 0.0
  %1109 = vmatprep.subr.mxu0 0.0
  %1110 = vmatpush1.xpose.msra.mxu0 0.0
  %1111 = vmatprep.subr.mxu0 0.0
  %1112 = vmatpush1.xpose.msra.mxu0 0.0
  %1113 = vmatprep.subr.mxu0 0.0
  %1114 = vmatpush1.xpose.msra.mxu0 0.0
  %1115 = vmatprep.mubr.f32.mxu0 0.0
  %1116 = vmatmul.mubr.f32.gmra.mrb[0].mxu0 %v1028
  %v1117 = vpop.f32.mrb[0].mxu0
  %v1118 = vadd.f32 0.0, %v1117
  %v1119 = vpop.f32.mrb[0].mxu0
  %1120 = vmatprep.mubr.f32.mxu0 0.0
  %1121 = vmatmul.mubr.f32.gmra.mrb[0].mxu0 %v1031
  %v1122 = vpop.f32.mrb[0].mxu0
  %v1123 = vadd.f32 0.0, %v1122
  %v1124 = vpop.f32.mrb[0].mxu0
  %1125 = vmatprep.mubr.f32.mxu0 0.0
  %1126 = vmatmul.mubr.f32.gmra.mrb[0].mxu0 %v1034
  %v1127 = vpop.f32.mrb[0].mxu0
  %v1128 = vadd.f32 0.0, %v1127
  %v1129 = vpop.f32.mrb[0].mxu0
  %1130 = vmatprep.mubr.f32.mxu0 0.0
  %1131 = vmatmul.mubr.f32.gmra.mrb[0].mxu0 %v1037
  %v1132 = vpop.f32.mrb[0].mxu0
  %v1133 = vadd.f32 0.0, %v1132
  %v1134 = vpop.f32.mrb[0].mxu0
  %1135 = vdwg.mxu0
  %v1136 = vmul.f32 %v1118, 0.125
  %v1137 = vmul.f32 %v1123, 0.125
  %v1138 = vmul.f32 %v1128, 0.125
  %v1139 = vmul.f32 %v1133, 0.125
  %v1140 = vadd.f32 %v1136, %v386
  %v1141 = vadd.f32 %v1137, %v387
  %v1142 = vadd.f32 %v1138, %v388
  %v1143 = vadd.f32 %v1139, %v389
  %v1144 = vsel %vm181, %v1140, -inf
  %1145 = vmax.xlane.f32.xlu0 %v1144
  %v1146 = vpop.xlane.xlu0 %1145
  %v1147 = vsel %vm181, %v1141, -inf
  %1148 = vmax.xlane.f32.xlu0 %v1147
  %v1149 = vpop.xlane.xlu0 %1148
  %v1150 = vsel %vm181, %v1142, -inf
  %1151 = vmax.xlane.f32.xlu0 %v1150
  %v1152 = vpop.xlane.xlu0 %1151
  %v1153 = vsel %vm181, %v1143, -inf
  %1154 = vmax.xlane.f32.xlu0 %v1153
  %v1155 = vpop.xlane.xlu0 %1154
  %v1156 = vsub.f32 %v1140, %v1146
  %v1157 = vsub.f32 %v1141, %v1149
  %v1158 = vsub.f32 %v1142, %v1152
  %v1159 = vsub.f32 %v1143, %v1155
  %v1160 = vmul.f32 %v1156, 1.442695
  %v1161 = vpow.pop %v1160
  %v1162 = vmul.f32 %v1157, 1.442695
  %v1163 = vpow.pop %v1162
  %v1164 = vmul.f32 %v1158, 1.442695
  %v1165 = vpow.pop %v1164
  %v1166 = vmul.f32 %v1159, 1.442695
  %v1167 = vpow.pop %v1166
  %v1168 = vsel %vm181, %v1161, 0.0
  %1169 = vadd.xlane.f32.xlu0 %v1168
  %v1170 = vpop.xlane.xlu0 %1169
  %v1171 = vsel %vm181, %v1163, 0.0
  %1172 = vadd.xlane.f32.xlu0 %v1171
  %v1173 = vpop.xlane.xlu0 %1172
  %v1174 = vsel %vm181, %v1165, 0.0
  %1175 = vadd.xlane.f32.xlu0 %v1174
  %v1176 = vpop.xlane.xlu0 %1175
  %v1177 = vsel %vm181, %v1167, 0.0
  %1178 = vadd.xlane.f32.xlu0 %v1177
  %v1179 = vpop.xlane.xlu0 %1178
  %v1180 = vrcp.pop %v1170
  %v1181 = vrcp.pop %v1173
  %v1182 = vrcp.pop %v1176
  %v1183 = vrcp.pop %v1179
  %v1184 = vmul.f32 %v1161, %v1180
  %v1185 = vmul.f32 %v1163, %v1181
  %v1186 = vmul.f32 %v1165, %v1182
  %v1187 = vmul.f32 %v1167, %v1183
  %1188 = vmatprep.subr.mxu0 0.0
  %1189 = vmatpush1.msra.mxu0 %v1184
  %1190 = vmatprep.subr.mxu0 0.0
  %1191 = vmatpush1.msra.mxu0 %v1185
  %1192 = vmatprep.subr.mxu0 0.0
  %1193 = vmatpush1.msra.mxu0 %v1186
  %1194 = vmatprep.subr.mxu0 0.0
  %1195 = vmatpush1.msra.mxu0 %v1187
  %1196 = vmatprep.subr.mxu0 0.0
  %1197 = vmatpush1.msra.mxu0 0.0
  %1198 = vmatprep.subr.mxu0 0.0
  %1199 = vmatpush1.msra.mxu0 0.0
  %1200 = vmatprep.subr.mxu0 0.0
  %1201 = vmatpush1.msra.mxu0 0.0
  %1202 = vmatprep.subr.mxu0 0.0
  %1203 = vmatpush1.msra.mxu0 0.0
  %1204 = vmatprep.subr.mxu0 0.0
  %1205 = vmatpush1.msra.mxu0 0.0
  %1206 = vmatprep.subr.mxu0 0.0
  %1207 = vmatpush1.msra.mxu0 0.0
  %1208 = vmatprep.subr.mxu0 0.0
  %1209 = vmatpush1.msra.mxu0 0.0
  %1210 = vmatprep.subr.mxu0 0.0
  %1211 = vmatpush1.msra.mxu0 0.0
  %1212 = vmatprep.subr.mxu0 0.0
  %1213 = vmatpush1.msra.mxu0 0.0
  %1214 = vmatprep.subr.mxu0 0.0
  %1215 = vmatpush1.msra.mxu0 0.0
  %1216 = vmatprep.subr.mxu0 0.0
  %1217 = vmatpush1.msra.mxu0 0.0
  %1218 = vmatprep.subr.mxu0 0.0
  %1219 = vmatpush1.msra.mxu0 0.0
  %1220 = vmatprep.subr.mxu0 0.0
  %1221 = vmatpush1.msra.mxu0 0.0
  %1222 = vmatprep.subr.mxu0 0.0
  %1223 = vmatpush1.msra.mxu0 0.0
  %1224 = vmatprep.subr.mxu0 0.0
  %1225 = vmatpush1.msra.mxu0 0.0
  %1226 = vmatprep.subr.mxu0 0.0
  %1227 = vmatpush1.msra.mxu0 0.0
  %1228 = vmatprep.subr.mxu0 0.0
  %1229 = vmatpush1.msra.mxu0 0.0
  %1230 = vmatprep.subr.mxu0 0.0
  %1231 = vmatpush1.msra.mxu0 0.0
  %1232 = vmatprep.subr.mxu0 0.0
  %1233 = vmatpush1.msra.mxu0 0.0
  %1234 = vmatprep.subr.mxu0 0.0
  %1235 = vmatpush1.msra.mxu0 0.0
  %1236 = vmatprep.subr.mxu0 0.0
  %1237 = vmatpush1.msra.mxu0 0.0
  %1238 = vmatprep.subr.mxu0 0.0
  %1239 = vmatpush1.msra.mxu0 0.0
  %1240 = vmatprep.subr.mxu0 0.0
  %1241 = vmatpush1.msra.mxu0 0.0
  %1242 = vmatprep.subr.mxu0 0.0
  %1243 = vmatpush1.msra.mxu0 0.0
  %1244 = vmatprep.subr.mxu0 0.0
  %1245 = vmatpush1.msra.mxu0 0.0
  %1246 = vmatprep.subr.mxu0 0.0
  %1247 = vmatpush1.msra.mxu0 0.0
  %1248 = vmatprep.subr.mxu0 0.0
  %1249 = vmatpush1.msra.mxu0 0.0
  %1250 = vmatprep.subr.mxu0 0.0
  %1251 = vmatpush1.msra.mxu0 0.0
  %1252 = vmatprep.mubr.f32.mxu0 0.0
  %1253 = vmatmul.mubr.f32.gmra.mrb[0].mxu0 %v554
  %v1254 = vpop.f32.mrb[0].mxu0
  %v1255 = vadd.f32 0.0, %v1254
  %v1256 = vpop.f32.mrb[0].mxu0
  %1257 = vdwg.mxu0
  %v1259 = vsel %vm181, %v1255, 0
  %1261 = vmatprep.subr.mxu0 0.0
  %1262 = vmatpush1.msra.mxu0 %v277
  %1263 = vmatprep.subr.mxu0 0.0
  %1264 = vmatpush1.msra.mxu0 %v281
  %1265 = vmatprep.subr.mxu0 0.0
  %1266 = vmatpush1.msra.mxu0 %v287
  %1267 = vmatprep.subr.mxu0 0.0
  %1268 = vmatpush1.msra.mxu0 %v291
  %1269 = vmatprep.subr.mxu0 0.0
  %1270 = vmatpush1.msra.mxu0 0.0
  %1271 = vmatprep.subr.mxu0 0.0
  %1272 = vmatpush1.msra.mxu0 0.0
  %1273 = vmatprep.subr.mxu0 0.0
  %1274 = vmatpush1.msra.mxu0 0.0
  %1275 = vmatprep.subr.mxu0 0.0
  %1276 = vmatpush1.msra.mxu0 0.0
  %1277 = vmatprep.subr.mxu0 0.0
  %1278 = vmatpush1.msra.mxu0 0.0
  %1279 = vmatprep.subr.mxu0 0.0
  %1280 = vmatpush1.msra.mxu0 0.0
  %1281 = vmatprep.subr.mxu0 0.0
  %1282 = vmatpush1.msra.mxu0 0.0
  %1283 = vmatprep.subr.mxu0 0.0
  %1284 = vmatpush1.msra.mxu0 0.0
  %1285 = vmatprep.subr.mxu0 0.0
  %1286 = vmatpush1.msra.mxu0 0.0
  %1287 = vmatprep.subr.mxu0 0.0
  %1288 = vmatpush1.msra.mxu0 0.0
  %1289 = vmatprep.subr.mxu0 0.0
  %1290 = vmatpush1.msra.mxu0 0.0
  %1291 = vmatprep.subr.mxu0 0.0
  %1292 = vmatpush1.msra.mxu0 0.0
  %1293 = vmatprep.subr.mxu0 0.0
  %1294 = vmatpush1.msra.mxu0 0.0
  %1295 = vmatprep.subr.mxu0 0.0
  %1296 = vmatpush1.msra.mxu0 0.0
  %1297 = vmatprep.subr.mxu0 0.0
  %1298 = vmatpush1.msra.mxu0 0.0
  %1299 = vmatprep.subr.mxu0 0.0
  %1300 = vmatpush1.msra.mxu0 0.0
  %1301 = vmatprep.subr.mxu0 0.0
  %1302 = vmatpush1.msra.mxu0 0.0
  %1303 = vmatprep.subr.mxu0 0.0
  %1304 = vmatpush1.msra.mxu0 0.0
  %1305 = vmatprep.subr.mxu0 0.0
  %1306 = vmatpush1.msra.mxu0 0.0
  %1307 = vmatprep.subr.mxu0 0.0
  %1308 = vmatpush1.msra.mxu0 0.0
  %1309 = vmatprep.subr.mxu0 0.0
  %1310 = vmatpush1.msra.mxu0 0.0
  %1311 = vmatprep.subr.mxu0 0.0
  %1312 = vmatpush1.msra.mxu0 0.0
  %1313 = vmatprep.subr.mxu0 0.0
  %1314 = vmatpush1.msra.mxu0 0.0
  %1315 = vmatprep.subr.mxu0 0.0
  %1316 = vmatpush1.msra.mxu0 0.0
  %1317 = vmatprep.subr.mxu0 0.0
  %1318 = vmatpush1.msra.mxu0 0.0
  %1319 = vmatprep.subr.mxu0 0.0
  %1320 = vmatpush1.msra.mxu0 0.0
  %1321 = vmatprep.subr.mxu0 0.0
  %1322 = vmatpush1.msra.mxu0 0.0
  %1323 = vmatprep.subr.mxu0 0.0
  %1324 = vmatpush1.msra.mxu0 0.0
  %1325 = vmatprep.mubr.f32.mxu0 0.0
  %1326 = vmatmul.mubr.f32.gmra.mrb[0].mxu0 %v1259
  %v1327 = vpop.f32.mrb[0].mxu0
  %v1328 = vadd.f32 0.0, %v1327
  %v1329 = vpop.f32.mrb[0].mxu0
  %1330 = vdwg.mxu0
  %1331 = vrot.lane.b32.xlu0 %v237, 64
  %v1332 = vpop.permute.xlu0 %1331
  %1333 = vrot.lane.b32.xlu0 %v241, 64
  %v1334 = vpop.permute.xlu0 %1333
  %1335 = vrot.lane.b32.xlu0 %v247, 64
  %v1336 = vpop.permute.xlu0 %1335
  %1337 = vrot.lane.b32.xlu0 %v251, 64
  %v1338 = vpop.permute.xlu0 %1337
  %1339 = vrot.lane.b32.xlu0 %v257, 64
  %v1340 = vpop.permute.xlu0 %1339
  %1341 = vrot.lane.b32.xlu0 %v261, 64
  %v1342 = vpop.permute.xlu0 %1341
  %1343 = vrot.lane.b32.xlu0 %v267, 64
  %v1344 = vpop.permute.xlu0 %1343
  %1345 = vrot.lane.b32.xlu0 %v271, 64
  %v1346 = vpop.permute.xlu0 %1345
  %v1347 = vsel %vm391, %v1332, 0
  %v1349 = vsel %vm391, %v1334, 0
  %v1351 = vsel %vm391, %v1336, 0
  %v1353 = vsel %vm391, %v1338, 0
  %v1355 = vsel %vm391, %v1340, 0
  %v1357 = vsel %vm391, %v1342, 0
  %v1359 = vsel %vm391, %v1344, 0
  %v1361 = vsel %vm391, %v1346, 0
  %1363 = vmatprep.subr.mxu0 0.0
  %1364 = vmatpush1.xpose.msra.mxu0 %v1355
  %1365 = vmatprep.subr.mxu0 0.0
  %1366 = vmatpush1.xpose.msra.mxu0 %v1357
  %1367 = vmatprep.subr.mxu0 0.0
  %1368 = vmatpush1.xpose.msra.mxu0 %v1359
  %1369 = vmatprep.subr.mxu0 0.0
  %1370 = vmatpush1.xpose.msra.mxu0 %v1361
  %1371 = vmatprep.subr.mxu0 0.0
  %1372 = vmatpush1.xpose.msra.mxu0 0.0
  %1373 = vmatprep.subr.mxu0 0.0
  %1374 = vmatpush1.xpose.msra.mxu0 0.0
  %1375 = vmatprep.subr.mxu0 0.0
  %1376 = vmatpush1.xpose.msra.mxu0 0.0
  %1377 = vmatprep.subr.mxu0 0.0
  %1378 = vmatpush1.xpose.msra.mxu0 0.0
  %1379 = vmatprep.subr.mxu0 0.0
  %1380 = vmatpush1.xpose.msra.mxu0 0.0
  %1381 = vmatprep.subr.mxu0 0.0
  %1382 = vmatpush1.xpose.msra.mxu0 0.0
  %1383 = vmatprep.subr.mxu0 0.0
  %1384 = vmatpush1.xpose.msra.mxu0 0.0
  %1385 = vmatprep.subr.mxu0 0.0
  %1386 = vmatpush1.xpose.msra.mxu0 0.0
  %1387 = vmatprep.subr.mxu0 0.0
  %1388 = vmatpush1.xpose.msra.mxu0 0.0
  %1389 = vmatprep.subr.mxu0 0.0
  %1390 = vmatpush1.xpose.msra.mxu0 0.0
  %1391 = vmatprep.subr.mxu0 0.0
  %1392 = vmatpush1.xpose.msra.mxu0 0.0
  %1393 = vmatprep.subr.mxu0 0.0
  %1394 = vmatpush1.xpose.msra.mxu0 0.0
  %1395 = vmatprep.subr.mxu0 0.0
  %1396 = vmatpush1.xpose.msra.mxu0 0.0
  %1397 = vmatprep.subr.mxu0 0.0
  %1398 = vmatpush1.xpose.msra.mxu0 0.0
  %1399 = vmatprep.subr.mxu0 0.0
  %1400 = vmatpush1.xpose.msra.mxu0 0.0
  %1401 = vmatprep.subr.mxu0 0.0
  %1402 = vmatpush1.xpose.msra.mxu0 0.0
  %1403 = vmatprep.subr.mxu0 0.0
  %1404 = vmatpush1.xpose.msra.mxu0 0.0
  %1405 = vmatprep.subr.mxu0 0.0
  %1406 = vmatpush1.xpose.msra.mxu0 0.0
  %1407 = vmatprep.subr.mxu0 0.0
  %1408 = vmatpush1.xpose.msra.mxu0 0.0
  %1409 = vmatprep.subr.mxu0 0.0
  %1410 = vmatpush1.xpose.msra.mxu0 0.0
  %1411 = vmatprep.subr.mxu0 0.0
  %1412 = vmatpush1.xpose.msra.mxu0 0.0
  %1413 = vmatprep.subr.mxu0 0.0
  %1414 = vmatpush1.xpose.msra.mxu0 0.0
  %1415 = vmatprep.subr.mxu0 0.0
  %1416 = vmatpush1.xpose.msra.mxu0 0.0
  %1417 = vmatprep.subr.mxu0 0.0
  %1418 = vmatpush1.xpose.msra.mxu0 0.0
  %1419 = vmatprep.subr.mxu0 0.0
  %1420 = vmatpush1.xpose.msra.mxu0 0.0
  %1421 = vmatprep.subr.mxu0 0.0
  %1422 = vmatpush1.xpose.msra.mxu0 0.0
  %1423 = vmatprep.subr.mxu0 0.0
  %1424 = vmatpush1.xpose.msra.mxu0 0.0
  %1425 = vmatprep.subr.mxu0 0.0
  %1426 = vmatpush1.xpose.msra.mxu0 0.0
  %1427 = vmatprep.mubr.f32.mxu0 0.0
  %1428 = vmatmul.mubr.f32.gmra.mrb[0].mxu0 %v1347
  %v1429 = vpop.f32.mrb[0].mxu0
  %v1430 = vadd.f32 0.0, %v1429
  %v1431 = vpop.f32.mrb[0].mxu0
  %1432 = vmatprep.mubr.f32.mxu0 0.0
  %1433 = vmatmul.mubr.f32.gmra.mrb[0].mxu0 %v1349
  %v1434 = vpop.f32.mrb[0].mxu0
  %v1435 = vadd.f32 0.0, %v1434
  %v1436 = vpop.f32.mrb[0].mxu0
  %1437 = vmatprep.mubr.f32.mxu0 0.0
  %1438 = vmatmul.mubr.f32.gmra.mrb[0].mxu0 %v1351
  %v1439 = vpop.f32.mrb[0].mxu0
  %v1440 = vadd.f32 0.0, %v1439
  %v1441 = vpop.f32.mrb[0].mxu0
  %1442 = vmatprep.mubr.f32.mxu0 0.0
  %1443 = vmatmul.mubr.f32.gmra.mrb[0].mxu0 %v1353
  %v1444 = vpop.f32.mrb[0].mxu0
  %v1445 = vadd.f32 0.0, %v1444
  %v1446 = vpop.f32.mrb[0].mxu0
  %1447 = vdwg.mxu0
  %v1448 = vmul.f32 %v1430, 0.125
  %v1449 = vmul.f32 %v1435, 0.125
  %v1450 = vmul.f32 %v1440, 0.125
  %v1451 = vmul.f32 %v1445, 0.125
  %v1452 = vadd.f32 %v1448, %v386
  %v1453 = vadd.f32 %v1449, %v387
  %v1454 = vadd.f32 %v1450, %v388
  %v1455 = vadd.f32 %v1451, %v389
  %v1456 = vsel %vm181, %v1452, -inf
  %1457 = vmax.xlane.f32.xlu0 %v1456
  %v1458 = vpop.xlane.xlu0 %1457
  %v1459 = vsel %vm181, %v1453, -inf
  %1460 = vmax.xlane.f32.xlu0 %v1459
  %v1461 = vpop.xlane.xlu0 %1460
  %v1462 = vsel %vm181, %v1454, -inf
  %1463 = vmax.xlane.f32.xlu0 %v1462
  %v1464 = vpop.xlane.xlu0 %1463
  %v1465 = vsel %vm181, %v1455, -inf
  %1466 = vmax.xlane.f32.xlu0 %v1465
  %v1467 = vpop.xlane.xlu0 %1466
  %v1468 = vsub.f32 %v1452, %v1458
  %v1469 = vsub.f32 %v1453, %v1461
  %v1470 = vsub.f32 %v1454, %v1464
  %v1471 = vsub.f32 %v1455, %v1467
  %v1472 = vmul.f32 %v1468, 1.442695
  %v1473 = vpow.pop %v1472
  %v1474 = vmul.f32 %v1469, 1.442695
  %v1475 = vpow.pop %v1474
  %v1476 = vmul.f32 %v1470, 1.442695
  %v1477 = vpow.pop %v1476
  %v1478 = vmul.f32 %v1471, 1.442695
  %v1479 = vpow.pop %v1478
  %v1480 = vsel %vm181, %v1473, 0.0
  %1481 = vadd.xlane.f32.xlu0 %v1480
  %v1482 = vpop.xlane.xlu0 %1481
  %v1483 = vsel %vm181, %v1475, 0.0
  %1484 = vadd.xlane.f32.xlu0 %v1483
  %v1485 = vpop.xlane.xlu0 %1484
  %v1486 = vsel %vm181, %v1477, 0.0
  %1487 = vadd.xlane.f32.xlu0 %v1486
  %v1488 = vpop.xlane.xlu0 %1487
  %v1489 = vsel %vm181, %v1479, 0.0
  %1490 = vadd.xlane.f32.xlu0 %v1489
  %v1491 = vpop.xlane.xlu0 %1490
  %v1492 = vrcp.pop %v1482
  %v1493 = vrcp.pop %v1485
  %v1494 = vrcp.pop %v1488
  %v1495 = vrcp.pop %v1491
  %v1496 = vmul.f32 %v1473, %v1492
  %v1497 = vmul.f32 %v1475, %v1493
  %v1498 = vmul.f32 %v1477, %v1494
  %v1499 = vmul.f32 %v1479, %v1495
  %1500 = vmatprep.subr.mxu0 0.0
  %1501 = vmatpush1.msra.mxu0 %v1496
  %1502 = vmatprep.subr.mxu0 0.0
  %1503 = vmatpush1.msra.mxu0 %v1497
  %1504 = vmatprep.subr.mxu0 0.0
  %1505 = vmatpush1.msra.mxu0 %v1498
  %1506 = vmatprep.subr.mxu0 0.0
  %1507 = vmatpush1.msra.mxu0 %v1499
  %1508 = vmatprep.subr.mxu0 0.0
  %1509 = vmatpush1.msra.mxu0 0.0
  %1510 = vmatprep.subr.mxu0 0.0
  %1511 = vmatpush1.msra.mxu0 0.0
  %1512 = vmatprep.subr.mxu0 0.0
  %1513 = vmatpush1.msra.mxu0 0.0
  %1514 = vmatprep.subr.mxu0 0.0
  %1515 = vmatpush1.msra.mxu0 0.0
  %1516 = vmatprep.subr.mxu0 0.0
  %1517 = vmatpush1.msra.mxu0 0.0
  %1518 = vmatprep.subr.mxu0 0.0
  %1519 = vmatpush1.msra.mxu0 0.0
  %1520 = vmatprep.subr.mxu0 0.0
  %1521 = vmatpush1.msra.mxu0 0.0
  %1522 = vmatprep.subr.mxu0 0.0
  %1523 = vmatpush1.msra.mxu0 0.0
  %1524 = vmatprep.subr.mxu0 0.0
  %1525 = vmatpush1.msra.mxu0 0.0
  %1526 = vmatprep.subr.mxu0 0.0
  %1527 = vmatpush1.msra.mxu0 0.0
  %1528 = vmatprep.subr.mxu0 0.0
  %1529 = vmatpush1.msra.mxu0 0.0
  %1530 = vmatprep.subr.mxu0 0.0
  %1531 = vmatpush1.msra.mxu0 0.0
  %1532 = vmatprep.subr.mxu0 0.0
  %1533 = vmatpush1.msra.mxu0 0.0
  %1534 = vmatprep.subr.mxu0 0.0
  %1535 = vmatpush1.msra.mxu0 0.0
  %1536 = vmatprep.subr.mxu0 0.0
  %1537 = vmatpush1.msra.mxu0 0.0
  %1538 = vmatprep.subr.mxu0 0.0
  %1539 = vmatpush1.msra.mxu0 0.0
  %1540 = vmatprep.subr.mxu0 0.0
  %1541 = vmatpush1.msra.mxu0 0.0
  %1542 = vmatprep.subr.mxu0 0.0
  %1543 = vmatpush1.msra.mxu0 0.0
  %1544 = vmatprep.subr.mxu0 0.0
  %1545 = vmatpush1.msra.mxu0 0.0
  %1546 = vmatprep.subr.mxu0 0.0
  %1547 = vmatpush1.msra.mxu0 0.0
  %1548 = vmatprep.subr.mxu0 0.0
  %1549 = vmatpush1.msra.mxu0 0.0
  %1550 = vmatprep.subr.mxu0 0.0
  %1551 = vmatpush1.msra.mxu0 0.0
  %1552 = vmatprep.subr.mxu0 0.0
  %1553 = vmatpush1.msra.mxu0 0.0
  %1554 = vmatprep.subr.mxu0 0.0
  %1555 = vmatpush1.msra.mxu0 0.0
  %1556 = vmatprep.subr.mxu0 0.0
  %1557 = vmatpush1.msra.mxu0 0.0
  %1558 = vmatprep.subr.mxu0 0.0
  %1559 = vmatpush1.msra.mxu0 0.0
  %1560 = vmatprep.subr.mxu0 0.0
  %1561 = vmatpush1.msra.mxu0 0.0
  %1562 = vmatprep.subr.mxu0 0.0
  %1563 = vmatpush1.msra.mxu0 0.0
  %1564 = vmatprep.mubr.f32.mxu0 0.0
  %1565 = vmatmul.mubr.f32.gmra.mrb[0].mxu0 %v554
  %v1566 = vpop.f32.mrb[0].mxu0
  %v1567 = vadd.f32 0.0, %v1566
  %v1568 = vpop.f32.mrb[0].mxu0
  %1569 = vdwg.mxu0
  %1574 = vrot.lane.b32.xlu0 %v277, 64
  %v1575 = vpop.permute.xlu0 %1574
  %1576 = vrot.lane.b32.xlu0 %v281, 64
  %v1577 = vpop.permute.xlu0 %1576
  %1578 = vrot.lane.b32.xlu0 %v287, 64
  %v1579 = vpop.permute.xlu0 %1578
  %1580 = vrot.lane.b32.xlu0 %v291, 64
  %v1581 = vpop.permute.xlu0 %1580
  %v1587 = vsel %vm181, %v1567, 0
  %1589 = vmatprep.subr.mxu0 0.0
  %1590 = vmatpush1.msra.mxu0 %v1575
  %1591 = vmatprep.subr.mxu0 0.0
  %1592 = vmatpush1.msra.mxu0 %v1577
  %1593 = vmatprep.subr.mxu0 0.0
  %1594 = vmatpush1.msra.mxu0 %v1579
  %1595 = vmatprep.subr.mxu0 0.0
  %1596 = vmatpush1.msra.mxu0 %v1581
  %1597 = vmatprep.subr.mxu0 0.0
  %1598 = vmatpush1.msra.mxu0 0.0
  %1599 = vmatprep.subr.mxu0 0.0
  %1600 = vmatpush1.msra.mxu0 0.0
  %1601 = vmatprep.subr.mxu0 0.0
  %1602 = vmatpush1.msra.mxu0 0.0
  %1603 = vmatprep.subr.mxu0 0.0
  %1604 = vmatpush1.msra.mxu0 0.0
  %1605 = vmatprep.subr.mxu0 0.0
  %1606 = vmatpush1.msra.mxu0 0.0
  %1607 = vmatprep.subr.mxu0 0.0
  %1608 = vmatpush1.msra.mxu0 0.0
  %1609 = vmatprep.subr.mxu0 0.0
  %1610 = vmatpush1.msra.mxu0 0.0
  %1611 = vmatprep.subr.mxu0 0.0
  %1612 = vmatpush1.msra.mxu0 0.0
  %1613 = vmatprep.subr.mxu0 0.0
  %1614 = vmatpush1.msra.mxu0 0.0
  %1615 = vmatprep.subr.mxu0 0.0
  %1616 = vmatpush1.msra.mxu0 0.0
  %1617 = vmatprep.subr.mxu0 0.0
  %1618 = vmatpush1.msra.mxu0 0.0
  %1619 = vmatprep.subr.mxu0 0.0
  %1620 = vmatpush1.msra.mxu0 0.0
  %1621 = vmatprep.subr.mxu0 0.0
  %1622 = vmatpush1.msra.mxu0 0.0
  %1623 = vmatprep.subr.mxu0 0.0
  %1624 = vmatpush1.msra.mxu0 0.0
  %1625 = vmatprep.subr.mxu0 0.0
  %1626 = vmatpush1.msra.mxu0 0.0
  %1627 = vmatprep.subr.mxu0 0.0
  %1628 = vmatpush1.msra.mxu0 0.0
  %1629 = vmatprep.subr.mxu0 0.0
  %1630 = vmatpush1.msra.mxu0 0.0
  %1631 = vmatprep.subr.mxu0 0.0
  %1632 = vmatpush1.msra.mxu0 0.0
  %1633 = vmatprep.subr.mxu0 0.0
  %1634 = vmatpush1.msra.mxu0 0.0
  %1635 = vmatprep.subr.mxu0 0.0
  %1636 = vmatpush1.msra.mxu0 0.0
  %1637 = vmatprep.subr.mxu0 0.0
  %1638 = vmatpush1.msra.mxu0 0.0
  %1639 = vmatprep.subr.mxu0 0.0
  %1640 = vmatpush1.msra.mxu0 0.0
  %1641 = vmatprep.subr.mxu0 0.0
  %1642 = vmatpush1.msra.mxu0 0.0
  %1643 = vmatprep.subr.mxu0 0.0
  %1644 = vmatpush1.msra.mxu0 0.0
  %1645 = vmatprep.subr.mxu0 0.0
  %1646 = vmatpush1.msra.mxu0 0.0
  %1647 = vmatprep.subr.mxu0 0.0
  %1648 = vmatpush1.msra.mxu0 0.0
  %1649 = vmatprep.subr.mxu0 0.0
  %1650 = vmatpush1.msra.mxu0 0.0
  %1651 = vmatprep.subr.mxu0 0.0
  %1652 = vmatpush1.msra.mxu0 0.0
  %1653 = vmatprep.mubr.f32.mxu0 0.0
  %1654 = vmatmul.mubr.f32.gmra.mrb[0].mxu0 %v1587
  %v1655 = vpop.f32.mrb[0].mxu0
  %v1656 = vadd.f32 0.0, %v1655
  %v1657 = vpop.f32.mrb[0].mxu0
  %1658 = vdwg.mxu0
  %v1660 = vsel %vm391, %v328, 0
  %v1663 = vsel %vm391, %v332, 0
  %v1666 = vsel %vm391, %v338, 0
  %v1669 = vsel %vm391, %v342, 0
  %v1672 = vsel %vm391, %v348, 0
  %v1675 = vsel %vm391, %v352, 0
  %v1678 = vsel %vm391, %v358, 0
  %v1681 = vsel %vm391, %v362, 0
  %1683 = vmatprep.subr.mxu0 0.0
  %1684 = vmatpush1.xpose.msra.mxu0 %v1672
  %1685 = vmatprep.subr.mxu0 0.0
  %1686 = vmatpush1.xpose.msra.mxu0 %v1675
  %1687 = vmatprep.subr.mxu0 0.0
  %1688 = vmatpush1.xpose.msra.mxu0 %v1678
  %1689 = vmatprep.subr.mxu0 0.0
  %1690 = vmatpush1.xpose.msra.mxu0 %v1681
  %1691 = vmatprep.subr.mxu0 0.0
  %1692 = vmatpush1.xpose.msra.mxu0 0.0
  %1693 = vmatprep.subr.mxu0 0.0
  %1694 = vmatpush1.xpose.msra.mxu0 0.0
  %1695 = vmatprep.subr.mxu0 0.0
  %1696 = vmatpush1.xpose.msra.mxu0 0.0
  %1697 = vmatprep.subr.mxu0 0.0
  %1698 = vmatpush1.xpose.msra.mxu0 0.0
  %1699 = vmatprep.subr.mxu0 0.0
  %1700 = vmatpush1.xpose.msra.mxu0 0.0
  %1701 = vmatprep.subr.mxu0 0.0
  %1702 = vmatpush1.xpose.msra.mxu0 0.0
  %1703 = vmatprep.subr.mxu0 0.0
  %1704 = vmatpush1.xpose.msra.mxu0 0.0
  %1705 = vmatprep.subr.mxu0 0.0
  %1706 = vmatpush1.xpose.msra.mxu0 0.0
  %1707 = vmatprep.subr.mxu0 0.0
  %1708 = vmatpush1.xpose.msra.mxu0 0.0
  %1709 = vmatprep.subr.mxu0 0.0
  %1710 = vmatpush1.xpose.msra.mxu0 0.0
  %1711 = vmatprep.subr.mxu0 0.0
  %1712 = vmatpush1.xpose.msra.mxu0 0.0
  %1713 = vmatprep.subr.mxu0 0.0
  %1714 = vmatpush1.xpose.msra.mxu0 0.0
  %1715 = vmatprep.subr.mxu0 0.0
  %1716 = vmatpush1.xpose.msra.mxu0 0.0
  %1717 = vmatprep.subr.mxu0 0.0
  %1718 = vmatpush1.xpose.msra.mxu0 0.0
  %1719 = vmatprep.subr.mxu0 0.0
  %1720 = vmatpush1.xpose.msra.mxu0 0.0
  %1721 = vmatprep.subr.mxu0 0.0
  %1722 = vmatpush1.xpose.msra.mxu0 0.0
  %1723 = vmatprep.subr.mxu0 0.0
  %1724 = vmatpush1.xpose.msra.mxu0 0.0
  %1725 = vmatprep.subr.mxu0 0.0
  %1726 = vmatpush1.xpose.msra.mxu0 0.0
  %1727 = vmatprep.subr.mxu0 0.0
  %1728 = vmatpush1.xpose.msra.mxu0 0.0
  %1729 = vmatprep.subr.mxu0 0.0
  %1730 = vmatpush1.xpose.msra.mxu0 0.0
  %1731 = vmatprep.subr.mxu0 0.0
  %1732 = vmatpush1.xpose.msra.mxu0 0.0
  %1733 = vmatprep.subr.mxu0 0.0
  %1734 = vmatpush1.xpose.msra.mxu0 0.0
  %1735 = vmatprep.subr.mxu0 0.0
  %1736 = vmatpush1.xpose.msra.mxu0 0.0
  %1737 = vmatprep.subr.mxu0 0.0
  %1738 = vmatpush1.xpose.msra.mxu0 0.0
  %1739 = vmatprep.subr.mxu0 0.0
  %1740 = vmatpush1.xpose.msra.mxu0 0.0
  %1741 = vmatprep.subr.mxu0 0.0
  %1742 = vmatpush1.xpose.msra.mxu0 0.0
  %1743 = vmatprep.subr.mxu0 0.0
  %1744 = vmatpush1.xpose.msra.mxu0 0.0
  %1745 = vmatprep.subr.mxu0 0.0
  %1746 = vmatpush1.xpose.msra.mxu0 0.0
  %1747 = vmatprep.mubr.f32.mxu0 0.0
  %1748 = vmatmul.mubr.f32.gmra.mrb[0].mxu0 %v1660
  %v1749 = vpop.f32.mrb[0].mxu0
  %v1750 = vadd.f32 0.0, %v1749
  %v1751 = vpop.f32.mrb[0].mxu0
  %1752 = vmatprep.mubr.f32.mxu0 0.0
  %1753 = vmatmul.mubr.f32.gmra.mrb[0].mxu0 %v1663
  %v1754 = vpop.f32.mrb[0].mxu0
  %v1755 = vadd.f32 0.0, %v1754
  %v1756 = vpop.f32.mrb[0].mxu0
  %1757 = vmatprep.mubr.f32.mxu0 0.0
  %1758 = vmatmul.mubr.f32.gmra.mrb[0].mxu0 %v1666
  %v1759 = vpop.f32.mrb[0].mxu0
  %v1760 = vadd.f32 0.0, %v1759
  %v1761 = vpop.f32.mrb[0].mxu0
  %1762 = vmatprep.mubr.f32.mxu0 0.0
  %1763 = vmatmul.mubr.f32.gmra.mrb[0].mxu0 %v1669
  %v1764 = vpop.f32.mrb[0].mxu0
  %v1765 = vadd.f32 0.0, %v1764
  %v1766 = vpop.f32.mrb[0].mxu0
  %1767 = vdwg.mxu0
  %v1768 = vmul.f32 %v1750, 0.125
  %v1769 = vmul.f32 %v1755, 0.125
  %v1770 = vmul.f32 %v1760, 0.125
  %v1771 = vmul.f32 %v1765, 0.125
  %v1772 = vadd.f32 %v1768, %v386
  %v1773 = vadd.f32 %v1769, %v387
  %v1774 = vadd.f32 %v1770, %v388
  %v1775 = vadd.f32 %v1771, %v389
  %v1776 = vsel %vm181, %v1772, -inf
  %1777 = vmax.xlane.f32.xlu0 %v1776
  %v1778 = vpop.xlane.xlu0 %1777
  %v1779 = vsel %vm181, %v1773, -inf
  %1780 = vmax.xlane.f32.xlu0 %v1779
  %v1781 = vpop.xlane.xlu0 %1780
  %v1782 = vsel %vm181, %v1774, -inf
  %1783 = vmax.xlane.f32.xlu0 %v1782
  %v1784 = vpop.xlane.xlu0 %1783
  %v1785 = vsel %vm181, %v1775, -inf
  %1786 = vmax.xlane.f32.xlu0 %v1785
  %v1787 = vpop.xlane.xlu0 %1786
  %v1788 = vsub.f32 %v1772, %v1778
  %v1789 = vsub.f32 %v1773, %v1781
  %v1790 = vsub.f32 %v1774, %v1784
  %v1791 = vsub.f32 %v1775, %v1787
  %v1792 = vmul.f32 %v1788, 1.442695
  %v1793 = vpow.pop %v1792
  %v1794 = vmul.f32 %v1789, 1.442695
  %v1795 = vpow.pop %v1794
  %v1796 = vmul.f32 %v1790, 1.442695
  %v1797 = vpow.pop %v1796
  %v1798 = vmul.f32 %v1791, 1.442695
  %v1799 = vpow.pop %v1798
  %v1800 = vsel %vm181, %v1793, 0.0
  %1801 = vadd.xlane.f32.xlu0 %v1800
  %v1802 = vpop.xlane.xlu0 %1801
  %v1803 = vsel %vm181, %v1795, 0.0
  %1804 = vadd.xlane.f32.xlu0 %v1803
  %v1805 = vpop.xlane.xlu0 %1804
  %v1806 = vsel %vm181, %v1797, 0.0
  %1807 = vadd.xlane.f32.xlu0 %v1806
  %v1808 = vpop.xlane.xlu0 %1807
  %v1809 = vsel %vm181, %v1799, 0.0
  %1810 = vadd.xlane.f32.xlu0 %v1809
  %v1811 = vpop.xlane.xlu0 %1810
  %v1812 = vrcp.pop %v1802
  %v1813 = vrcp.pop %v1805
  %v1814 = vrcp.pop %v1808
  %v1815 = vrcp.pop %v1811
  %v1816 = vmul.f32 %v1793, %v1812
  %v1817 = vmul.f32 %v1795, %v1813
  %v1818 = vmul.f32 %v1797, %v1814
  %v1819 = vmul.f32 %v1799, %v1815
  %1820 = vmatprep.subr.mxu0 0.0
  %1821 = vmatpush1.msra.mxu0 %v1816
  %1822 = vmatprep.subr.mxu0 0.0
  %1823 = vmatpush1.msra.mxu0 %v1817
  %1824 = vmatprep.subr.mxu0 0.0
  %1825 = vmatpush1.msra.mxu0 %v1818
  %1826 = vmatprep.subr.mxu0 0.0
  %1827 = vmatpush1.msra.mxu0 %v1819
  %1828 = vmatprep.subr.mxu0 0.0
  %1829 = vmatpush1.msra.mxu0 0.0
  %1830 = vmatprep.subr.mxu0 0.0
  %1831 = vmatpush1.msra.mxu0 0.0
  %1832 = vmatprep.subr.mxu0 0.0
  %1833 = vmatpush1.msra.mxu0 0.0
  %1834 = vmatprep.subr.mxu0 0.0
  %1835 = vmatpush1.msra.mxu0 0.0
  %1836 = vmatprep.subr.mxu0 0.0
  %1837 = vmatpush1.msra.mxu0 0.0
  %1838 = vmatprep.subr.mxu0 0.0
  %1839 = vmatpush1.msra.mxu0 0.0
  %1840 = vmatprep.subr.mxu0 0.0
  %1841 = vmatpush1.msra.mxu0 0.0
  %1842 = vmatprep.subr.mxu0 0.0
  %1843 = vmatpush1.msra.mxu0 0.0
  %1844 = vmatprep.subr.mxu0 0.0
  %1845 = vmatpush1.msra.mxu0 0.0
  %1846 = vmatprep.subr.mxu0 0.0
  %1847 = vmatpush1.msra.mxu0 0.0
  %1848 = vmatprep.subr.mxu0 0.0
  %1849 = vmatpush1.msra.mxu0 0.0
  %1850 = vmatprep.subr.mxu0 0.0
  %1851 = vmatpush1.msra.mxu0 0.0
  %1852 = vmatprep.subr.mxu0 0.0
  %1853 = vmatpush1.msra.mxu0 0.0
  %1854 = vmatprep.subr.mxu0 0.0
  %1855 = vmatpush1.msra.mxu0 0.0
  %1856 = vmatprep.subr.mxu0 0.0
  %1857 = vmatpush1.msra.mxu0 0.0
  %1858 = vmatprep.subr.mxu0 0.0
  %1859 = vmatpush1.msra.mxu0 0.0
  %1860 = vmatprep.subr.mxu0 0.0
  %1861 = vmatpush1.msra.mxu0 0.0
  %1862 = vmatprep.subr.mxu0 0.0
  %1863 = vmatpush1.msra.mxu0 0.0
  %1864 = vmatprep.subr.mxu0 0.0
  %1865 = vmatpush1.msra.mxu0 0.0
  %1866 = vmatprep.subr.mxu0 0.0
  %1867 = vmatpush1.msra.mxu0 0.0
  %1868 = vmatprep.subr.mxu0 0.0
  %1869 = vmatpush1.msra.mxu0 0.0
  %1870 = vmatprep.subr.mxu0 0.0
  %1871 = vmatpush1.msra.mxu0 0.0
  %1872 = vmatprep.subr.mxu0 0.0
  %1873 = vmatpush1.msra.mxu0 0.0
  %1874 = vmatprep.subr.mxu0 0.0
  %1875 = vmatpush1.msra.mxu0 0.0
  %1876 = vmatprep.subr.mxu0 0.0
  %1877 = vmatpush1.msra.mxu0 0.0
  %1878 = vmatprep.subr.mxu0 0.0
  %1879 = vmatpush1.msra.mxu0 0.0
  %1880 = vmatprep.subr.mxu0 0.0
  %1881 = vmatpush1.msra.mxu0 0.0
  %1882 = vmatprep.subr.mxu0 0.0
  %1883 = vmatpush1.msra.mxu0 0.0
  %1884 = vmatprep.mubr.f32.mxu0 0.0
  %1885 = vmatmul.mubr.f32.gmra.mrb[0].mxu0 %v554
  %v1886 = vpop.f32.mrb[0].mxu0
  %v1887 = vadd.f32 0.0, %v1886
  %v1888 = vpop.f32.mrb[0].mxu0
  %1889 = vdwg.mxu0
  %v1891 = vsel %vm181, %v1887, 0
  %1893 = vmatprep.subr.mxu0 0.0
  %1894 = vmatpush1.msra.mxu0 %v368
  %1895 = vmatprep.subr.mxu0 0.0
  %1896 = vmatpush1.msra.mxu0 %v372
  %1897 = vmatprep.subr.mxu0 0.0
  %1898 = vmatpush1.msra.mxu0 %v378
  %1899 = vmatprep.subr.mxu0 0.0
  %1900 = vmatpush1.msra.mxu0 %v382
  %1901 = vmatprep.subr.mxu0 0.0
  %1902 = vmatpush1.msra.mxu0 0.0
  %1903 = vmatprep.subr.mxu0 0.0
  %1904 = vmatpush1.msra.mxu0 0.0
  %1905 = vmatprep.subr.mxu0 0.0
  %1906 = vmatpush1.msra.mxu0 0.0
  %1907 = vmatprep.subr.mxu0 0.0
  %1908 = vmatpush1.msra.mxu0 0.0
  %1909 = vmatprep.subr.mxu0 0.0
  %1910 = vmatpush1.msra.mxu0 0.0
  %1911 = vmatprep.subr.mxu0 0.0
  %1912 = vmatpush1.msra.mxu0 0.0
  %1913 = vmatprep.subr.mxu0 0.0
  %1914 = vmatpush1.msra.mxu0 0.0
  %1915 = vmatprep.subr.mxu0 0.0
  %1916 = vmatpush1.msra.mxu0 0.0
  %1917 = vmatprep.subr.mxu0 0.0
  %1918 = vmatpush1.msra.mxu0 0.0
  %1919 = vmatprep.subr.mxu0 0.0
  %1920 = vmatpush1.msra.mxu0 0.0
  %1921 = vmatprep.subr.mxu0 0.0
  %1922 = vmatpush1.msra.mxu0 0.0
  %1923 = vmatprep.subr.mxu0 0.0
  %1924 = vmatpush1.msra.mxu0 0.0
  %1925 = vmatprep.subr.mxu0 0.0
  %1926 = vmatpush1.msra.mxu0 0.0
  %1927 = vmatprep.subr.mxu0 0.0
  %1928 = vmatpush1.msra.mxu0 0.0
  %1929 = vmatprep.subr.mxu0 0.0
  %1930 = vmatpush1.msra.mxu0 0.0
  %1931 = vmatprep.subr.mxu0 0.0
  %1932 = vmatpush1.msra.mxu0 0.0
  %1933 = vmatprep.subr.mxu0 0.0
  %1934 = vmatpush1.msra.mxu0 0.0
  %1935 = vmatprep.subr.mxu0 0.0
  %1936 = vmatpush1.msra.mxu0 0.0
  %1937 = vmatprep.subr.mxu0 0.0
  %1938 = vmatpush1.msra.mxu0 0.0
  %1939 = vmatprep.subr.mxu0 0.0
  %1940 = vmatpush1.msra.mxu0 0.0
  %1941 = vmatprep.subr.mxu0 0.0
  %1942 = vmatpush1.msra.mxu0 0.0
  %1943 = vmatprep.subr.mxu0 0.0
  %1944 = vmatpush1.msra.mxu0 0.0
  %1945 = vmatprep.subr.mxu0 0.0
  %1946 = vmatpush1.msra.mxu0 0.0
  %1947 = vmatprep.subr.mxu0 0.0
  %1948 = vmatpush1.msra.mxu0 0.0
  %1949 = vmatprep.subr.mxu0 0.0
  %1950 = vmatpush1.msra.mxu0 0.0
  %1951 = vmatprep.subr.mxu0 0.0
  %1952 = vmatpush1.msra.mxu0 0.0
  %1953 = vmatprep.subr.mxu0 0.0
  %1954 = vmatpush1.msra.mxu0 0.0
  %1955 = vmatprep.subr.mxu0 0.0
  %1956 = vmatpush1.msra.mxu0 0.0
  %1957 = vmatprep.mubr.f32.mxu0 0.0
  %1958 = vmatmul.mubr.f32.gmra.mrb[0].mxu0 %v1891
  %v1959 = vpop.f32.mrb[0].mxu0
  %v1960 = vadd.f32 0.0, %v1959
  %v1961 = vpop.f32.mrb[0].mxu0
  %1962 = vdwg.mxu0
  %1963 = vrot.lane.b32.xlu0 %v328, 64
  %v1964 = vpop.permute.xlu0 %1963
  %1965 = vrot.lane.b32.xlu0 %v332, 64
  %v1966 = vpop.permute.xlu0 %1965
  %1967 = vrot.lane.b32.xlu0 %v338, 64
  %v1968 = vpop.permute.xlu0 %1967
  %1969 = vrot.lane.b32.xlu0 %v342, 64
  %v1970 = vpop.permute.xlu0 %1969
  %1971 = vrot.lane.b32.xlu0 %v348, 64
  %v1972 = vpop.permute.xlu0 %1971
  %1973 = vrot.lane.b32.xlu0 %v352, 64
  %v1974 = vpop.permute.xlu0 %1973
  %1975 = vrot.lane.b32.xlu0 %v358, 64
  %v1976 = vpop.permute.xlu0 %1975
  %1977 = vrot.lane.b32.xlu0 %v362, 64
  %v1978 = vpop.permute.xlu0 %1977
  %v1979 = vsel %vm391, %v1964, 0
  %v1981 = vsel %vm391, %v1966, 0
  %v1983 = vsel %vm391, %v1968, 0
  %v1985 = vsel %vm391, %v1970, 0
  %v1987 = vsel %vm391, %v1972, 0
  %v1989 = vsel %vm391, %v1974, 0
  %v1991 = vsel %vm391, %v1976, 0
  %v1993 = vsel %vm391, %v1978, 0
  %1995 = vmatprep.subr.mxu0 0.0
  %1996 = vmatpush1.xpose.msra.mxu0 %v1987
  %1997 = vmatprep.subr.mxu0 0.0
  %1998 = vmatpush1.xpose.msra.mxu0 %v1989
  %1999 = vmatprep.subr.mxu0 0.0
  %2000 = vmatpush1.xpose.msra.mxu0 %v1991
  %2001 = vmatprep.subr.mxu0 0.0
  %2002 = vmatpush1.xpose.msra.mxu0 %v1993
  %2003 = vmatprep.subr.mxu0 0.0
  %2004 = vmatpush1.xpose.msra.mxu0 0.0
  %2005 = vmatprep.subr.mxu0 0.0
  %2006 = vmatpush1.xpose.msra.mxu0 0.0
  %2007 = vmatprep.subr.mxu0 0.0
  %2008 = vmatpush1.xpose.msra.mxu0 0.0
  %2009 = vmatprep.subr.mxu0 0.0
  %2010 = vmatpush1.xpose.msra.mxu0 0.0
  %2011 = vmatprep.subr.mxu0 0.0
  %2012 = vmatpush1.xpose.msra.mxu0 0.0
  %2013 = vmatprep.subr.mxu0 0.0
  %2014 = vmatpush1.xpose.msra.mxu0 0.0
  %2015 = vmatprep.subr.mxu0 0.0
  %2016 = vmatpush1.xpose.msra.mxu0 0.0
  %2017 = vmatprep.subr.mxu0 0.0
  %2018 = vmatpush1.xpose.msra.mxu0 0.0
  %2019 = vmatprep.subr.mxu0 0.0
  %2020 = vmatpush1.xpose.msra.mxu0 0.0
  %2021 = vmatprep.subr.mxu0 0.0
  %2022 = vmatpush1.xpose.msra.mxu0 0.0
  %2023 = vmatprep.subr.mxu0 0.0
  %2024 = vmatpush1.xpose.msra.mxu0 0.0
  %2025 = vmatprep.subr.mxu0 0.0
  %2026 = vmatpush1.xpose.msra.mxu0 0.0
  %2027 = vmatprep.subr.mxu0 0.0
  %2028 = vmatpush1.xpose.msra.mxu0 0.0
  %2029 = vmatprep.subr.mxu0 0.0
  %2030 = vmatpush1.xpose.msra.mxu0 0.0
  %2031 = vmatprep.subr.mxu0 0.0
  %2032 = vmatpush1.xpose.msra.mxu0 0.0
  %2033 = vmatprep.subr.mxu0 0.0
  %2034 = vmatpush1.xpose.msra.mxu0 0.0
  %2035 = vmatprep.subr.mxu0 0.0
  %2036 = vmatpush1.xpose.msra.mxu0 0.0
  %2037 = vmatprep.subr.mxu0 0.0
  %2038 = vmatpush1.xpose.msra.mxu0 0.0
  %2039 = vmatprep.subr.mxu0 0.0
  %2040 = vmatpush1.xpose.msra.mxu0 0.0
  %2041 = vmatprep.subr.mxu0 0.0
  %2042 = vmatpush1.xpose.msra.mxu0 0.0
  %2043 = vmatprep.subr.mxu0 0.0
  %2044 = vmatpush1.xpose.msra.mxu0 0.0
  %2045 = vmatprep.subr.mxu0 0.0
  %2046 = vmatpush1.xpose.msra.mxu0 0.0
  %2047 = vmatprep.subr.mxu0 0.0
  %2048 = vmatpush1.xpose.msra.mxu0 0.0
  %2049 = vmatprep.subr.mxu0 0.0
  %2050 = vmatpush1.xpose.msra.mxu0 0.0
  %2051 = vmatprep.subr.mxu0 0.0
  %2052 = vmatpush1.xpose.msra.mxu0 0.0
  %2053 = vmatprep.subr.mxu0 0.0
  %2054 = vmatpush1.xpose.msra.mxu0 0.0
  %2055 = vmatprep.subr.mxu0 0.0
  %2056 = vmatpush1.xpose.msra.mxu0 0.0
  %2057 = vmatprep.subr.mxu0 0.0
  %2058 = vmatpush1.xpose.msra.mxu0 0.0
  %2059 = vmatprep.mubr.f32.mxu0 0.0
  %2060 = vmatmul.mubr.f32.gmra.mrb[0].mxu0 %v1979
  %v2061 = vpop.f32.mrb[0].mxu0
  %v2062 = vadd.f32 0.0, %v2061
  %v2063 = vpop.f32.mrb[0].mxu0
  %2064 = vmatprep.mubr.f32.mxu0 0.0
  %2065 = vmatmul.mubr.f32.gmra.mrb[0].mxu0 %v1981
  %v2066 = vpop.f32.mrb[0].mxu0
  %v2067 = vadd.f32 0.0, %v2066
  %v2068 = vpop.f32.mrb[0].mxu0
  %2069 = vmatprep.mubr.f32.mxu0 0.0
  %2070 = vmatmul.mubr.f32.gmra.mrb[0].mxu0 %v1983
  %v2071 = vpop.f32.mrb[0].mxu0
  %v2072 = vadd.f32 0.0, %v2071
  %v2073 = vpop.f32.mrb[0].mxu0
  %2074 = vmatprep.mubr.f32.mxu0 0.0
  %2075 = vmatmul.mubr.f32.gmra.mrb[0].mxu0 %v1985
  %v2076 = vpop.f32.mrb[0].mxu0
  %v2077 = vadd.f32 0.0, %v2076
  %v2078 = vpop.f32.mrb[0].mxu0
  %2079 = vdwg.mxu0
  %v2080 = vmul.f32 %v2062, 0.125
  %v2081 = vmul.f32 %v2067, 0.125
  %v2082 = vmul.f32 %v2072, 0.125
  %v2083 = vmul.f32 %v2077, 0.125
  %v2084 = vadd.f32 %v2080, %v386
  %v2085 = vadd.f32 %v2081, %v387
  %v2086 = vadd.f32 %v2082, %v388
  %v2087 = vadd.f32 %v2083, %v389
  %v2088 = vsel %vm181, %v2084, -inf
  %2089 = vmax.xlane.f32.xlu0 %v2088
  %v2090 = vpop.xlane.xlu0 %2089
  %v2091 = vsel %vm181, %v2085, -inf
  %2092 = vmax.xlane.f32.xlu0 %v2091
  %v2093 = vpop.xlane.xlu0 %2092
  %v2094 = vsel %vm181, %v2086, -inf
  %2095 = vmax.xlane.f32.xlu0 %v2094
  %v2096 = vpop.xlane.xlu0 %2095
  %v2097 = vsel %vm181, %v2087, -inf
  %2098 = vmax.xlane.f32.xlu0 %v2097
  %v2099 = vpop.xlane.xlu0 %2098
  %v2100 = vsub.f32 %v2084, %v2090
  %v2101 = vsub.f32 %v2085, %v2093
  %v2102 = vsub.f32 %v2086, %v2096
  %v2103 = vsub.f32 %v2087, %v2099
  %v2104 = vmul.f32 %v2100, 1.442695
  %v2105 = vpow.pop %v2104
  %v2106 = vmul.f32 %v2101, 1.442695
  %v2107 = vpow.pop %v2106
  %v2108 = vmul.f32 %v2102, 1.442695
  %v2109 = vpow.pop %v2108
  %v2110 = vmul.f32 %v2103, 1.442695
  %v2111 = vpow.pop %v2110
  %v2112 = vsel %vm181, %v2105, 0.0
  %2113 = vadd.xlane.f32.xlu0 %v2112
  %v2114 = vpop.xlane.xlu0 %2113
  %v2115 = vsel %vm181, %v2107, 0.0
  %2116 = vadd.xlane.f32.xlu0 %v2115
  %v2117 = vpop.xlane.xlu0 %2116
  %v2118 = vsel %vm181, %v2109, 0.0
  %2119 = vadd.xlane.f32.xlu0 %v2118
  %v2120 = vpop.xlane.xlu0 %2119
  %v2121 = vsel %vm181, %v2111, 0.0
  %2122 = vadd.xlane.f32.xlu0 %v2121
  %v2123 = vpop.xlane.xlu0 %2122
  %v2124 = vrcp.pop %v2114
  %v2125 = vrcp.pop %v2117
  %v2126 = vrcp.pop %v2120
  %v2127 = vrcp.pop %v2123
  %v2128 = vmul.f32 %v2105, %v2124
  %v2129 = vmul.f32 %v2107, %v2125
  %v2130 = vmul.f32 %v2109, %v2126
  %v2131 = vmul.f32 %v2111, %v2127
  %2132 = vmatprep.subr.mxu0 0.0
  %2133 = vmatpush1.msra.mxu0 %v2128
  %2134 = vmatprep.subr.mxu0 0.0
  %2135 = vmatpush1.msra.mxu0 %v2129
  %2136 = vmatprep.subr.mxu0 0.0
  %2137 = vmatpush1.msra.mxu0 %v2130
  %2138 = vmatprep.subr.mxu0 0.0
  %2139 = vmatpush1.msra.mxu0 %v2131
  %2140 = vmatprep.subr.mxu0 0.0
  %2141 = vmatpush1.msra.mxu0 0.0
  %2142 = vmatprep.subr.mxu0 0.0
  %2143 = vmatpush1.msra.mxu0 0.0
  %2144 = vmatprep.subr.mxu0 0.0
  %2145 = vmatpush1.msra.mxu0 0.0
  %2146 = vmatprep.subr.mxu0 0.0
  %2147 = vmatpush1.msra.mxu0 0.0
  %2148 = vmatprep.subr.mxu0 0.0
  %2149 = vmatpush1.msra.mxu0 0.0
  %2150 = vmatprep.subr.mxu0 0.0
  %2151 = vmatpush1.msra.mxu0 0.0
  %2152 = vmatprep.subr.mxu0 0.0
  %2153 = vmatpush1.msra.mxu0 0.0
  %2154 = vmatprep.subr.mxu0 0.0
  %2155 = vmatpush1.msra.mxu0 0.0
  %2156 = vmatprep.subr.mxu0 0.0
  %2157 = vmatpush1.msra.mxu0 0.0
  %2158 = vmatprep.subr.mxu0 0.0
  %2159 = vmatpush1.msra.mxu0 0.0
  %2160 = vmatprep.subr.mxu0 0.0
  %2161 = vmatpush1.msra.mxu0 0.0
  %2162 = vmatprep.subr.mxu0 0.0
  %2163 = vmatpush1.msra.mxu0 0.0
  %2164 = vmatprep.subr.mxu0 0.0
  %2165 = vmatpush1.msra.mxu0 0.0
  %2166 = vmatprep.subr.mxu0 0.0
  %2167 = vmatpush1.msra.mxu0 0.0
  %2168 = vmatprep.subr.mxu0 0.0
  %2169 = vmatpush1.msra.mxu0 0.0
  %2170 = vmatprep.subr.mxu0 0.0
  %2171 = vmatpush1.msra.mxu0 0.0
  %2172 = vmatprep.subr.mxu0 0.0
  %2173 = vmatpush1.msra.mxu0 0.0
  %2174 = vmatprep.subr.mxu0 0.0
  %2175 = vmatpush1.msra.mxu0 0.0
  %2176 = vmatprep.subr.mxu0 0.0
  %2177 = vmatpush1.msra.mxu0 0.0
  %2178 = vmatprep.subr.mxu0 0.0
  %2179 = vmatpush1.msra.mxu0 0.0
  %2180 = vmatprep.subr.mxu0 0.0
  %2181 = vmatpush1.msra.mxu0 0.0
  %2182 = vmatprep.subr.mxu0 0.0
  %2183 = vmatpush1.msra.mxu0 0.0
  %2184 = vmatprep.subr.mxu0 0.0
  %2185 = vmatpush1.msra.mxu0 0.0
  %2186 = vmatprep.subr.mxu0 0.0
  %2187 = vmatpush1.msra.mxu0 0.0
  %2188 = vmatprep.subr.mxu0 0.0
  %2189 = vmatpush1.msra.mxu0 0.0
  %2190 = vmatprep.subr.mxu0 0.0
  %2191 = vmatpush1.msra.mxu0 0.0
  %2192 = vmatprep.subr.mxu0 0.0
  %2193 = vmatpush1.msra.mxu0 0.0
  %2194 = vmatprep.subr.mxu0 0.0
  %2195 = vmatpush1.msra.mxu0 0.0
  %2196 = vmatprep.mubr.f32.mxu0 0.0
  %2197 = vmatmul.mubr.f32.gmra.mrb[0].mxu0 %v554
  %v2198 = vpop.f32.mrb[0].mxu0
  %v2199 = vadd.f32 0.0, %v2198
  %v2200 = vpop.f32.mrb[0].mxu0
  %2201 = vdwg.mxu0
  %2206 = vrot.lane.b32.xlu0 %v368, 64
  %v2207 = vpop.permute.xlu0 %2206
  %2208 = vrot.lane.b32.xlu0 %v372, 64
  %v2209 = vpop.permute.xlu0 %2208
  %2210 = vrot.lane.b32.xlu0 %v378, 64
  %v2211 = vpop.permute.xlu0 %2210
  %2212 = vrot.lane.b32.xlu0 %v382, 64
  %v2213 = vpop.permute.xlu0 %2212
  %v2219 = vsel %vm181, %v2199, 0
  %2221 = vmatprep.subr.mxu0 0.0
  %2222 = vmatpush1.msra.mxu0 %v2207
  %2223 = vmatprep.subr.mxu0 0.0
  %2224 = vmatpush1.msra.mxu0 %v2209
  %2225 = vmatprep.subr.mxu0 0.0
  %2226 = vmatpush1.msra.mxu0 %v2211
  %2227 = vmatprep.subr.mxu0 0.0
  %2228 = vmatpush1.msra.mxu0 %v2213
  %2229 = vmatprep.subr.mxu0 0.0
  %2230 = vmatpush1.msra.mxu0 0.0
  %2231 = vmatprep.subr.mxu0 0.0
  %2232 = vmatpush1.msra.mxu0 0.0
  %2233 = vmatprep.subr.mxu0 0.0
  %2234 = vmatpush1.msra.mxu0 0.0
  %2235 = vmatprep.subr.mxu0 0.0
  %2236 = vmatpush1.msra.mxu0 0.0
  %2237 = vmatprep.subr.mxu0 0.0
  %2238 = vmatpush1.msra.mxu0 0.0
  %2239 = vmatprep.subr.mxu0 0.0
  %2240 = vmatpush1.msra.mxu0 0.0
  %2241 = vmatprep.subr.mxu0 0.0
  %2242 = vmatpush1.msra.mxu0 0.0
  %2243 = vmatprep.subr.mxu0 0.0
  %2244 = vmatpush1.msra.mxu0 0.0
  %2245 = vmatprep.subr.mxu0 0.0
  %2246 = vmatpush1.msra.mxu0 0.0
  %2247 = vmatprep.subr.mxu0 0.0
  %2248 = vmatpush1.msra.mxu0 0.0
  %2249 = vmatprep.subr.mxu0 0.0
  %2250 = vmatpush1.msra.mxu0 0.0
  %2251 = vmatprep.subr.mxu0 0.0
  %2252 = vmatpush1.msra.mxu0 0.0
  %2253 = vmatprep.subr.mxu0 0.0
  %2254 = vmatpush1.msra.mxu0 0.0
  %2255 = vmatprep.subr.mxu0 0.0
  %2256 = vmatpush1.msra.mxu0 0.0
  %2257 = vmatprep.subr.mxu0 0.0
  %2258 = vmatpush1.msra.mxu0 0.0
  %2259 = vmatprep.subr.mxu0 0.0
  %2260 = vmatpush1.msra.mxu0 0.0
  %2261 = vmatprep.subr.mxu0 0.0
  %2262 = vmatpush1.msra.mxu0 0.0
  %2263 = vmatprep.subr.mxu0 0.0
  %2264 = vmatpush1.msra.mxu0 0.0
  %2265 = vmatprep.subr.mxu0 0.0
  %2266 = vmatpush1.msra.mxu0 0.0
  %2267 = vmatprep.subr.mxu0 0.0
  %2268 = vmatpush1.msra.mxu0 0.0
  %2269 = vmatprep.subr.mxu0 0.0
  %2270 = vmatpush1.msra.mxu0 0.0
  %2271 = vmatprep.subr.mxu0 0.0
  %2272 = vmatpush1.msra.mxu0 0.0
  %2273 = vmatprep.subr.mxu0 0.0
  %2274 = vmatpush1.msra.mxu0 0.0
  %2275 = vmatprep.subr.mxu0 0.0
  %2276 = vmatpush1.msra.mxu0 0.0
  %2277 = vmatprep.subr.mxu0 0.0
  %2278 = vmatpush1.msra.mxu0 0.0
  %2279 = vmatprep.subr.mxu0 0.0
  %2280 = vmatpush1.msra.mxu0 0.0
  %2281 = vmatprep.subr.mxu0 0.0
  %2282 = vmatpush1.msra.mxu0 0.0
  %2283 = vmatprep.subr.mxu0 0.0
  %2284 = vmatpush1.msra.mxu0 0.0
  %2285 = vmatprep.mubr.f32.mxu0 0.0
  %2286 = vmatmul.mubr.f32.gmra.mrb[0].mxu0 %v2219
  %v2287 = vpop.f32.mrb[0].mxu0
  %v2288 = vadd.f32 0.0, %v2287
  %v2289 = vpop.f32.mrb[0].mxu0
  %2290 = vdwg.mxu0
  %v2292 = vsel %vm391, %v330, 0
  %v2295 = vsel %vm391, %v334, 0
  %v2298 = vsel %vm391, %v340, 0
  %v2301 = vsel %vm391, %v344, 0
  %v2304 = vsel %vm391, %v350, 0
  %v2307 = vsel %vm391, %v354, 0
  %v2310 = vsel %vm391, %v360, 0
  %v2313 = vsel %vm391, %v364, 0
  %2315 = vmatprep.subr.mxu0 0.0
  %2316 = vmatpush1.xpose.msra.mxu0 %v2304
  %2317 = vmatprep.subr.mxu0 0.0
  %2318 = vmatpush1.xpose.msra.mxu0 %v2307
  %2319 = vmatprep.subr.mxu0 0.0
  %2320 = vmatpush1.xpose.msra.mxu0 %v2310
  %2321 = vmatprep.subr.mxu0 0.0
  %2322 = vmatpush1.xpose.msra.mxu0 %v2313
  %2323 = vmatprep.subr.mxu0 0.0
  %2324 = vmatpush1.xpose.msra.mxu0 0.0
  %2325 = vmatprep.subr.mxu0 0.0
  %2326 = vmatpush1.xpose.msra.mxu0 0.0
  %2327 = vmatprep.subr.mxu0 0.0
  %2328 = vmatpush1.xpose.msra.mxu0 0.0
  %2329 = vmatprep.subr.mxu0 0.0
  %2330 = vmatpush1.xpose.msra.mxu0 0.0
  %2331 = vmatprep.subr.mxu0 0.0
  %2332 = vmatpush1.xpose.msra.mxu0 0.0
  %2333 = vmatprep.subr.mxu0 0.0
  %2334 = vmatpush1.xpose.msra.mxu0 0.0
  %2335 = vmatprep.subr.mxu0 0.0
  %2336 = vmatpush1.xpose.msra.mxu0 0.0
  %2337 = vmatprep.subr.mxu0 0.0
  %2338 = vmatpush1.xpose.msra.mxu0 0.0
  %2339 = vmatprep.subr.mxu0 0.0
  %2340 = vmatpush1.xpose.msra.mxu0 0.0
  %2341 = vmatprep.subr.mxu0 0.0
  %2342 = vmatpush1.xpose.msra.mxu0 0.0
  %2343 = vmatprep.subr.mxu0 0.0
  %2344 = vmatpush1.xpose.msra.mxu0 0.0
  %2345 = vmatprep.subr.mxu0 0.0
  %2346 = vmatpush1.xpose.msra.mxu0 0.0
  %2347 = vmatprep.subr.mxu0 0.0
  %2348 = vmatpush1.xpose.msra.mxu0 0.0
  %2349 = vmatprep.subr.mxu0 0.0
  %2350 = vmatpush1.xpose.msra.mxu0 0.0
  %2351 = vmatprep.subr.mxu0 0.0
  %2352 = vmatpush1.xpose.msra.mxu0 0.0
  %2353 = vmatprep.subr.mxu0 0.0
  %2354 = vmatpush1.xpose.msra.mxu0 0.0
  %2355 = vmatprep.subr.mxu0 0.0
  %2356 = vmatpush1.xpose.msra.mxu0 0.0
  %2357 = vmatprep.subr.mxu0 0.0
  %2358 = vmatpush1.xpose.msra.mxu0 0.0
  %2359 = vmatprep.subr.mxu0 0.0
  %2360 = vmatpush1.xpose.msra.mxu0 0.0
  %2361 = vmatprep.subr.mxu0 0.0
  %2362 = vmatpush1.xpose.msra.mxu0 0.0
  %2363 = vmatprep.subr.mxu0 0.0
  %2364 = vmatpush1.xpose.msra.mxu0 0.0
  %2365 = vmatprep.subr.mxu0 0.0
  %2366 = vmatpush1.xpose.msra.mxu0 0.0
  %2367 = vmatprep.subr.mxu0 0.0
  %2368 = vmatpush1.xpose.msra.mxu0 0.0
  %2369 = vmatprep.subr.mxu0 0.0
  %2370 = vmatpush1.xpose.msra.mxu0 0.0
  %2371 = vmatprep.subr.mxu0 0.0
  %2372 = vmatpush1.xpose.msra.mxu0 0.0
  %2373 = vmatprep.subr.mxu0 0.0
  %2374 = vmatpush1.xpose.msra.mxu0 0.0
  %2375 = vmatprep.subr.mxu0 0.0
  %2376 = vmatpush1.xpose.msra.mxu0 0.0
  %2377 = vmatprep.subr.mxu0 0.0
  %2378 = vmatpush1.xpose.msra.mxu0 0.0
  %2379 = vmatprep.mubr.f32.mxu0 0.0
  %2380 = vmatmul.mubr.f32.gmra.mrb[0].mxu0 %v2292
  %v2381 = vpop.f32.mrb[0].mxu0
  %v2382 = vadd.f32 0.0, %v2381
  %v2383 = vpop.f32.mrb[0].mxu0
  %2384 = vmatprep.mubr.f32.mxu0 0.0
  %2385 = vmatmul.mubr.f32.gmra.mrb[0].mxu0 %v2295
  %v2386 = vpop.f32.mrb[0].mxu0
  %v2387 = vadd.f32 0.0, %v2386
  %v2388 = vpop.f32.mrb[0].mxu0
  %2389 = vmatprep.mubr.f32.mxu0 0.0
  %2390 = vmatmul.mubr.f32.gmra.mrb[0].mxu0 %v2298
  %v2391 = vpop.f32.mrb[0].mxu0
  %v2392 = vadd.f32 0.0, %v2391
  %v2393 = vpop.f32.mrb[0].mxu0
  %2394 = vmatprep.mubr.f32.mxu0 0.0
  %2395 = vmatmul.mubr.f32.gmra.mrb[0].mxu0 %v2301
  %v2396 = vpop.f32.mrb[0].mxu0
  %v2397 = vadd.f32 0.0, %v2396
  %v2398 = vpop.f32.mrb[0].mxu0
  %2399 = vdwg.mxu0
  %v2400 = vmul.f32 %v2382, 0.125
  %v2401 = vmul.f32 %v2387, 0.125
  %v2402 = vmul.f32 %v2392, 0.125
  %v2403 = vmul.f32 %v2397, 0.125
  %v2404 = vadd.f32 %v2400, %v386
  %v2405 = vadd.f32 %v2401, %v387
  %v2406 = vadd.f32 %v2402, %v388
  %v2407 = vadd.f32 %v2403, %v389
  %v2408 = vsel %vm181, %v2404, -inf
  %2409 = vmax.xlane.f32.xlu0 %v2408
  %v2410 = vpop.xlane.xlu0 %2409
  %v2411 = vsel %vm181, %v2405, -inf
  %2412 = vmax.xlane.f32.xlu0 %v2411
  %v2413 = vpop.xlane.xlu0 %2412
  %v2414 = vsel %vm181, %v2406, -inf
  %2415 = vmax.xlane.f32.xlu0 %v2414
  %v2416 = vpop.xlane.xlu0 %2415
  %v2417 = vsel %vm181, %v2407, -inf
  %2418 = vmax.xlane.f32.xlu0 %v2417
  %v2419 = vpop.xlane.xlu0 %2418
  %v2420 = vsub.f32 %v2404, %v2410
  %v2421 = vsub.f32 %v2405, %v2413
  %v2422 = vsub.f32 %v2406, %v2416
  %v2423 = vsub.f32 %v2407, %v2419
  %v2424 = vmul.f32 %v2420, 1.442695
  %v2425 = vpow.pop %v2424
  %v2426 = vmul.f32 %v2421, 1.442695
  %v2427 = vpow.pop %v2426
  %v2428 = vmul.f32 %v2422, 1.442695
  %v2429 = vpow.pop %v2428
  %v2430 = vmul.f32 %v2423, 1.442695
  %v2431 = vpow.pop %v2430
  %v2432 = vsel %vm181, %v2425, 0.0
  %2433 = vadd.xlane.f32.xlu0 %v2432
  %v2434 = vpop.xlane.xlu0 %2433
  %v2435 = vsel %vm181, %v2427, 0.0
  %2436 = vadd.xlane.f32.xlu0 %v2435
  %v2437 = vpop.xlane.xlu0 %2436
  %v2438 = vsel %vm181, %v2429, 0.0
  %2439 = vadd.xlane.f32.xlu0 %v2438
  %v2440 = vpop.xlane.xlu0 %2439
  %v2441 = vsel %vm181, %v2431, 0.0
  %2442 = vadd.xlane.f32.xlu0 %v2441
  %v2443 = vpop.xlane.xlu0 %2442
  %v2444 = vrcp.pop %v2434
  %v2445 = vrcp.pop %v2437
  %v2446 = vrcp.pop %v2440
  %v2447 = vrcp.pop %v2443
  %v2448 = vmul.f32 %v2425, %v2444
  %v2449 = vmul.f32 %v2427, %v2445
  %v2450 = vmul.f32 %v2429, %v2446
  %v2451 = vmul.f32 %v2431, %v2447
  %2452 = vmatprep.subr.mxu0 0.0
  %2453 = vmatpush1.msra.mxu0 %v2448
  %2454 = vmatprep.subr.mxu0 0.0
  %2455 = vmatpush1.msra.mxu0 %v2449
  %2456 = vmatprep.subr.mxu0 0.0
  %2457 = vmatpush1.msra.mxu0 %v2450
  %2458 = vmatprep.subr.mxu0 0.0
  %2459 = vmatpush1.msra.mxu0 %v2451
  %2460 = vmatprep.subr.mxu0 0.0
  %2461 = vmatpush1.msra.mxu0 0.0
  %2462 = vmatprep.subr.mxu0 0.0
  %2463 = vmatpush1.msra.mxu0 0.0
  %2464 = vmatprep.subr.mxu0 0.0
  %2465 = vmatpush1.msra.mxu0 0.0
  %2466 = vmatprep.subr.mxu0 0.0
  %2467 = vmatpush1.msra.mxu0 0.0
  %2468 = vmatprep.subr.mxu0 0.0
  %2469 = vmatpush1.msra.mxu0 0.0
  %2470 = vmatprep.subr.mxu0 0.0
  %2471 = vmatpush1.msra.mxu0 0.0
  %2472 = vmatprep.subr.mxu0 0.0
  %2473 = vmatpush1.msra.mxu0 0.0
  %2474 = vmatprep.subr.mxu0 0.0
  %2475 = vmatpush1.msra.mxu0 0.0
  %2476 = vmatprep.subr.mxu0 0.0
  %2477 = vmatpush1.msra.mxu0 0.0
  %2478 = vmatprep.subr.mxu0 0.0
  %2479 = vmatpush1.msra.mxu0 0.0
  %2480 = vmatprep.subr.mxu0 0.0
  %2481 = vmatpush1.msra.mxu0 0.0
  %2482 = vmatprep.subr.mxu0 0.0
  %2483 = vmatpush1.msra.mxu0 0.0
  %2484 = vmatprep.subr.mxu0 0.0
  %2485 = vmatpush1.msra.mxu0 0.0
  %2486 = vmatprep.subr.mxu0 0.0
  %2487 = vmatpush1.msra.mxu0 0.0
  %2488 = vmatprep.subr.mxu0 0.0
  %2489 = vmatpush1.msra.mxu0 0.0
  %2490 = vmatprep.subr.mxu0 0.0
  %2491 = vmatpush1.msra.mxu0 0.0
  %2492 = vmatprep.subr.mxu0 0.0
  %2493 = vmatpush1.msra.mxu0 0.0
  %2494 = vmatprep.subr.mxu0 0.0
  %2495 = vmatpush1.msra.mxu0 0.0
  %2496 = vmatprep.subr.mxu0 0.0
  %2497 = vmatpush1.msra.mxu0 0.0
  %2498 = vmatprep.subr.mxu0 0.0
  %2499 = vmatpush1.msra.mxu0 0.0
  %2500 = vmatprep.subr.mxu0 0.0
  %2501 = vmatpush1.msra.mxu0 0.0
  %2502 = vmatprep.subr.mxu0 0.0
  %2503 = vmatpush1.msra.mxu0 0.0
  %2504 = vmatprep.subr.mxu0 0.0
  %2505 = vmatpush1.msra.mxu0 0.0
  %2506 = vmatprep.subr.mxu0 0.0
  %2507 = vmatpush1.msra.mxu0 0.0
  %2508 = vmatprep.subr.mxu0 0.0
  %2509 = vmatpush1.msra.mxu0 0.0
  %2510 = vmatprep.subr.mxu0 0.0
  %2511 = vmatpush1.msra.mxu0 0.0
  %2512 = vmatprep.subr.mxu0 0.0
  %2513 = vmatpush1.msra.mxu0 0.0
  %2514 = vmatprep.subr.mxu0 0.0
  %2515 = vmatpush1.msra.mxu0 0.0
  %2516 = vmatprep.mubr.f32.mxu0 0.0
  %2517 = vmatmul.mubr.f32.gmra.mrb[0].mxu0 %v554
  %v2518 = vpop.f32.mrb[0].mxu0
  %v2519 = vadd.f32 0.0, %v2518
  %v2520 = vpop.f32.mrb[0].mxu0
  %2521 = vdwg.mxu0
  %v2523 = vsel %vm181, %v2519, 0
  %2525 = vmatprep.subr.mxu0 0.0
  %2526 = vmatpush1.msra.mxu0 %v370
  %2527 = vmatprep.subr.mxu0 0.0
  %2528 = vmatpush1.msra.mxu0 %v374
  %2529 = vmatprep.subr.mxu0 0.0
  %2530 = vmatpush1.msra.mxu0 %v380
  %2531 = vmatprep.subr.mxu0 0.0
  %2532 = vmatpush1.msra.mxu0 %v384
  %2533 = vmatprep.subr.mxu0 0.0
  %2534 = vmatpush1.msra.mxu0 0.0
  %2535 = vmatprep.subr.mxu0 0.0
  %2536 = vmatpush1.msra.mxu0 0.0
  %2537 = vmatprep.subr.mxu0 0.0
  %2538 = vmatpush1.msra.mxu0 0.0
  %2539 = vmatprep.subr.mxu0 0.0
  %2540 = vmatpush1.msra.mxu0 0.0
  %2541 = vmatprep.subr.mxu0 0.0
  %2542 = vmatpush1.msra.mxu0 0.0
  %2543 = vmatprep.subr.mxu0 0.0
  %2544 = vmatpush1.msra.mxu0 0.0
  %2545 = vmatprep.subr.mxu0 0.0
  %2546 = vmatpush1.msra.mxu0 0.0
  %2547 = vmatprep.subr.mxu0 0.0
  %2548 = vmatpush1.msra.mxu0 0.0
  %2549 = vmatprep.subr.mxu0 0.0
  %2550 = vmatpush1.msra.mxu0 0.0
  %2551 = vmatprep.subr.mxu0 0.0
  %2552 = vmatpush1.msra.mxu0 0.0
  %2553 = vmatprep.subr.mxu0 0.0
  %2554 = vmatpush1.msra.mxu0 0.0
  %2555 = vmatprep.subr.mxu0 0.0
  %2556 = vmatpush1.msra.mxu0 0.0
  %2557 = vmatprep.subr.mxu0 0.0
  %2558 = vmatpush1.msra.mxu0 0.0
  %2559 = vmatprep.subr.mxu0 0.0
  %2560 = vmatpush1.msra.mxu0 0.0
  %2561 = vmatprep.subr.mxu0 0.0
  %2562 = vmatpush1.msra.mxu0 0.0
  %2563 = vmatprep.subr.mxu0 0.0
  %2564 = vmatpush1.msra.mxu0 0.0
  %2565 = vmatprep.subr.mxu0 0.0
  %2566 = vmatpush1.msra.mxu0 0.0
  %2567 = vmatprep.subr.mxu0 0.0
  %2568 = vmatpush1.msra.mxu0 0.0
  %2569 = vmatprep.subr.mxu0 0.0
  %2570 = vmatpush1.msra.mxu0 0.0
  %2571 = vmatprep.subr.mxu0 0.0
  %2572 = vmatpush1.msra.mxu0 0.0
  %2573 = vmatprep.subr.mxu0 0.0
  %2574 = vmatpush1.msra.mxu0 0.0
  %2575 = vmatprep.subr.mxu0 0.0
  %2576 = vmatpush1.msra.mxu0 0.0
  %2577 = vmatprep.subr.mxu0 0.0
  %2578 = vmatpush1.msra.mxu0 0.0
  %2579 = vmatprep.subr.mxu0 0.0
  %2580 = vmatpush1.msra.mxu0 0.0
  %2581 = vmatprep.subr.mxu0 0.0
  %2582 = vmatpush1.msra.mxu0 0.0
  %2583 = vmatprep.subr.mxu0 0.0
  %2584 = vmatpush1.msra.mxu0 0.0
  %2585 = vmatprep.subr.mxu0 0.0
  %2586 = vmatpush1.msra.mxu0 0.0
  %2587 = vmatprep.subr.mxu0 0.0
  %2588 = vmatpush1.msra.mxu0 0.0
  %2589 = vmatprep.mubr.f32.mxu0 0.0
  %2590 = vmatmul.mubr.f32.gmra.mrb[0].mxu0 %v2523
  %v2591 = vpop.f32.mrb[0].mxu0
  %v2592 = vadd.f32 0.0, %v2591
  %v2593 = vpop.f32.mrb[0].mxu0
  %2594 = vdwg.mxu0
  %2595 = vrot.lane.b32.xlu0 %v330, 64
  %v2596 = vpop.permute.xlu0 %2595
  %2597 = vrot.lane.b32.xlu0 %v334, 64
  %v2598 = vpop.permute.xlu0 %2597
  %2599 = vrot.lane.b32.xlu0 %v340, 64
  %v2600 = vpop.permute.xlu0 %2599
  %2601 = vrot.lane.b32.xlu0 %v344, 64
  %v2602 = vpop.permute.xlu0 %2601
  %2603 = vrot.lane.b32.xlu0 %v350, 64
  %v2604 = vpop.permute.xlu0 %2603
  %2605 = vrot.lane.b32.xlu0 %v354, 64
  %v2606 = vpop.permute.xlu0 %2605
  %2607 = vrot.lane.b32.xlu0 %v360, 64
  %v2608 = vpop.permute.xlu0 %2607
  %2609 = vrot.lane.b32.xlu0 %v364, 64
  %v2610 = vpop.permute.xlu0 %2609
  %v2611 = vsel %vm391, %v2596, 0
  %v2613 = vsel %vm391, %v2598, 0
  %v2615 = vsel %vm391, %v2600, 0
  %v2617 = vsel %vm391, %v2602, 0
  %v2619 = vsel %vm391, %v2604, 0
  %v2621 = vsel %vm391, %v2606, 0
  %v2623 = vsel %vm391, %v2608, 0
  %v2625 = vsel %vm391, %v2610, 0
  %2627 = vmatprep.subr.mxu0 0.0
  %2628 = vmatpush1.xpose.msra.mxu0 %v2619
  %2629 = vmatprep.subr.mxu0 0.0
  %2630 = vmatpush1.xpose.msra.mxu0 %v2621
  %2631 = vmatprep.subr.mxu0 0.0
  %2632 = vmatpush1.xpose.msra.mxu0 %v2623
  %2633 = vmatprep.subr.mxu0 0.0
  %2634 = vmatpush1.xpose.msra.mxu0 %v2625
  %2635 = vmatprep.subr.mxu0 0.0
  %2636 = vmatpush1.xpose.msra.mxu0 0.0
  %2637 = vmatprep.subr.mxu0 0.0
  %2638 = vmatpush1.xpose.msra.mxu0 0.0
  %2639 = vmatprep.subr.mxu0 0.0
  %2640 = vmatpush1.xpose.msra.mxu0 0.0
  %2641 = vmatprep.subr.mxu0 0.0
  %2642 = vmatpush1.xpose.msra.mxu0 0.0
  %2643 = vmatprep.subr.mxu0 0.0
  %2644 = vmatpush1.xpose.msra.mxu0 0.0
  %2645 = vmatprep.subr.mxu0 0.0
  %2646 = vmatpush1.xpose.msra.mxu0 0.0
  %2647 = vmatprep.subr.mxu0 0.0
  %2648 = vmatpush1.xpose.msra.mxu0 0.0
  %2649 = vmatprep.subr.mxu0 0.0
  %2650 = vmatpush1.xpose.msra.mxu0 0.0
  %2651 = vmatprep.subr.mxu0 0.0
  %2652 = vmatpush1.xpose.msra.mxu0 0.0
  %2653 = vmatprep.subr.mxu0 0.0
  %2654 = vmatpush1.xpose.msra.mxu0 0.0
  %2655 = vmatprep.subr.mxu0 0.0
  %2656 = vmatpush1.xpose.msra.mxu0 0.0
  %2657 = vmatprep.subr.mxu0 0.0
  %2658 = vmatpush1.xpose.msra.mxu0 0.0
  %2659 = vmatprep.subr.mxu0 0.0
  %2660 = vmatpush1.xpose.msra.mxu0 0.0
  %2661 = vmatprep.subr.mxu0 0.0
  %2662 = vmatpush1.xpose.msra.mxu0 0.0
  %2663 = vmatprep.subr.mxu0 0.0
  %2664 = vmatpush1.xpose.msra.mxu0 0.0
  %2665 = vmatprep.subr.mxu0 0.0
  %2666 = vmatpush1.xpose.msra.mxu0 0.0
  %2667 = vmatprep.subr.mxu0 0.0
  %2668 = vmatpush1.xpose.msra.mxu0 0.0
  %2669 = vmatprep.subr.mxu0 0.0
  %2670 = vmatpush1.xpose.msra.mxu0 0.0
  %2671 = vmatprep.subr.mxu0 0.0
  %2672 = vmatpush1.xpose.msra.mxu0 0.0
  %2673 = vmatprep.subr.mxu0 0.0
  %2674 = vmatpush1.xpose.msra.mxu0 0.0
  %2675 = vmatprep.subr.mxu0 0.0
  %2676 = vmatpush1.xpose.msra.mxu0 0.0
  %2677 = vmatprep.subr.mxu0 0.0
  %2678 = vmatpush1.xpose.msra.mxu0 0.0
  %2679 = vmatprep.subr.mxu0 0.0
  %2680 = vmatpush1.xpose.msra.mxu0 0.0
  %2681 = vmatprep.subr.mxu0 0.0
  %2682 = vmatpush1.xpose.msra.mxu0 0.0
  %2683 = vmatprep.subr.mxu0 0.0
  %2684 = vmatpush1.xpose.msra.mxu0 0.0
  %2685 = vmatprep.subr.mxu0 0.0
  %2686 = vmatpush1.xpose.msra.mxu0 0.0
  %2687 = vmatprep.subr.mxu0 0.0
  %2688 = vmatpush1.xpose.msra.mxu0 0.0
  %2689 = vmatprep.subr.mxu0 0.0
  %2690 = vmatpush1.xpose.msra.mxu0 0.0
  %2691 = vmatprep.mubr.f32.mxu0 0.0
  %2692 = vmatmul.mubr.f32.gmra.mrb[0].mxu0 %v2611
  %v2693 = vpop.f32.mrb[0].mxu0
  %v2694 = vadd.f32 0.0, %v2693
  %v2695 = vpop.f32.mrb[0].mxu0
  %2696 = vmatprep.mubr.f32.mxu0 0.0
  %2697 = vmatmul.mubr.f32.gmra.mrb[0].mxu0 %v2613
  %v2698 = vpop.f32.mrb[0].mxu0
  %v2699 = vadd.f32 0.0, %v2698
  %v2700 = vpop.f32.mrb[0].mxu0
  %2701 = vmatprep.mubr.f32.mxu0 0.0
  %2702 = vmatmul.mubr.f32.gmra.mrb[0].mxu0 %v2615
  %v2703 = vpop.f32.mrb[0].mxu0
  %v2704 = vadd.f32 0.0, %v2703
  %v2705 = vpop.f32.mrb[0].mxu0
  %2706 = vmatprep.mubr.f32.mxu0 0.0
  %2707 = vmatmul.mubr.f32.gmra.mrb[0].mxu0 %v2617
  %v2708 = vpop.f32.mrb[0].mxu0
  %v2709 = vadd.f32 0.0, %v2708
  %v2710 = vpop.f32.mrb[0].mxu0
  %2711 = vdwg.mxu0
  %v2712 = vmul.f32 %v2694, 0.125
  %v2713 = vmul.f32 %v2699, 0.125
  %v2714 = vmul.f32 %v2704, 0.125
  %v2715 = vmul.f32 %v2709, 0.125
  %v2716 = vadd.f32 %v2712, %v386
  %v2717 = vadd.f32 %v2713, %v387
  %v2718 = vadd.f32 %v2714, %v388
  %v2719 = vadd.f32 %v2715, %v389
  %v2720 = vsel %vm181, %v2716, -inf
  %2721 = vmax.xlane.f32.xlu0 %v2720
  %v2722 = vpop.xlane.xlu0 %2721
  %v2723 = vsel %vm181, %v2717, -inf
  %2724 = vmax.xlane.f32.xlu0 %v2723
  %v2725 = vpop.xlane.xlu0 %2724
  %v2726 = vsel %vm181, %v2718, -inf
  %2727 = vmax.xlane.f32.xlu0 %v2726
  %v2728 = vpop.xlane.xlu0 %2727
  %v2729 = vsel %vm181, %v2719, -inf
  %2730 = vmax.xlane.f32.xlu0 %v2729
  %v2731 = vpop.xlane.xlu0 %2730
  %v2732 = vsub.f32 %v2716, %v2722
  %v2733 = vsub.f32 %v2717, %v2725
  %v2734 = vsub.f32 %v2718, %v2728
  %v2735 = vsub.f32 %v2719, %v2731
  %v2736 = vmul.f32 %v2732, 1.442695
  %v2737 = vpow.pop %v2736
  %v2738 = vmul.f32 %v2733, 1.442695
  %v2739 = vpow.pop %v2738
  %v2740 = vmul.f32 %v2734, 1.442695
  %v2741 = vpow.pop %v2740
  %v2742 = vmul.f32 %v2735, 1.442695
  %v2743 = vpow.pop %v2742
  %v2744 = vsel %vm181, %v2737, 0.0
  %2745 = vadd.xlane.f32.xlu0 %v2744
  %v2746 = vpop.xlane.xlu0 %2745
  %v2747 = vsel %vm181, %v2739, 0.0
  %2748 = vadd.xlane.f32.xlu0 %v2747
  %v2749 = vpop.xlane.xlu0 %2748
  %v2750 = vsel %vm181, %v2741, 0.0
  %2751 = vadd.xlane.f32.xlu0 %v2750
  %v2752 = vpop.xlane.xlu0 %2751
  %v2753 = vsel %vm181, %v2743, 0.0
  %2754 = vadd.xlane.f32.xlu0 %v2753
  %v2755 = vpop.xlane.xlu0 %2754
  %v2756 = vrcp.pop %v2746
  %v2757 = vrcp.pop %v2749
  %v2758 = vrcp.pop %v2752
  %v2759 = vrcp.pop %v2755
  %v2760 = vmul.f32 %v2737, %v2756
  %v2761 = vmul.f32 %v2739, %v2757
  %v2762 = vmul.f32 %v2741, %v2758
  %v2763 = vmul.f32 %v2743, %v2759
  %2764 = vmatprep.subr.mxu0 0.0
  %2765 = vmatpush1.msra.mxu0 %v2760
  %2766 = vmatprep.subr.mxu0 0.0
  %2767 = vmatpush1.msra.mxu0 %v2761
  %2768 = vmatprep.subr.mxu0 0.0
  %2769 = vmatpush1.msra.mxu0 %v2762
  %2770 = vmatprep.subr.mxu0 0.0
  %2771 = vmatpush1.msra.mxu0 %v2763
  %2772 = vmatprep.subr.mxu0 0.0
  %2773 = vmatpush1.msra.mxu0 0.0
  %2774 = vmatprep.subr.mxu0 0.0
  %2775 = vmatpush1.msra.mxu0 0.0
  %2776 = vmatprep.subr.mxu0 0.0
  %2777 = vmatpush1.msra.mxu0 0.0
  %2778 = vmatprep.subr.mxu0 0.0
  %2779 = vmatpush1.msra.mxu0 0.0
  %2780 = vmatprep.subr.mxu0 0.0
  %2781 = vmatpush1.msra.mxu0 0.0
  %2782 = vmatprep.subr.mxu0 0.0
  %2783 = vmatpush1.msra.mxu0 0.0
  %2784 = vmatprep.subr.mxu0 0.0
  %2785 = vmatpush1.msra.mxu0 0.0
  %2786 = vmatprep.subr.mxu0 0.0
  %2787 = vmatpush1.msra.mxu0 0.0
  %2788 = vmatprep.subr.mxu0 0.0
  %2789 = vmatpush1.msra.mxu0 0.0
  %2790 = vmatprep.subr.mxu0 0.0
  %2791 = vmatpush1.msra.mxu0 0.0
  %2792 = vmatprep.subr.mxu0 0.0
  %2793 = vmatpush1.msra.mxu0 0.0
  %2794 = vmatprep.subr.mxu0 0.0
  %2795 = vmatpush1.msra.mxu0 0.0
  %2796 = vmatprep.subr.mxu0 0.0
  %2797 = vmatpush1.msra.mxu0 0.0
  %2798 = vmatprep.subr.mxu0 0.0
  %2799 = vmatpush1.msra.mxu0 0.0
  %2800 = vmatprep.subr.mxu0 0.0
  %2801 = vmatpush1.msra.mxu0 0.0
  %2802 = vmatprep.subr.mxu0 0.0
  %2803 = vmatpush1.msra.mxu0 0.0
  %2804 = vmatprep.subr.mxu0 0.0
  %2805 = vmatpush1.msra.mxu0 0.0
  %2806 = vmatprep.subr.mxu0 0.0
  %2807 = vmatpush1.msra.mxu0 0.0
  %2808 = vmatprep.subr.mxu0 0.0
  %2809 = vmatpush1.msra.mxu0 0.0
  %2810 = vmatprep.subr.mxu0 0.0
  %2811 = vmatpush1.msra.mxu0 0.0
  %2812 = vmatprep.subr.mxu0 0.0
  %2813 = vmatpush1.msra.mxu0 0.0
  %2814 = vmatprep.subr.mxu0 0.0
  %2815 = vmatpush1.msra.mxu0 0.0
  %2816 = vmatprep.subr.mxu0 0.0
  %2817 = vmatpush1.msra.mxu0 0.0
  %2818 = vmatprep.subr.mxu0 0.0
  %2819 = vmatpush1.msra.mxu0 0.0
  %2820 = vmatprep.subr.mxu0 0.0
  %2821 = vmatpush1.msra.mxu0 0.0
  %2822 = vmatprep.subr.mxu0 0.0
  %2823 = vmatpush1.msra.mxu0 0.0
  %2824 = vmatprep.subr.mxu0 0.0
  %2825 = vmatpush1.msra.mxu0 0.0
  %2826 = vmatprep.subr.mxu0 0.0
  %2827 = vmatpush1.msra.mxu0 0.0
  %2828 = vmatprep.mubr.f32.mxu0 0.0
  %2829 = vmatmul.mubr.f32.gmra.mrb[0].mxu0 %v554
  %v2830 = vpop.f32.mrb[0].mxu0
  %v2831 = vadd.f32 0.0, %v2830
  %v2832 = vpop.f32.mrb[0].mxu0
  %2833 = vdwg.mxu0
  %2838 = vrot.lane.b32.xlu0 %v370, 64
  %v2839 = vpop.permute.xlu0 %2838
  %2840 = vrot.lane.b32.xlu0 %v374, 64
  %v2841 = vpop.permute.xlu0 %2840
  %2842 = vrot.lane.b32.xlu0 %v380, 64
  %v2843 = vpop.permute.xlu0 %2842
  %2844 = vrot.lane.b32.xlu0 %v384, 64
  %v2845 = vpop.permute.xlu0 %2844
  %v2851 = vsel %vm181, %v2831, 0
  %2853 = vmatprep.subr.mxu0 0.0
  %2854 = vmatpush1.msra.mxu0 %v2839
  %2855 = vmatprep.subr.mxu0 0.0
  %2856 = vmatpush1.msra.mxu0 %v2841
  %2857 = vmatprep.subr.mxu0 0.0
  %2858 = vmatpush1.msra.mxu0 %v2843
  %2859 = vmatprep.subr.mxu0 0.0
  %2860 = vmatpush1.msra.mxu0 %v2845
  %2861 = vmatprep.subr.mxu0 0.0
  %2862 = vmatpush1.msra.mxu0 0.0
  %2863 = vmatprep.subr.mxu0 0.0
  %2864 = vmatpush1.msra.mxu0 0.0
  %2865 = vmatprep.subr.mxu0 0.0
  %2866 = vmatpush1.msra.mxu0 0.0
  %2867 = vmatprep.subr.mxu0 0.0
  %2868 = vmatpush1.msra.mxu0 0.0
  %2869 = vmatprep.subr.mxu0 0.0
  %2870 = vmatpush1.msra.mxu0 0.0
  %2871 = vmatprep.subr.mxu0 0.0
  %2872 = vmatpush1.msra.mxu0 0.0
  %2873 = vmatprep.subr.mxu0 0.0
  %2874 = vmatpush1.msra.mxu0 0.0
  %2875 = vmatprep.subr.mxu0 0.0
  %2876 = vmatpush1.msra.mxu0 0.0
  %2877 = vmatprep.subr.mxu0 0.0
  %2878 = vmatpush1.msra.mxu0 0.0
  %2879 = vmatprep.subr.mxu0 0.0
  %2880 = vmatpush1.msra.mxu0 0.0
  %2881 = vmatprep.subr.mxu0 0.0
  %2882 = vmatpush1.msra.mxu0 0.0
  %2883 = vmatprep.subr.mxu0 0.0
  %2884 = vmatpush1.msra.mxu0 0.0
  %2885 = vmatprep.subr.mxu0 0.0
  %2886 = vmatpush1.msra.mxu0 0.0
  %2887 = vmatprep.subr.mxu0 0.0
  %2888 = vmatpush1.msra.mxu0 0.0
  %2889 = vmatprep.subr.mxu0 0.0
  %2890 = vmatpush1.msra.mxu0 0.0
  %2891 = vmatprep.subr.mxu0 0.0
  %2892 = vmatpush1.msra.mxu0 0.0
  %2893 = vmatprep.subr.mxu0 0.0
  %2894 = vmatpush1.msra.mxu0 0.0
  %2895 = vmatprep.subr.mxu0 0.0
  %2896 = vmatpush1.msra.mxu0 0.0
  %2897 = vmatprep.subr.mxu0 0.0
  %2898 = vmatpush1.msra.mxu0 0.0
  %2899 = vmatprep.subr.mxu0 0.0
  %2900 = vmatpush1.msra.mxu0 0.0
  %2901 = vmatprep.subr.mxu0 0.0
  %2902 = vmatpush1.msra.mxu0 0.0
  %2903 = vmatprep.subr.mxu0 0.0
  %2904 = vmatpush1.msra.mxu0 0.0
  %2905 = vmatprep.subr.mxu0 0.0
  %2906 = vmatpush1.msra.mxu0 0.0
  %2907 = vmatprep.subr.mxu0 0.0
  %2908 = vmatpush1.msra.mxu0 0.0
  %2909 = vmatprep.subr.mxu0 0.0
  %2910 = vmatpush1.msra.mxu0 0.0
  %2911 = vmatprep.subr.mxu0 0.0
  %2912 = vmatpush1.msra.mxu0 0.0
  %2913 = vmatprep.subr.mxu0 0.0
  %2914 = vmatpush1.msra.mxu0 0.0
  %2915 = vmatprep.subr.mxu0 0.0
  %2916 = vmatpush1.msra.mxu0 0.0
  %2917 = vmatprep.mubr.f32.mxu0 0.0
  %2918 = vmatmul.mubr.f32.gmra.mrb[0].mxu0 %v2851
  %v2919 = vpop.f32.mrb[0].mxu0
  %v2920 = vadd.f32 0.0, %v2919
  %v2921 = vpop.f32.mrb[0].mxu0
  %2922 = vdwg.mxu0
  %2924 = vrot.lane.b32.xlu0 %v1024, 64
  %v2925 = vpop.permute.xlu0 %2924
  %2928 = vrot.lane.b32.xlu0 %v1656, 64
  %v2929 = vpop.permute.xlu0 %2928
  %2932 = vrot.lane.b32.xlu0 %v2288, 64
  %v2933 = vpop.permute.xlu0 %2932
  %2936 = vrot.lane.b32.xlu0 %v2920, 64
  %v2937 = vpop.permute.xlu0 %2936
  %v2939 = vsel %vm391, %v696, %v2925
  %v2940 = vsel %vm391, %v1328, %v2929
  %v2941 = vsel %vm391, %v1960, %v2933
  %v2942 = vsel %vm391, %v2592, %v2937
  %v2943 = vld [vmem:[#allocation2] sm:$0x1]
  %2945 = vset.pattern.permute.xlu0 0
  %2946 = vperm.xlu0 %2945, %v2943
  %v2947 = vpop.permute.xlu0 %2946
  %v2949 = vlaneseq
  %v2950 = vshrl.u32 %v2949, 7
  %v2951 = vsub.s32 0, %v2950
  %v2952 = vrot.slane %v2947, %v2951
  %v2953 = vadd.f32 %v2939, %v2952
  %v2954 = vadd.f32 %v2940, %v2952
  %v2955 = vadd.f32 %v2941, %v2952
  %v2956 = vadd.f32 %v2942, %v2952
  %v2961 = vcombine.low %v2953, %v2954
  %v2962 = vcombine.low %v2955, %v2956
  %v2964 = vunpack.c.l.s4 1966171168
  %v2965 = vunpack.c.0.s8 %v2964
  %v2966 = vlaneseq
  %v2967 = vshrl.u32 %v2966, 7
  %v2968 = vsub.s32 %v2965, %v2967
  %v2969 = vrot.slane %v2961, %v2968
  %v2971 = vunpack.c.l.s4 1966171168
  %v2972 = vunpack.c.0.s8 %v2971
  %v2973 = vlaneseq
  %v2974 = vshrl.u32 %v2973, 7
  %v2975 = vsub.s32 %v2972, %v2974
  %v2976 = vrot.slane %v2962, %v2975
  %v2977 = vcombine.low %v2969, %v2976
  %v2979 = vunpack.c.l.s4 1966171168
  %v2980 = vunpack.c.0.s8 %v2979
  %v2981 = vlaneseq
  %v2982 = vshrl.u32 %v2981, 7
  %v2983 = vsub.s32 %v2980, %v2982
  %v2984 = vrot.slane %v2977, %v2983
  %v2986 = vlaneseq
  %vm2987 = vcmp.ge.s32.totalorder %v2986, 0
  %vm2988 = vcmp.lt.s32.totalorder %v2986, 512
  %vm2989 = vmand %vm2987, %vm2988
  %2990 = vst.msk [vmem:[%s7] sm:$0xf] %vm2989, %v2984
  // Predicated region
  $region30: #{model_forward.1} parent=0 // pred_check
    _
  $region31: #{model_forward.1} parent=0 // pred_check_branch
    %2992 = sbr.rel (0) target = $region33
  $region32: #{model_forward.1} parent=0 // pred_region
    _
  $region33: #{model_forward.1} parent=0 // pred_fallthru
    _
  // Predicated region
  $region34: #{model_forward.1} parent=0 // pred_check
    _
  $region35: #{model_forward.1} parent=0 // pred_check_branch
    %2994 = sbr.rel (0) target = $region37
  $region36: #{model_forward.1} parent=0 // pred_region
    _
  $region37: #{model_forward.1} parent=0 // pred_fallthru
    _

</llo_original>
